<compile_context>
chip_gen: v7x
topology: tpu7x:2x2x1
jax: 0.10.0
libtpu: 0.0.40
codegen_flags: <defaults>
</compile_context>

<pallas_src>
import jax
import jax.numpy as jnp
import numpy as np
from jax import lax
from jax.experimental import pallas as pl
from jax.experimental.pallas import tpu as pltpu


def _static_int_pow(x, n: int):
    """x**n for static integer n >= 1 via repeated squaring (a handful of VPU muls)."""
    assert n >= 1
    acc = None
    while True:
        if n & 1:
            acc = x if acc is None else acc * x
        n >>= 1
        if n == 0:
            return acc
        x = x * x


def _cstm_chunk_kernel(lo_ref, hi_ref, bd_ref, ws_ref):
    m, d = lo_ref.shape            # m == memory_size == dim
    dim = d                        # exponent used by InverseDimAttention (embed_dim)
    p = 128 // d                   # timesteps packed per 128-lane vreg row
    n_groups = ws_ref.shape[0]     # t_blk // p

    # Window rows [M*i, M*i + 2M) of concat(memory_buffer, xs): every row any timestep of this
    # chunk can see.  ~8 vregs for M=D=32; lives in registers for the whole chunk (no per-step
    # VMEM round trips, no serial chain).
    win = jnp.concatenate([lo_ref[...], hi_ref[...]], axis=0)      # (2M, D)
    bd = bd_ref[...]                                               # (128, 128) block-diag ones

    rows = []
    for g in range(n_groups):                       # static unroll (8 groups for M=D=32)
        b_parts, s_parts = [], []
        for q in range(p):
            j = g * p + q                           # local timestep within the chunk
            b_q = win[j + 1:j + 1 + m, :]           # buffer AFTER step j's shift   (M, D)
            # S = B @ B.T, transpose-free (both operands contracted on dim 1); small dots
            # pipeline back-to-back on the otherwise-idle MXU (steps are independent).
            s_q = lax.dot_general(b_q, b_q, (((1,), (1,)), ((), ())),
                                  preferred_element_type=jnp.float32)
            b_parts.append(b_q)
            s_parts.append(s_q)
        b_pack = jnp.concatenate(b_parts, axis=1)   # (M, 128): P buffers packed along lanes
        s_pack = jnp.concatenate(s_parts, axis=1)   # (M, 128): P Gram matrices packed along lanes

        # W = 1 / S**dim : repeated squaring on the VPU, reciprocal on the EUP slot,
        # all at full 128-lane occupancy.
        w = pl.reciprocal(_static_int_pow(s_pack, dim), approx=True)
        # Per-timestep row sums, broadcast back across their D lanes, in one MXU pass:
        #   denom[i, q*D + k] = sum_k' w[i, q*D + k'].
        denom = lax.dot_general(w, bd, (((1,), (0,)), ((), ())),
                                preferred_element_type=jnp.float32)
        w = w * pl.reciprocal(denom, approx=True)

        # weighted_sum_t[d'] = sum_i W_t[i, d'] * B_t[i, d']  (requires memory_size == dim);
        # the sublane reduction leaves the P weighted sums packed along lanes.
        rows.append(jnp.sum(w * b_pack, axis=0, keepdims=True))     # (1, 128)

    # One dense (t_blk//P, 128) store per chunk — no masked sub-(8,128)-tile writes.
    ws_ref[...] = jnp.concatenate(rows, axis=0)


def _forward_impl(xs, memory_buffer):
    """Fused forward over a length-T sequence.

    Returns (new_memory_buffer, outputs) with outputs[t] = concat([weighted_sum_t, x_t], -1).
    """
    xs = jnp.asarray(xs, jnp.float32)
    memory_buffer = jnp.asarray(memory_buffer, jnp.float32)

    T, D = xs.shape
    M, D2 = memory_buffer.shape
    assert D == D2
    assert M == D, "PyTorch broadcasting in this module requires memory_size == dim"
    assert 128 % D == 0, "lane packing assumes dim divides 128"
    assert (M * D) % (8 * 128) == 0, "output chunk must tile into whole (8,128) vreg tiles"

    P = 128 // D                 # timesteps packed per lane row
    t_blk = M                    # timesteps per grid step; window = exactly 2M rows

    # Pad T up to a multiple of t_blk; padded steps only see themselves (window is causal),
    # so they cannot corrupt real outputs and are sliced off below.
    Tp = ((T + t_blk - 1) // t_blk) * t_blk
    xs_p = xs if Tp == T else jnp.concatenate(
        [xs, jnp.ones((Tp - T, D), jnp.float32)], axis=0)

    # Sliding-window source: the buffer after step t is rows [t+1, t+1+M) of this array.
    win_full = jnp.concatenate([memory_buffer, xs_p], axis=0)       # (Tp + M, D)

    # Block-diagonal ones matrix: one MXU pass = per-timestep row-sum + lane broadcast.
    grp = jnp.arange(128, dtype=jnp.int32) // D
    bd = (grp[:, None] == grp[None, :]).astype(jnp.float32)         # (128, 128)

    nc = Tp // t_blk
    ws_dense = pl.pallas_call(
        _cstm_chunk_kernel,
        out_shape=jax.ShapeDtypeStruct((Tp // P, 128), jnp.float32),   # lane-dense weighted sums
        grid=(nc,),
        in_specs=[
            pl.BlockSpec((M, D), lambda i: (i, 0)),        # window rows [M*i,     M*i + M)
            pl.BlockSpec((M, D), lambda i: (i + 1, 0)),    # window rows [M*(i+1), M*(i+1) + M)
            pl.BlockSpec((128, 128), lambda i: (0, 0)),    # block-diag ones (constant)
        ],
        out_specs=pl.BlockSpec((t_blk // P, 128), lambda i: (i, 0)),
        compiler_params=pltpu.CompilerParams(
            dimension_semantics=("parallel",)),            # no carried state between chunks
    )(win_full, win_full, bd)

    ws = ws_dense.reshape(Tp, D)[:T]                       # undo lane packing (pure layout)
    outputs = jnp.concatenate([ws, xs], axis=-1)           # (T, 2*D)
    new_buf = jnp.concatenate([memory_buffer, xs], axis=0)[T:]   # final buffer = window slice
    return new_buf, outputs


custom_short_term_memory_sequence = jax.jit(_forward_impl)


def _reference_numpy(xs, buf):
    """Pure float64 numpy reference (per-step, stateful, same semantics)."""
    xs = np.asarray(xs, np.float64)
    buf = np.asarray(buf, np.float64).copy()
    D = buf.shape[1]
    outs = []
    for t in range(xs.shape[0]):
        buf = np.concatenate([buf[1:], xs[t:t + 1]], axis=0)
        s = buf @ buf.T
        w = 1.0 / (s ** D)
        w = w / np.sum(w, axis=-1, keepdims=True)
        ws = np.sum(w * buf, axis=0)
        outs.append(np.concatenate([ws, xs[t]], axis=-1))
    return buf, np.stack(outs, axis=0)


if __name__ == "__main__":
    dim = 32
    memory_size = 32     # must equal dim for the module's broadcasting to be valid
    seq_len = 64

    key = jax.random.PRNGKey(0)
    kx, kb = jax.random.split(key)

    # Keep all pairwise dot products ~2 so s**dim stays finite in float32
    # (1 / 0**dim with the module's zero-initialized buffer would be inf/nan).
    base = jnp.sqrt(jnp.float32(2.0 / dim))
    xs = base + 0.05 * jax.random.normal(kx, (seq_len, dim), jnp.float32)
    memory_buffer = base + 0.05 * jax.random.normal(kb, (memory_size, dim), jnp.float32)

    new_buf, outputs = custom_short_term_memory_sequence(xs, memory_buffer)
    jax.block_until_ready((new_buf, outputs))

    ref_buf, ref_out = _reference_numpy(xs, memory_buffer)
    # Final buffer is a pure slice of concat(memory_buffer, xs) -> exact.
    np.testing.assert_allclose(np.asarray(new_buf), ref_buf, rtol=1e-5, atol=1e-6)
    # The **dim power amplifies f32 matmul rounding ~dim x and the approx (EUP)
    # reciprocals add ~1e-3 relative error; normalization cancels most of it.
    np.testing.assert_allclose(np.asarray(outputs), ref_out, rtol=2e-2, atol=1e-4)

    print("KERNEL_OK")
</pallas_src>

<mosaic_0001>
module attributes {stable_mosaic.version = 11 : i64} {
  func.func @_cstm_chunk_kernel(%arg0: i32, %arg1: memref<32x32xf32, #tpu.memory_space<vmem>>, %arg2: memref<32x32xf32, #tpu.memory_space<vmem>>, %arg3: memref<128x128xf32, #tpu.memory_space<vmem>>, %arg4: memref<8x128xf32, #tpu.memory_space<vmem>>) attributes {dimension_semantics = [#tpu.dimension_semantics<parallel>], iteration_bounds = array<i64: 2>, scalar_prefetch = 0 : i64, scratch_operands = 0 : i64, tpu.core_type = #tpu.core_type<tc>, window_params = [{transform_indices = @transform_0, window_bounds = array<i64: 32, 32>}, {transform_indices = @transform_1, window_bounds = array<i64: 32, 32>}, {pipeline_mode = #tpu.pipeline_mode<synchronous>, transform_indices = @transform_2, window_bounds = array<i64: 128, 128>}, {transform_indices = @transform_3, window_bounds = array<i64: 8, 128>}]} {
    %c0 = arith.constant 0 : index
    %c0_0 = arith.constant 0 : index
    %0 = vector.load %arg1[%c0, %c0_0] : memref<32x32xf32, #tpu.memory_space<vmem>>, vector<32x32xf32>
    %c0_1 = arith.constant 0 : index
    %c0_2 = arith.constant 0 : index
    %1 = vector.load %arg2[%c0_1, %c0_2] : memref<32x32xf32, #tpu.memory_space<vmem>>, vector<32x32xf32>
    %2 = tpu.concatenate %0, %1 in 0 : vector<32x32xf32>, vector<32x32xf32> -> vector<64x32xf32>
    %c0_3 = arith.constant 0 : index
    %c0_4 = arith.constant 0 : index
    %3 = vector.load %arg3[%c0_3, %c0_4] : memref<128x128xf32, #tpu.memory_space<vmem>>, vector<128x128xf32>
    %4 = vector.extract_strided_slice %2 {offsets = [1, 0], sizes = [32, 32], strides = [1, 1]} : vector<64x32xf32> to vector<32x32xf32>
    %cst = arith.constant dense<0.000000e+00> : vector<32x32xf32>
    %5 = tpu.matmul %4, %4, %cst {dimension_numbers = #tpu.dot_dimension_numbers<[1], [1], [0], [0], [0, 0, 1, 0], [], []>} : vector<32x32xf32>, vector<32x32xf32>, vector<32x32xf32> -> vector<32x32xf32>
    %6 = vector.extract_strided_slice %2 {offsets = [2, 0], sizes = [32, 32], strides = [1, 1]} : vector<64x32xf32> to vector<32x32xf32>
    %cst_5 = arith.constant dense<0.000000e+00> : vector<32x32xf32>
    %7 = tpu.matmul %6, %6, %cst_5 {dimension_numbers = #tpu.dot_dimension_numbers<[1], [1], [0], [0], [0, 0, 1, 0], [], []>} : vector<32x32xf32>, vector<32x32xf32>, vector<32x32xf32> -> vector<32x32xf32>
    %8 = vector.extract_strided_slice %2 {offsets = [3, 0], sizes = [32, 32], strides = [1, 1]} : vector<64x32xf32> to vector<32x32xf32>
    %cst_6 = arith.constant dense<0.000000e+00> : vector<32x32xf32>
    %9 = tpu.matmul %8, %8, %cst_6 {dimension_numbers = #tpu.dot_dimension_numbers<[1], [1], [0], [0], [0, 0, 1, 0], [], []>} : vector<32x32xf32>, vector<32x32xf32>, vector<32x32xf32> -> vector<32x32xf32>
    %10 = vector.extract_strided_slice %2 {offsets = [4, 0], sizes = [32, 32], strides = [1, 1]} : vector<64x32xf32> to vector<32x32xf32>
    %cst_7 = arith.constant dense<0.000000e+00> : vector<32x32xf32>
    %11 = tpu.matmul %10, %10, %cst_7 {dimension_numbers = #tpu.dot_dimension_numbers<[1], [1], [0], [0], [0, 0, 1, 0], [], []>} : vector<32x32xf32>, vector<32x32xf32>, vector<32x32xf32> -> vector<32x32xf32>
    %12 = tpu.concatenate %4, %6, %8, %10 in 1 : vector<32x32xf32>, vector<32x32xf32>, vector<32x32xf32>, vector<32x32xf32> -> vector<32x128xf32>
    %13 = tpu.concatenate %5, %7, %9, %11 in 1 : vector<32x32xf32>, vector<32x32xf32>, vector<32x32xf32>, vector<32x32xf32> -> vector<32x128xf32>
    %14 = arith.mulf %13, %13 : vector<32x128xf32>
    %15 = arith.mulf %14, %14 : vector<32x128xf32>
    %16 = arith.mulf %15, %15 : vector<32x128xf32>
    %17 = arith.mulf %16, %16 : vector<32x128xf32>
    %18 = arith.mulf %17, %17 : vector<32x128xf32>
    %19 = tpu.reciprocal %18 {approx = true} : vector<32x128xf32> -> vector<32x128xf32>
    %cst_8 = arith.constant dense<0.000000e+00> : vector<32x128xf32>
    %20 = tpu.matmul %19, %3, %cst_8 {dimension_numbers = #tpu.dot_dimension_numbers<[1], [0], [0], [1], [0, 0, 1, 1], [], []>} : vector<32x128xf32>, vector<128x128xf32>, vector<32x128xf32> -> vector<32x128xf32>
    %21 = tpu.reciprocal %20 {approx = true} : vector<32x128xf32> -> vector<32x128xf32>
    %22 = arith.mulf %19, %21 : vector<32x128xf32>
    %23 = arith.mulf %22, %12 : vector<32x128xf32>
    %cst_9 = arith.constant dense<0.000000e+00> : vector<128xf32>
    %24 = vector.multi_reduction <add>, %23, %cst_9 [0] : vector<32x128xf32> to vector<128xf32>
    %25 = vector.shape_cast %24 : vector<128xf32> to vector<1x128xf32>
    %26 = vector.extract_strided_slice %2 {offsets = [5, 0], sizes = [32, 32], strides = [1, 1]} : vector<64x32xf32> to vector<32x32xf32>
    %cst_10 = arith.constant dense<0.000000e+00> : vector<32x32xf32>
    %27 = tpu.matmul %26, %26, %cst_10 {dimension_numbers = #tpu.dot_dimension_numbers<[1], [1], [0], [0], [0, 0, 1, 0], [], []>} : vector<32x32xf32>, vector<32x32xf32>, vector<32x32xf32> -> vector<32x32xf32>
    %28 = vector.extract_strided_slice %2 {offsets = [6, 0], sizes = [32, 32], strides = [1, 1]} : vector<64x32xf32> to vector<32x32xf32>
    %cst_11 = arith.constant dense<0.000000e+00> : vector<32x32xf32>
    %29 = tpu.matmul %28, %28, %cst_11 {dimension_numbers = #tpu.dot_dimension_numbers<[1], [1], [0], [0], [0, 0, 1, 0], [], []>} : vector<32x32xf32>, vector<32x32xf32>, vector<32x32xf32> -> vector<32x32xf32>
    %30 = vector.extract_strided_slice %2 {offsets = [7, 0], sizes = [32, 32], strides = [1, 1]} : vector<64x32xf32> to vector<32x32xf32>
    %cst_12 = arith.constant dense<0.000000e+00> : vector<32x32xf32>
    %31 = tpu.matmul %30, %30, %cst_12 {dimension_numbers = #tpu.dot_dimension_numbers<[1], [1], [0], [0], [0, 0, 1, 0], [], []>} : vector<32x32xf32>, vector<32x32xf32>, vector<32x32xf32> -> vector<32x32xf32>
    %32 = vector.extract_strided_slice %2 {offsets = [8, 0], sizes = [32, 32], strides = [1, 1]} : vector<64x32xf32> to vector<32x32xf32>
    %cst_13 = arith.constant dense<0.000000e+00> : vector<32x32xf32>
    %33 = tpu.matmul %32, %32, %cst_13 {dimension_numbers = #tpu.dot_dimension_numbers<[1], [1], [0], [0], [0, 0, 1, 0], [], []>} : vector<32x32xf32>, vector<32x32xf32>, vector<32x32xf32> -> vector<32x32xf32>
    %34 = tpu.concatenate %26, %28, %30, %32 in 1 : vector<32x32xf32>, vector<32x32xf32>, vector<32x32xf32>, vector<32x32xf32> -> vector<32x128xf32>
    %35 = tpu.concatenate %27, %29, %31, %33 in 1 : vector<32x32xf32>, vector<32x32xf32>, vector<32x32xf32>, vector<32x32xf32> -> vector<32x128xf32>
    %36 = arith.mulf %35, %35 : vector<32x128xf32>
    %37 = arith.mulf %36, %36 : vector<32x128xf32>
    %38 = arith.mulf %37, %37 : vector<32x128xf32>
    %39 = arith.mulf %38, %38 : vector<32x128xf32>
    %40 = arith.mulf %39, %39 : vector<32x128xf32>
    %41 = tpu.reciprocal %40 {approx = true} : vector<32x128xf32> -> vector<32x128xf32>
    %cst_14 = arith.constant dense<0.000000e+00> : vector<32x128xf32>
    %42 = tpu.matmul %41, %3, %cst_14 {dimension_numbers = #tpu.dot_dimension_numbers<[1], [0], [0], [1], [0, 0, 1, 1], [], []>} : vector<32x128xf32>, vector<128x128xf32>, vector<32x128xf32> -> vector<32x128xf32>
    %43 = tpu.reciprocal %42 {approx = true} : vector<32x128xf32> -> vector<32x128xf32>
    %44 = arith.mulf %41, %43 : vector<32x128xf32>
    %45 = arith.mulf %44, %34 : vector<32x128xf32>
    %cst_15 = arith.constant dense<0.000000e+00> : vector<128xf32>
    %46 = vector.multi_reduction <add>, %45, %cst_15 [0] : vector<32x128xf32> to vector<128xf32>
    %47 = vector.shape_cast %46 : vector<128xf32> to vector<1x128xf32>
    %48 = vector.extract_strided_slice %2 {offsets = [9, 0], sizes = [32, 32], strides = [1, 1]} : vector<64x32xf32> to vector<32x32xf32>
    %cst_16 = arith.constant dense<0.000000e+00> : vector<32x32xf32>
    %49 = tpu.matmul %48, %48, %cst_16 {dimension_numbers = #tpu.dot_dimension_numbers<[1], [1], [0], [0], [0, 0, 1, 0], [], []>} : vector<32x32xf32>, vector<32x32xf32>, vector<32x32xf32> -> vector<32x32xf32>
    %50 = vector.extract_strided_slice %2 {offsets = [10, 0], sizes = [32, 32], strides = [1, 1]} : vector<64x32xf32> to vector<32x32xf32>
    %cst_17 = arith.constant dense<0.000000e+00> : vector<32x32xf32>
    %51 = tpu.matmul %50, %50, %cst_17 {dimension_numbers = #tpu.dot_dimension_numbers<[1], [1], [0], [0], [0, 0, 1, 0], [], []>} : vector<32x32xf32>, vector<32x32xf32>, vector<32x32xf32> -> vector<32x32xf32>
    %52 = vector.extract_strided_slice %2 {offsets = [11, 0], sizes = [32, 32], strides = [1, 1]} : vector<64x32xf32> to vector<32x32xf32>
    %cst_18 = arith.constant dense<0.000000e+00> : vector<32x32xf32>
    %53 = tpu.matmul %52, %52, %cst_18 {dimension_numbers = #tpu.dot_dimension_numbers<[1], [1], [0], [0], [0, 0, 1, 0], [], []>} : vector<32x32xf32>, vector<32x32xf32>, vector<32x32xf32> -> vector<32x32xf32>
    %54 = vector.extract_strided_slice %2 {offsets = [12, 0], sizes = [32, 32], strides = [1, 1]} : vector<64x32xf32> to vector<32x32xf32>
    %cst_19 = arith.constant dense<0.000000e+00> : vector<32x32xf32>
    %55 = tpu.matmul %54, %54, %cst_19 {dimension_numbers = #tpu.dot_dimension_numbers<[1], [1], [0], [0], [0, 0, 1, 0], [], []>} : vector<32x32xf32>, vector<32x32xf32>, vector<32x32xf32> -> vector<32x32xf32>
    %56 = tpu.concatenate %48, %50, %52, %54 in 1 : vector<32x32xf32>, vector<32x32xf32>, vector<32x32xf32>, vector<32x32xf32> -> vector<32x128xf32>
    %57 = tpu.concatenate %49, %51, %53, %55 in 1 : vector<32x32xf32>, vector<32x32xf32>, vector<32x32xf32>, vector<32x32xf32> -> vector<32x128xf32>
    %58 = arith.mulf %57, %57 : vector<32x128xf32>
    %59 = arith.mulf %58, %58 : vector<32x128xf32>
    %60 = arith.mulf %59, %59 : vector<32x128xf32>
    %61 = arith.mulf %60, %60 : vector<32x128xf32>
    %62 = arith.mulf %61, %61 : vector<32x128xf32>
    %63 = tpu.reciprocal %62 {approx = true} : vector<32x128xf32> -> vector<32x128xf32>
    %cst_20 = arith.constant dense<0.000000e+00> : vector<32x128xf32>
    %64 = tpu.matmul %63, %3, %cst_20 {dimension_numbers = #tpu.dot_dimension_numbers<[1], [0], [0], [1], [0, 0, 1, 1], [], []>} : vector<32x128xf32>, vector<128x128xf32>, vector<32x128xf32> -> vector<32x128xf32>
    %65 = tpu.reciprocal %64 {approx = true} : vector<32x128xf32> -> vector<32x128xf32>
    %66 = arith.mulf %63, %65 : vector<32x128xf32>
    %67 = arith.mulf %66, %56 : vector<32x128xf32>
    %cst_21 = arith.constant dense<0.000000e+00> : vector<128xf32>
    %68 = vector.multi_reduction <add>, %67, %cst_21 [0] : vector<32x128xf32> to vector<128xf32>
    %69 = vector.shape_cast %68 : vector<128xf32> to vector<1x128xf32>
    %70 = vector.extract_strided_slice %2 {offsets = [13, 0], sizes = [32, 32], strides = [1, 1]} : vector<64x32xf32> to vector<32x32xf32>
    %cst_22 = arith.constant dense<0.000000e+00> : vector<32x32xf32>
    %71 = tpu.matmul %70, %70, %cst_22 {dimension_numbers = #tpu.dot_dimension_numbers<[1], [1], [0], [0], [0, 0, 1, 0], [], []>} : vector<32x32xf32>, vector<32x32xf32>, vector<32x32xf32> -> vector<32x32xf32>
    %72 = vector.extract_strided_slice %2 {offsets = [14, 0], sizes = [32, 32], strides = [1, 1]} : vector<64x32xf32> to vector<32x32xf32>
    %cst_23 = arith.constant dense<0.000000e+00> : vector<32x32xf32>
    %73 = tpu.matmul %72, %72, %cst_23 {dimension_numbers = #tpu.dot_dimension_numbers<[1], [1], [0], [0], [0, 0, 1, 0], [], []>} : vector<32x32xf32>, vector<32x32xf32>, vector<32x32xf32> -> vector<32x32xf32>
    %74 = vector.extract_strided_slice %2 {offsets = [15, 0], sizes = [32, 32], strides = [1, 1]} : vector<64x32xf32> to vector<32x32xf32>
    %cst_24 = arith.constant dense<0.000000e+00> : vector<32x32xf32>
    %75 = tpu.matmul %74, %74, %cst_24 {dimension_numbers = #tpu.dot_dimension_numbers<[1], [1], [0], [0], [0, 0, 1, 0], [], []>} : vector<32x32xf32>, vector<32x32xf32>, vector<32x32xf32> -> vector<32x32xf32>
    %76 = vector.extract_strided_slice %2 {offsets = [16, 0], sizes = [32, 32], strides = [1, 1]} : vector<64x32xf32> to vector<32x32xf32>
    %cst_25 = arith.constant dense<0.000000e+00> : vector<32x32xf32>
    %77 = tpu.matmul %76, %76, %cst_25 {dimension_numbers = #tpu.dot_dimension_numbers<[1], [1], [0], [0], [0, 0, 1, 0], [], []>} : vector<32x32xf32>, vector<32x32xf32>, vector<32x32xf32> -> vector<32x32xf32>
    %78 = tpu.concatenate %70, %72, %74, %76 in 1 : vector<32x32xf32>, vector<32x32xf32>, vector<32x32xf32>, vector<32x32xf32> -> vector<32x128xf32>
    %79 = tpu.concatenate %71, %73, %75, %77 in 1 : vector<32x32xf32>, vector<32x32xf32>, vector<32x32xf32>, vector<32x32xf32> -> vector<32x128xf32>
    %80 = arith.mulf %79, %79 : vector<32x128xf32>
    %81 = arith.mulf %80, %80 : vector<32x128xf32>
    %82 = arith.mulf %81, %81 : vector<32x128xf32>
    %83 = arith.mulf %82, %82 : vector<32x128xf32>
    %84 = arith.mulf %83, %83 : vector<32x128xf32>
    %85 = tpu.reciprocal %84 {approx = true} : vector<32x128xf32> -> vector<32x128xf32>
    %cst_26 = arith.constant dense<0.000000e+00> : vector<32x128xf32>
    %86 = tpu.matmul %85, %3, %cst_26 {dimension_numbers = #tpu.dot_dimension_numbers<[1], [0], [0], [1], [0, 0, 1, 1], [], []>} : vector<32x128xf32>, vector<128x128xf32>, vector<32x128xf32> -> vector<32x128xf32>
    %87 = tpu.reciprocal %86 {approx = true} : vector<32x128xf32> -> vector<32x128xf32>
    %88 = arith.mulf %85, %87 : vector<32x128xf32>
    %89 = arith.mulf %88, %78 : vector<32x128xf32>
    %cst_27 = arith.constant dense<0.000000e+00> : vector<128xf32>
    %90 = vector.multi_reduction <add>, %89, %cst_27 [0] : vector<32x128xf32> to vector<128xf32>
    %91 = vector.shape_cast %90 : vector<128xf32> to vector<1x128xf32>
    %92 = vector.extract_strided_slice %2 {offsets = [17, 0], sizes = [32, 32], strides = [1, 1]} : vector<64x32xf32> to vector<32x32xf32>
    %cst_28 = arith.constant dense<0.000000e+00> : vector<32x32xf32>
    %93 = tpu.matmul %92, %92, %cst_28 {dimension_numbers = #tpu.dot_dimension_numbers<[1], [1], [0], [0], [0, 0, 1, 0], [], []>} : vector<32x32xf32>, vector<32x32xf32>, vector<32x32xf32> -> vector<32x32xf32>
    %94 = vector.extract_strided_slice %2 {offsets = [18, 0], sizes = [32, 32], strides = [1, 1]} : vector<64x32xf32> to vector<32x32xf32>
    %cst_29 = arith.constant dense<0.000000e+00> : vector<32x32xf32>
    %95 = tpu.matmul %94, %94, %cst_29 {dimension_numbers = #tpu.dot_dimension_numbers<[1], [1], [0], [0], [0, 0, 1, 0], [], []>} : vector<32x32xf32>, vector<32x32xf32>, vector<32x32xf32> -> vector<32x32xf32>
    %96 = vector.extract_strided_slice %2 {offsets = [19, 0], sizes = [32, 32], strides = [1, 1]} : vector<64x32xf32> to vector<32x32xf32>
    %cst_30 = arith.constant dense<0.000000e+00> : vector<32x32xf32>
    %97 = tpu.matmul %96, %96, %cst_30 {dimension_numbers = #tpu.dot_dimension_numbers<[1], [1], [0], [0], [0, 0, 1, 0], [], []>} : vector<32x32xf32>, vector<32x32xf32>, vector<32x32xf32> -> vector<32x32xf32>
    %98 = vector.extract_strided_slice %2 {offsets = [20, 0], sizes = [32, 32], strides = [1, 1]} : vector<64x32xf32> to vector<32x32xf32>
    %cst_31 = arith.constant dense<0.000000e+00> : vector<32x32xf32>
    %99 = tpu.matmul %98, %98, %cst_31 {dimension_numbers = #tpu.dot_dimension_numbers<[1], [1], [0], [0], [0, 0, 1, 0], [], []>} : vector<32x32xf32>, vector<32x32xf32>, vector<32x32xf32> -> vector<32x32xf32>
    %100 = tpu.concatenate %92, %94, %96, %98 in 1 : vector<32x32xf32>, vector<32x32xf32>, vector<32x32xf32>, vector<32x32xf32> -> vector<32x128xf32>
    %101 = tpu.concatenate %93, %95, %97, %99 in 1 : vector<32x32xf32>, vector<32x32xf32>, vector<32x32xf32>, vector<32x32xf32> -> vector<32x128xf32>
    %102 = arith.mulf %101, %101 : vector<32x128xf32>
    %103 = arith.mulf %102, %102 : vector<32x128xf32>
    %104 = arith.mulf %103, %103 : vector<32x128xf32>
    %105 = arith.mulf %104, %104 : vector<32x128xf32>
    %106 = arith.mulf %105, %105 : vector<32x128xf32>
    %107 = tpu.reciprocal %106 {approx = true} : vector<32x128xf32> -> vector<32x128xf32>
    %cst_32 = arith.constant dense<0.000000e+00> : vector<32x128xf32>
    %108 = tpu.matmul %107, %3, %cst_32 {dimension_numbers = #tpu.dot_dimension_numbers<[1], [0], [0], [1], [0, 0, 1, 1], [], []>} : vector<32x128xf32>, vector<128x128xf32>, vector<32x128xf32> -> vector<32x128xf32>
    %109 = tpu.reciprocal %108 {approx = true} : vector<32x128xf32> -> vector<32x128xf32>
    %110 = arith.mulf %107, %109 : vector<32x128xf32>
    %111 = arith.mulf %110, %100 : vector<32x128xf32>
    %cst_33 = arith.constant dense<0.000000e+00> : vector<128xf32>
    %112 = vector.multi_reduction <add>, %111, %cst_33 [0] : vector<32x128xf32> to vector<128xf32>
    %113 = vector.shape_cast %112 : vector<128xf32> to vector<1x128xf32>
    %114 = vector.extract_strided_slice %2 {offsets = [21, 0], sizes = [32, 32], strides = [1, 1]} : vector<64x32xf32> to vector<32x32xf32>
    %cst_34 = arith.constant dense<0.000000e+00> : vector<32x32xf32>
    %115 = tpu.matmul %114, %114, %cst_34 {dimension_numbers = #tpu.dot_dimension_numbers<[1], [1], [0], [0], [0, 0, 1, 0], [], []>} : vector<32x32xf32>, vector<32x32xf32>, vector<32x32xf32> -> vector<32x32xf32>
    %116 = vector.extract_strided_slice %2 {offsets = [22, 0], sizes = [32, 32], strides = [1, 1]} : vector<64x32xf32> to vector<32x32xf32>
    %cst_35 = arith.constant dense<0.000000e+00> : vector<32x32xf32>
    %117 = tpu.matmul %116, %116, %cst_35 {dimension_numbers = #tpu.dot_dimension_numbers<[1], [1], [0], [0], [0, 0, 1, 0], [], []>} : vector<32x32xf32>, vector<32x32xf32>, vector<32x32xf32> -> vector<32x32xf32>
    %118 = vector.extract_strided_slice %2 {offsets = [23, 0], sizes = [32, 32], strides = [1, 1]} : vector<64x32xf32> to vector<32x32xf32>
    %cst_36 = arith.constant dense<0.000000e+00> : vector<32x32xf32>
    %119 = tpu.matmul %118, %118, %cst_36 {dimension_numbers = #tpu.dot_dimension_numbers<[1], [1], [0], [0], [0, 0, 1, 0], [], []>} : vector<32x32xf32>, vector<32x32xf32>, vector<32x32xf32> -> vector<32x32xf32>
    %120 = vector.extract_strided_slice %2 {offsets = [24, 0], sizes = [32, 32], strides = [1, 1]} : vector<64x32xf32> to vector<32x32xf32>
    %cst_37 = arith.constant dense<0.000000e+00> : vector<32x32xf32>
    %121 = tpu.matmul %120, %120, %cst_37 {dimension_numbers = #tpu.dot_dimension_numbers<[1], [1], [0], [0], [0, 0, 1, 0], [], []>} : vector<32x32xf32>, vector<32x32xf32>, vector<32x32xf32> -> vector<32x32xf32>
    %122 = tpu.concatenate %114, %116, %118, %120 in 1 : vector<32x32xf32>, vector<32x32xf32>, vector<32x32xf32>, vector<32x32xf32> -> vector<32x128xf32>
    %123 = tpu.concatenate %115, %117, %119, %121 in 1 : vector<32x32xf32>, vector<32x32xf32>, vector<32x32xf32>, vector<32x32xf32> -> vector<32x128xf32>
    %124 = arith.mulf %123, %123 : vector<32x128xf32>
    %125 = arith.mulf %124, %124 : vector<32x128xf32>
    %126 = arith.mulf %125, %125 : vector<32x128xf32>
    %127 = arith.mulf %126, %126 : vector<32x128xf32>
    %128 = arith.mulf %127, %127 : vector<32x128xf32>
    %129 = tpu.reciprocal %128 {approx = true} : vector<32x128xf32> -> vector<32x128xf32>
    %cst_38 = arith.constant dense<0.000000e+00> : vector<32x128xf32>
    %130 = tpu.matmul %129, %3, %cst_38 {dimension_numbers = #tpu.dot_dimension_numbers<[1], [0], [0], [1], [0, 0, 1, 1], [], []>} : vector<32x128xf32>, vector<128x128xf32>, vector<32x128xf32> -> vector<32x128xf32>
    %131 = tpu.reciprocal %130 {approx = true} : vector<32x128xf32> -> vector<32x128xf32>
    %132 = arith.mulf %129, %131 : vector<32x128xf32>
    %133 = arith.mulf %132, %122 : vector<32x128xf32>
    %cst_39 = arith.constant dense<0.000000e+00> : vector<128xf32>
    %134 = vector.multi_reduction <add>, %133, %cst_39 [0] : vector<32x128xf32> to vector<128xf32>
    %135 = vector.shape_cast %134 : vector<128xf32> to vector<1x128xf32>
    %136 = vector.extract_strided_slice %2 {offsets = [25, 0], sizes = [32, 32], strides = [1, 1]} : vector<64x32xf32> to vector<32x32xf32>
    %cst_40 = arith.constant dense<0.000000e+00> : vector<32x32xf32>
    %137 = tpu.matmul %136, %136, %cst_40 {dimension_numbers = #tpu.dot_dimension_numbers<[1], [1], [0], [0], [0, 0, 1, 0], [], []>} : vector<32x32xf32>, vector<32x32xf32>, vector<32x32xf32> -> vector<32x32xf32>
    %138 = vector.extract_strided_slice %2 {offsets = [26, 0], sizes = [32, 32], strides = [1, 1]} : vector<64x32xf32> to vector<32x32xf32>
    %cst_41 = arith.constant dense<0.000000e+00> : vector<32x32xf32>
    %139 = tpu.matmul %138, %138, %cst_41 {dimension_numbers = #tpu.dot_dimension_numbers<[1], [1], [0], [0], [0, 0, 1, 0], [], []>} : vector<32x32xf32>, vector<32x32xf32>, vector<32x32xf32> -> vector<32x32xf32>
    %140 = vector.extract_strided_slice %2 {offsets = [27, 0], sizes = [32, 32], strides = [1, 1]} : vector<64x32xf32> to vector<32x32xf32>
    %cst_42 = arith.constant dense<0.000000e+00> : vector<32x32xf32>
    %141 = tpu.matmul %140, %140, %cst_42 {dimension_numbers = #tpu.dot_dimension_numbers<[1], [1], [0], [0], [0, 0, 1, 0], [], []>} : vector<32x32xf32>, vector<32x32xf32>, vector<32x32xf32> -> vector<32x32xf32>
    %142 = vector.extract_strided_slice %2 {offsets = [28, 0], sizes = [32, 32], strides = [1, 1]} : vector<64x32xf32> to vector<32x32xf32>
    %cst_43 = arith.constant dense<0.000000e+00> : vector<32x32xf32>
    %143 = tpu.matmul %142, %142, %cst_43 {dimension_numbers = #tpu.dot_dimension_numbers<[1], [1], [0], [0], [0, 0, 1, 0], [], []>} : vector<32x32xf32>, vector<32x32xf32>, vector<32x32xf32> -> vector<32x32xf32>
    %144 = tpu.concatenate %136, %138, %140, %142 in 1 : vector<32x32xf32>, vector<32x32xf32>, vector<32x32xf32>, vector<32x32xf32> -> vector<32x128xf32>
    %145 = tpu.concatenate %137, %139, %141, %143 in 1 : vector<32x32xf32>, vector<32x32xf32>, vector<32x32xf32>, vector<32x32xf32> -> vector<32x128xf32>
    %146 = arith.mulf %145, %145 : vector<32x128xf32>
    %147 = arith.mulf %146, %146 : vector<32x128xf32>
    %148 = arith.mulf %147, %147 : vector<32x128xf32>
    %149 = arith.mulf %148, %148 : vector<32x128xf32>
    %150 = arith.mulf %149, %149 : vector<32x128xf32>
    %151 = tpu.reciprocal %150 {approx = true} : vector<32x128xf32> -> vector<32x128xf32>
    %cst_44 = arith.constant dense<0.000000e+00> : vector<32x128xf32>
    %152 = tpu.matmul %151, %3, %cst_44 {dimension_numbers = #tpu.dot_dimension_numbers<[1], [0], [0], [1], [0, 0, 1, 1], [], []>} : vector<32x128xf32>, vector<128x128xf32>, vector<32x128xf32> -> vector<32x128xf32>
    %153 = tpu.reciprocal %152 {approx = true} : vector<32x128xf32> -> vector<32x128xf32>
    %154 = arith.mulf %151, %153 : vector<32x128xf32>
    %155 = arith.mulf %154, %144 : vector<32x128xf32>
    %cst_45 = arith.constant dense<0.000000e+00> : vector<128xf32>
    %156 = vector.multi_reduction <add>, %155, %cst_45 [0] : vector<32x128xf32> to vector<128xf32>
    %157 = vector.shape_cast %156 : vector<128xf32> to vector<1x128xf32>
    %158 = vector.extract_strided_slice %2 {offsets = [29, 0], sizes = [32, 32], strides = [1, 1]} : vector<64x32xf32> to vector<32x32xf32>
    %cst_46 = arith.constant dense<0.000000e+00> : vector<32x32xf32>
    %159 = tpu.matmul %158, %158, %cst_46 {dimension_numbers = #tpu.dot_dimension_numbers<[1], [1], [0], [0], [0, 0, 1, 0], [], []>} : vector<32x32xf32>, vector<32x32xf32>, vector<32x32xf32> -> vector<32x32xf32>
    %160 = vector.extract_strided_slice %2 {offsets = [30, 0], sizes = [32, 32], strides = [1, 1]} : vector<64x32xf32> to vector<32x32xf32>
    %cst_47 = arith.constant dense<0.000000e+00> : vector<32x32xf32>
    %161 = tpu.matmul %160, %160, %cst_47 {dimension_numbers = #tpu.dot_dimension_numbers<[1], [1], [0], [0], [0, 0, 1, 0], [], []>} : vector<32x32xf32>, vector<32x32xf32>, vector<32x32xf32> -> vector<32x32xf32>
    %162 = vector.extract_strided_slice %2 {offsets = [31, 0], sizes = [32, 32], strides = [1, 1]} : vector<64x32xf32> to vector<32x32xf32>
    %cst_48 = arith.constant dense<0.000000e+00> : vector<32x32xf32>
    %163 = tpu.matmul %162, %162, %cst_48 {dimension_numbers = #tpu.dot_dimension_numbers<[1], [1], [0], [0], [0, 0, 1, 0], [], []>} : vector<32x32xf32>, vector<32x32xf32>, vector<32x32xf32> -> vector<32x32xf32>
    %164 = vector.extract_strided_slice %2 {offsets = [32, 0], sizes = [32, 32], strides = [1, 1]} : vector<64x32xf32> to vector<32x32xf32>
    %cst_49 = arith.constant dense<0.000000e+00> : vector<32x32xf32>
    %165 = tpu.matmul %164, %164, %cst_49 {dimension_numbers = #tpu.dot_dimension_numbers<[1], [1], [0], [0], [0, 0, 1, 0], [], []>} : vector<32x32xf32>, vector<32x32xf32>, vector<32x32xf32> -> vector<32x32xf32>
    %166 = tpu.concatenate %158, %160, %162, %164 in 1 : vector<32x32xf32>, vector<32x32xf32>, vector<32x32xf32>, vector<32x32xf32> -> vector<32x128xf32>
    %167 = tpu.concatenate %159, %161, %163, %165 in 1 : vector<32x32xf32>, vector<32x32xf32>, vector<32x32xf32>, vector<32x32xf32> -> vector<32x128xf32>
    %168 = arith.mulf %167, %167 : vector<32x128xf32>
    %169 = arith.mulf %168, %168 : vector<32x128xf32>
    %170 = arith.mulf %169, %169 : vector<32x128xf32>
    %171 = arith.mulf %170, %170 : vector<32x128xf32>
    %172 = arith.mulf %171, %171 : vector<32x128xf32>
    %173 = tpu.reciprocal %172 {approx = true} : vector<32x128xf32> -> vector<32x128xf32>
    %cst_50 = arith.constant dense<0.000000e+00> : vector<32x128xf32>
    %174 = tpu.matmul %173, %3, %cst_50 {dimension_numbers = #tpu.dot_dimension_numbers<[1], [0], [0], [1], [0, 0, 1, 1], [], []>} : vector<32x128xf32>, vector<128x128xf32>, vector<32x128xf32> -> vector<32x128xf32>
    %175 = tpu.reciprocal %174 {approx = true} : vector<32x128xf32> -> vector<32x128xf32>
    %176 = arith.mulf %173, %175 : vector<32x128xf32>
    %177 = arith.mulf %176, %166 : vector<32x128xf32>
    %cst_51 = arith.constant dense<0.000000e+00> : vector<128xf32>
    %178 = vector.multi_reduction <add>, %177, %cst_51 [0] : vector<32x128xf32> to vector<128xf32>
    %179 = vector.shape_cast %178 : vector<128xf32> to vector<1x128xf32>
    %180 = tpu.concatenate %25, %47, %69, %91, %113, %135, %157, %179 in 0 : vector<1x128xf32>, vector<1x128xf32>, vector<1x128xf32>, vector<1x128xf32>, vector<1x128xf32>, vector<1x128xf32>, vector<1x128xf32>, vector<1x128xf32> -> vector<8x128xf32>
    %c0_52 = arith.constant 0 : index
    %c0_53 = arith.constant 0 : index
    %181 = vector.load %arg4[%c0_52, %c0_53] : memref<8x128xf32, #tpu.memory_space<vmem>>, vector<8x128xf32>
    tpu.vector_store %arg4[%c0_52, %c0_53], %180 {strides = array<i32>} : memref<8x128xf32, #tpu.memory_space<vmem>>, vector<8x128xf32>,
    return
  }
  func.func @transform_0(%arg0: i32) -> (i32, i32) {
    %c0_i32 = arith.constant 0 : i32
    %c0_i32_0 = arith.constant 0 : i32
    return %arg0, %c0_i32 : i32, i32
  }
  func.func @transform_1(%arg0: i32) -> (i32, i32) {
    %c1_i32 = arith.constant 1 : i32
    %0 = arith.addi %arg0, %c1_i32 : i32
    %c0_i32 = arith.constant 0 : i32
    %c0_i32_0 = arith.constant 0 : i32
    return %0, %c0_i32 : i32, i32
  }
  func.func @transform_2(%arg0: i32) -> (i32, i32) {
    %c0_i32 = arith.constant 0 : i32
    %c0_i32_0 = arith.constant 0 : i32
    %c0_i32_1 = arith.constant 0 : i32
    return %c0_i32, %c0_i32_0 : i32, i32
  }
  func.func @transform_3(%arg0: i32) -> (i32, i32) {
    %c0_i32 = arith.constant 0 : i32
    %c0_i32_0 = arith.constant 0 : i32
    return %arg0, %c0_i32 : i32, i32
  }
}

</mosaic_0001>

<llo_original>
// kernel: _forward_impl.1
$region0: #{_forward_impl.1}
  #allocation0 [shape = 'u32[]', space=smem, size = 0x4, offset = 0x4, fixed_abs, tag = 'smem constant byte address 0x4 - core index']
  #allocation1 [shape = 'u32[144,128]{1,0:T(1,128)}', space=vmem, size = 0x12000, scoped, tag = 'internal scratch']
  %s0 = inlined_call_operand.vmem [shape: f32[96,32], index: 0, kind: input, shape index: {}, may-alias: {0,1}]
  %s1 = inlined_call_operand.vmem [shape: f32[96,32], index: 1, kind: input, shape index: {}, may-alias: {0,1}]
  %s2 = inlined_call_operand.vmem [shape: f32[128,128], index: 2, kind: input, shape index: {}]
  %s3 = inlined_call_operand.vmem [shape: f32[16,128], index: 3, kind: output, shape index: {}]
  %s4 = sld [smem:[#allocation0]]
  $region45: #{_forward_impl.1} parent=0
    _
  %s6 = ssub.s32 1, %s4
  %s7 = scalar_select 0, %s6, %s4
  loop: start=0, step=1, limit=4
  $region2: #{_forward_impl.1} parent=0 // loop_pre_header
    _
  $region3: #{_forward_impl.1} parent=0 // loop_header
    %s9 = sphi 0, %s13
    %p10 = scmp.ge.s32.totalorder %s9, 4
    %s19 = sphi 0, %s21
    %s22 = sphi 0, %s19
    %s23 = sphi 0, %s22
    %s39 = sphi 0, %s23
    %s47 = sphi 0, %s49
    %s50 = sphi 0, %s47
    %s51 = sphi 0, %s50
    %s67 = sphi 0, %s51
    %s71 = sphi 0, %s71
    %s73 = sphi 0, %s71
    %s74 = sphi 0, %s73
    %s88 = sphi 0, %s74
    %s94 = sphi 0, %s96
    %s97 = sphi 0, %s94
    %s98 = sphi 0, %s97
    %s114 = sphi 0, %s98
  $region4: #{_forward_impl.1} parent=0 // loop_header_branch
    %12 = sbr.rel (%p10) target = $region8
  $region5: #{_forward_impl.1} parent=0 // loop_body
    %s14 = ssub.s32 %s9, 1
    %s15 = ssub.s32 %s9, 2
    %s16 = sadd.s32 %s9, 1
    %s17 = ssub.s32 %s9, %s16
    %p18 = scmp.eq.s32.totalorder %s17, 0
    %s20 = sadd.s32 %s19, 1
    %s21 = scalar_select %p18, %s19, %s20
    %p24 = pneg %p18
    %p25 = scmp.eq.s32.totalorder %s9, 1
    %p26 = por %p24, %p25
    %p27 = scmp.ne.s32.totalorder %s19, %s22
    %p28 = scmp.eq.s32.totalorder %s9, 0
    %p29 = por %p27, %p28
    %p30 = scmp.ne.s32.totalorder %s19, %s22
    %p31 = scmp.eq.s32.totalorder %s14, 1
    %p32 = por %p30, %p31
    %p33 = scmp.ne.s32.totalorder %s22, %s23
    %p34 = scmp.eq.s32.totalorder %s14, 0
    %p35 = por %p33, %p34
    %p36 = scmp.ne.s32.totalorder %s22, %s23
    %p37 = scmp.eq.s32.totalorder %s15, 1
    %p38 = por %p36, %p37
    %p40 = scmp.ne.s32.totalorder %s23, %s39
    %p41 = scmp.eq.s32.totalorder %s15, 0
    %p42 = por %p40, %p41
    %s43 = sadd.s32 %s9, 1
    %s44 = sadd.s32 %s16, 1
    %s45 = ssub.s32 %s43, %s44
    %p46 = scmp.eq.s32.totalorder %s45, 0
    %s48 = sadd.s32 %s47, 1
    %s49 = scalar_select %p46, %s47, %s48
    %p52 = pneg %p46
    %p53 = scmp.eq.s32.totalorder %s9, 1
    %p54 = por %p52, %p53
    %p55 = scmp.ne.s32.totalorder %s47, %s50
    %p56 = scmp.eq.s32.totalorder %s9, 0
    %p57 = por %p55, %p56
    %p58 = scmp.ne.s32.totalorder %s47, %s50
    %p59 = scmp.eq.s32.totalorder %s14, 1
    %p60 = por %p58, %p59
    %p61 = scmp.ne.s32.totalorder %s50, %s51
    %p62 = scmp.eq.s32.totalorder %s14, 0
    %p63 = por %p61, %p62
    %p64 = scmp.ne.s32.totalorder %s50, %s51
    %p65 = scmp.eq.s32.totalorder %s15, 1
    %p66 = por %p64, %p65
    %p68 = scmp.ne.s32.totalorder %s51, %s67
    %p69 = scmp.eq.s32.totalorder %s15, 0
    %p70 = por %p68, %p69
    %s72 = sadd.s32 %s71, 1
    %p75 = scmp.eq.s32.totalorder %s9, 1
    %p76 = scmp.ne.s32.totalorder %s71, %s73
    %p77 = scmp.eq.s32.totalorder %s9, 0
    %p78 = por %p76, %p77
    %p79 = scmp.ne.s32.totalorder %s71, %s73
    %p80 = scmp.eq.s32.totalorder %s14, 1
    %p81 = por %p79, %p80
    %p82 = scmp.ne.s32.totalorder %s73, %s74
    %p83 = scmp.eq.s32.totalorder %s14, 0
    %p84 = por %p82, %p83
    %p85 = scmp.ne.s32.totalorder %s73, %s74
    %p86 = scmp.eq.s32.totalorder %s15, 1
    %p87 = por %p85, %p86
    %p89 = scmp.ne.s32.totalorder %s74, %s88
    %p90 = scmp.eq.s32.totalorder %s15, 0
    %p91 = por %p89, %p90
    %s92 = ssub.s32 %s9, %s16
    %p93 = scmp.eq.s32.totalorder %s92, 0
    %s95 = sadd.s32 %s94, 1
    %s96 = scalar_select %p93, %s94, %s95
    %p99 = pneg %p93
    %p100 = scmp.eq.s32.totalorder %s9, 1
    %p101 = por %p99, %p100
    %p102 = scmp.ne.s32.totalorder %s94, %s97
    %p103 = scmp.eq.s32.totalorder %s9, 0
    %p104 = por %p102, %p103
    %p105 = scmp.ne.s32.totalorder %s94, %s97
    %p106 = scmp.eq.s32.totalorder %s14, 1
    %p107 = por %p105, %p106
    %p108 = scmp.ne.s32.totalorder %s97, %s98
    %p109 = scmp.eq.s32.totalorder %s14, 0
    %p110 = por %p108, %p109
    %p111 = scmp.ne.s32.totalorder %s97, %s98
    %p112 = scmp.eq.s32.totalorder %s15, 1
    %p113 = por %p111, %p112
    %p115 = scmp.ne.s32.totalorder %s98, %s114
    %p116 = scmp.eq.s32.totalorder %s15, 0
    %p117 = por %p115, %p116
    %p118 = scmp.le.s32.totalorder 1, %s9
    %p119 = scmp.lt.s32.totalorder %s9, 3
    %p120 = pnand %p118, %p119
    %p121 = pneg %p120
    // Predicated region
    $region9: #{_forward_impl.1} parent=5 // pred_check
      _
    $region10: #{_forward_impl.1} parent=5 // pred_check_branch
      %123 = sbr.rel (%p120) target = $region12
    $region11: #{_forward_impl.1} parent=5 // pred_region
      %s124 = ssub.s32 %s9, 1
      // Predicated region
      $region13: #{_forward_impl.1} parent=11 // pred_check
        %p125 = pneg %p84
      $region14: #{_forward_impl.1} parent=11 // pred_check_branch
        %127 = sbr.rel (%p125) target = $region16
      $region15: #{_forward_impl.1} parent=11 // pred_region
        _
      $region16: #{_forward_impl.1} parent=11 // pred_fallthru
        _
    $region12: #{_forward_impl.1} parent=5 // pred_fallthru
      _
    %p128 = scmp.lt.s32.totalorder %s9, 2
    // Predicated region
    $region17: #{_forward_impl.1} parent=5 // pred_check
      %p129 = pneg %p128
    $region18: #{_forward_impl.1} parent=5 // pred_check_branch
      %131 = sbr.rel (%p129) target = $region20
    $region19: #{_forward_impl.1} parent=5 // pred_region
      // Predicated region
      $region21: #{_forward_impl.1} parent=19 // pred_check
        %p132 = pneg %p29
      $region22: #{_forward_impl.1} parent=19 // pred_check_branch
        %134 = sbr.rel (%p132) target = $region24
      $region23: #{_forward_impl.1} parent=19 // pred_region
        %s135 = smul.u32 4, %s9
        %p136 = scmp.lt.s32.totalorder %s135, 11
        %s137 = scalar_select %p136, %s135, 11
        %s138 = smul.addr %s137, 8
        %s139 = scalar_lea.vmem %s0, %s138
        %s140 = smul.u32 4, %s9
      $region24: #{_forward_impl.1} parent=19 // pred_fallthru
        _
      // Predicated region
      $region25: #{_forward_impl.1} parent=19 // pred_check
        %p141 = pneg %p57
      $region26: #{_forward_impl.1} parent=19 // pred_check_branch
        %143 = sbr.rel (%p141) target = $region28
      $region27: #{_forward_impl.1} parent=19 // pred_region
        %s144 = sadd.s32 %s9, 1
        %s145 = smul.u32 4, %s144
        %p146 = scmp.lt.s32.totalorder %s145, 11
        %s147 = scalar_select %p146, %s145, 11
        %s148 = smul.addr %s147, 8
        %s149 = scalar_lea.vmem %s1, %s148
        %s150 = sadd.s32 %s9, 1
        %s151 = smul.u32 4, %s150
      $region28: #{_forward_impl.1} parent=19 // pred_fallthru
        _
    $region20: #{_forward_impl.1} parent=5 // pred_fallthru
      _
    %p152 = scmp.le.s32.totalorder 1, %s9
    %p153 = scmp.lt.s32.totalorder %s9, 3
    %p154 = pnand %p152, %p153
    %p155 = pneg %p154
    // Predicated region
    $region29: #{_forward_impl.1} parent=5 // pred_check
      _
    $region30: #{_forward_impl.1} parent=5 // pred_check_branch
      %157 = sbr.rel (%p154) target = $region32
    $region31: #{_forward_impl.1} parent=5 // pred_region
      %s158 = ssub.s32 %s9, 1
      %s159 = smul.u32 4, %s14
      %p160 = scmp.lt.s32.totalorder %s159, 11
      %s161 = scalar_select %p160, %s159, 11
      %s162 = smul.addr %s161, 8
      %s163 = scalar_lea.vmem %s0, %s162
      %p164 = pneg %p35
      %p165 = pneg %p32
      %s166 = sadd.s32 %s14, 1
      %s167 = smul.u32 4, %s166
      %p168 = scmp.lt.s32.totalorder %s167, 11
      %s169 = scalar_select %p168, %s167, 11
      %s170 = smul.addr %s169, 8
      %s171 = scalar_lea.vmem %s1, %s170
      %p172 = pneg %p63
      %p173 = pneg %p60
      %p174 = pneg %p84
      %p175 = pneg %p81
      %p176 = pneg %p110
      %p177 = pneg %p107
      %p178 = scmp.lt.s32.totalorder %s14, 1
      %s179 = scalar_select %p178, %s14, 1
      %s180 = smul.addr %s179, 8
      %s181 = scalar_lea.vmem %s3, %s180
      %s182 = smul.u32 4, %s14
      %p183 = scmp.lt.s32.totalorder %s182, 11
      %s184 = scalar_select %p183, %s182, 11
      %s185 = smul.addr %s184, 8
      %s186 = scalar_lea.vmem %s0, %s185
      %s187 = smul.u32 4, %s14
      %s188 = sadd.s32 %s14, 1
      %s189 = smul.u32 4, %s188
      %p190 = scmp.lt.s32.totalorder %s189, 11
      %s191 = scalar_select %p190, %s189, 11
      %s192 = smul.addr %s191, 8
      %s193 = scalar_lea.vmem %s1, %s192
      %s194 = sadd.s32 %s14, 1
      %s195 = smul.u32 4, %s194
      %p196 = scmp.lt.s32.totalorder %s14, 1
      %s197 = scalar_select %p196, %s14, 1
      %s198 = smul.addr %s197, 8
      %s199 = scalar_lea.vmem %s3, %s198
      %v200 = vld [vmem:[%s186] sm:$0xff]
      %v201 = vld [vmem:[%s186 + $0x8] sm:$0xff]
      %v202 = vld [vmem:[%s186 + $0x10] sm:$0xff]
      %v203 = vld [vmem:[%s186 + $0x18] sm:$0xff]
      %v204 = vld [vmem:[%s193] sm:$0xff]
      %v205 = vld [vmem:[%s193 + $0x8] sm:$0xff]
      %v206 = vld [vmem:[%s193 + $0x10] sm:$0xff]
      %v207 = vld [vmem:[%s193 + $0x18] sm:$0xff]
      %v208 = vld [vmem:[%s2] sm:$0xff]
      %v209 = vld [vmem:[%s2 + $0x8] sm:$0xff]
      %v210 = vld [vmem:[%s2 + $0x10] sm:$0xff]
      %v211 = vld [vmem:[%s2 + $0x18] sm:$0xff]
      %v212 = vld [vmem:[%s2 + $0x20] sm:$0xff]
      %v213 = vld [vmem:[%s2 + $0x28] sm:$0xff]
      %v214 = vld [vmem:[%s2 + $0x30] sm:$0xff]
      %v215 = vld [vmem:[%s2 + $0x38] sm:$0xff]
      %v216 = vld [vmem:[%s2 + $0x40] sm:$0xff]
      %v217 = vld [vmem:[%s2 + $0x48] sm:$0xff]
      %v218 = vld [vmem:[%s2 + $0x50] sm:$0xff]
      %v219 = vld [vmem:[%s2 + $0x58] sm:$0xff]
      %v220 = vld [vmem:[%s2 + $0x60] sm:$0xff]
      %v221 = vld [vmem:[%s2 + $0x68] sm:$0xff]
      %v222 = vld [vmem:[%s2 + $0x70] sm:$0xff]
      %v223 = vld [vmem:[%s2 + $0x78] sm:$0xff]
      %vm229 = vcmask 1046528
      %v230 = vrot.slane %v200, 1
      %v231 = vrot.slane %v201, 1
      %v232 = vsel %vm229, %v230, %v231
      %v233 = vrot.slane %v202, 1
      %v234 = vsel %vm229, %v231, %v233
      %v235 = vrot.slane %v203, 1
      %v236 = vsel %vm229, %v233, %v235
      %v237 = vrot.slane %v204, 1
      %v238 = vsel %vm229, %v235, %v237
      %vm239 = vcmask 261120
      %v240 = vsel %vm239, %v232, 0
      %v242 = vsel %vm239, %v234, 0
      %v244 = vsel %vm239, %v236, 0
      %v246 = vsel %vm239, %v238, 0
      %248 = vmatprep.subr.mxu0 0.0
      %249 = vmatpush1.xpose.msra.mxu0 %v240
      %250 = vmatprep.subr.mxu0 0.0
      %251 = vmatpush1.xpose.msra.mxu0 %v242
      %252 = vmatprep.subr.mxu0 0.0
      %253 = vmatpush1.xpose.msra.mxu0 %v244
      %254 = vmatprep.subr.mxu0 0.0
      %255 = vmatpush1.xpose.msra.mxu0 %v246
      %256 = vmatprep.subr.mxu0 0.0
      %257 = vmatpush1.xpose.msra.mxu0 0.0
      %258 = vmatprep.subr.mxu0 0.0
      %259 = vmatpush1.xpose.msra.mxu0 0.0
      %260 = vmatprep.subr.mxu0 0.0
      %261 = vmatpush1.xpose.msra.mxu0 0.0
      %262 = vmatprep.subr.mxu0 0.0
      %263 = vmatpush1.xpose.msra.mxu0 0.0
      %264 = vmatprep.subr.mxu0 0.0
      %265 = vmatpush1.xpose.msra.mxu0 0.0
      %266 = vmatprep.subr.mxu0 0.0
      %267 = vmatpush1.xpose.msra.mxu0 0.0
      %268 = vmatprep.subr.mxu0 0.0
      %269 = vmatpush1.xpose.msra.mxu0 0.0
      %270 = vmatprep.subr.mxu0 0.0
      %271 = vmatpush1.xpose.msra.mxu0 0.0
      %272 = vmatprep.subr.mxu0 0.0
      %273 = vmatpush1.xpose.msra.mxu0 0.0
      %274 = vmatprep.subr.mxu0 0.0
      %275 = vmatpush1.xpose.msra.mxu0 0.0
      %276 = vmatprep.subr.mxu0 0.0
      %277 = vmatpush1.xpose.msra.mxu0 0.0
      %278 = vmatprep.subr.mxu0 0.0
      %279 = vmatpush1.xpose.msra.mxu0 0.0
      %280 = vmatprep.subr.mxu0 0.0
      %281 = vmatpush1.xpose.msra.mxu0 0.0
      %282 = vmatprep.subr.mxu0 0.0
      %283 = vmatpush1.xpose.msra.mxu0 0.0
      %284 = vmatprep.subr.mxu0 0.0
      %285 = vmatpush1.xpose.msra.mxu0 0.0
      %286 = vmatprep.subr.mxu0 0.0
      %287 = vmatpush1.xpose.msra.mxu0 0.0
      %288 = vmatprep.subr.mxu0 0.0
      %289 = vmatpush1.xpose.msra.mxu0 0.0
      %290 = vmatprep.subr.mxu0 0.0
      %291 = vmatpush1.xpose.msra.mxu0 0.0
      %292 = vmatprep.subr.mxu0 0.0
      %293 = vmatpush1.xpose.msra.mxu0 0.0
      %294 = vmatprep.subr.mxu0 0.0
      %295 = vmatpush1.xpose.msra.mxu0 0.0
      %296 = vmatprep.subr.mxu0 0.0
      %297 = vmatpush1.xpose.msra.mxu0 0.0
      %298 = vmatprep.subr.mxu0 0.0
      %299 = vmatpush1.xpose.msra.mxu0 0.0
      %300 = vmatprep.subr.mxu0 0.0
      %301 = vmatpush1.xpose.msra.mxu0 0.0
      %302 = vmatprep.subr.mxu0 0.0
      %303 = vmatpush1.xpose.msra.mxu0 0.0
      %304 = vmatprep.subr.mxu0 0.0
      %305 = vmatpush1.xpose.msra.mxu0 0.0
      %306 = vmatprep.subr.mxu0 0.0
      %307 = vmatpush1.xpose.msra.mxu0 0.0
      %308 = vmatprep.subr.mxu0 0.0
      %309 = vmatpush1.xpose.msra.mxu0 0.0
      %310 = vmatprep.subr.mxu0 0.0
      %311 = vmatpush1.xpose.msra.mxu0 0.0
      %312 = vmatprep.mubr.f32.mxu0 0.0
      %313 = vmatmul.mubr.f32.gmra.mrb[0].mxu0 %v240
      %v314 = vpop.f32.mrb[0].mxu0
      %v315 = vadd.f32 0.0, %v314
      %v316 = vpop.f32.mrb[0].mxu0
      %317 = vmatprep.mubr.f32.mxu0 0.0
      %318 = vmatmul.mubr.f32.gmra.mrb[0].mxu0 %v242
      %v319 = vpop.f32.mrb[0].mxu0
      %v320 = vadd.f32 0.0, %v319
      %v321 = vpop.f32.mrb[0].mxu0
      %322 = vmatprep.mubr.f32.mxu0 0.0
      %323 = vmatmul.mubr.f32.gmra.mrb[0].mxu0 %v244
      %v324 = vpop.f32.mrb[0].mxu0
      %v325 = vadd.f32 0.0, %v324
      %v326 = vpop.f32.mrb[0].mxu0
      %327 = vmatprep.mubr.f32.mxu0 0.0
      %328 = vmatmul.mubr.f32.gmra.mrb[0].mxu0 %v246
      %v329 = vpop.f32.mrb[0].mxu0
      %v330 = vadd.f32 0.0, %v329
      %v331 = vpop.f32.mrb[0].mxu0
      %332 = vdwg.mxu0
      %vm333 = vcmask 1045504
      %v334 = vrot.slane %v200, 2
      %v335 = vrot.slane %v201, 2
      %v336 = vsel %vm333, %v334, %v335
      %v337 = vrot.slane %v202, 2
      %v338 = vsel %vm333, %v335, %v337
      %v339 = vrot.slane %v203, 2
      %v340 = vsel %vm333, %v337, %v339
      %v341 = vrot.slane %v204, 2
      %v342 = vsel %vm333, %v339, %v341
      %v343 = vsel %vm239, %v336, 0
      %v345 = vsel %vm239, %v338, 0
      %v347 = vsel %vm239, %v340, 0
      %v349 = vsel %vm239, %v342, 0
      %351 = vmatprep.subr.mxu0 0.0
      %352 = vmatpush1.xpose.msra.mxu0 %v343
      %353 = vmatprep.subr.mxu0 0.0
      %354 = vmatpush1.xpose.msra.mxu0 %v345
      %355 = vmatprep.subr.mxu0 0.0
      %356 = vmatpush1.xpose.msra.mxu0 %v347
      %357 = vmatprep.subr.mxu0 0.0
      %358 = vmatpush1.xpose.msra.mxu0 %v349
      %359 = vmatprep.subr.mxu0 0.0
      %360 = vmatpush1.xpose.msra.mxu0 0.0
      %361 = vmatprep.subr.mxu0 0.0
      %362 = vmatpush1.xpose.msra.mxu0 0.0
      %363 = vmatprep.subr.mxu0 0.0
      %364 = vmatpush1.xpose.msra.mxu0 0.0
      %365 = vmatprep.subr.mxu0 0.0
      %366 = vmatpush1.xpose.msra.mxu0 0.0
      %367 = vmatprep.subr.mxu0 0.0
      %368 = vmatpush1.xpose.msra.mxu0 0.0
      %369 = vmatprep.subr.mxu0 0.0
      %370 = vmatpush1.xpose.msra.mxu0 0.0
      %371 = vmatprep.subr.mxu0 0.0
      %372 = vmatpush1.xpose.msra.mxu0 0.0
      %373 = vmatprep.subr.mxu0 0.0
      %374 = vmatpush1.xpose.msra.mxu0 0.0
      %375 = vmatprep.subr.mxu0 0.0
      %376 = vmatpush1.xpose.msra.mxu0 0.0
      %377 = vmatprep.subr.mxu0 0.0
      %378 = vmatpush1.xpose.msra.mxu0 0.0
      %379 = vmatprep.subr.mxu0 0.0
      %380 = vmatpush1.xpose.msra.mxu0 0.0
      %381 = vmatprep.subr.mxu0 0.0
      %382 = vmatpush1.xpose.msra.mxu0 0.0
      %383 = vmatprep.subr.mxu0 0.0
      %384 = vmatpush1.xpose.msra.mxu0 0.0
      %385 = vmatprep.subr.mxu0 0.0
      %386 = vmatpush1.xpose.msra.mxu0 0.0
      %387 = vmatprep.subr.mxu0 0.0
      %388 = vmatpush1.xpose.msra.mxu0 0.0
      %389 = vmatprep.subr.mxu0 0.0
      %390 = vmatpush1.xpose.msra.mxu0 0.0
      %391 = vmatprep.subr.mxu0 0.0
      %392 = vmatpush1.xpose.msra.mxu0 0.0
      %393 = vmatprep.subr.mxu0 0.0
      %394 = vmatpush1.xpose.msra.mxu0 0.0
      %395 = vmatprep.subr.mxu0 0.0
      %396 = vmatpush1.xpose.msra.mxu0 0.0
      %397 = vmatprep.subr.mxu0 0.0
      %398 = vmatpush1.xpose.msra.mxu0 0.0
      %399 = vmatprep.subr.mxu0 0.0
      %400 = vmatpush1.xpose.msra.mxu0 0.0
      %401 = vmatprep.subr.mxu0 0.0
      %402 = vmatpush1.xpose.msra.mxu0 0.0
      %403 = vmatprep.subr.mxu0 0.0
      %404 = vmatpush1.xpose.msra.mxu0 0.0
      %405 = vmatprep.subr.mxu0 0.0
      %406 = vmatpush1.xpose.msra.mxu0 0.0
      %407 = vmatprep.subr.mxu0 0.0
      %408 = vmatpush1.xpose.msra.mxu0 0.0
      %409 = vmatprep.subr.mxu0 0.0
      %410 = vmatpush1.xpose.msra.mxu0 0.0
      %411 = vmatprep.subr.mxu0 0.0
      %412 = vmatpush1.xpose.msra.mxu0 0.0
      %413 = vmatprep.subr.mxu0 0.0
      %414 = vmatpush1.xpose.msra.mxu0 0.0
      %415 = vmatprep.mubr.f32.mxu0 0.0
      %416 = vmatmul.mubr.f32.gmra.mrb[0].mxu0 %v343
      %v417 = vpop.f32.mrb[0].mxu0
      %v418 = vadd.f32 0.0, %v417
      %v419 = vpop.f32.mrb[0].mxu0
      %420 = vmatprep.mubr.f32.mxu0 0.0
      %421 = vmatmul.mubr.f32.gmra.mrb[0].mxu0 %v345
      %v422 = vpop.f32.mrb[0].mxu0
      %v423 = vadd.f32 0.0, %v422
      %v424 = vpop.f32.mrb[0].mxu0
      %425 = vmatprep.mubr.f32.mxu0 0.0
      %426 = vmatmul.mubr.f32.gmra.mrb[0].mxu0 %v347
      %v427 = vpop.f32.mrb[0].mxu0
      %v428 = vadd.f32 0.0, %v427
      %v429 = vpop.f32.mrb[0].mxu0
      %430 = vmatprep.mubr.f32.mxu0 0.0
      %431 = vmatmul.mubr.f32.gmra.mrb[0].mxu0 %v349
      %v432 = vpop.f32.mrb[0].mxu0
      %v433 = vadd.f32 0.0, %v432
      %v434 = vpop.f32.mrb[0].mxu0
      %435 = vdwg.mxu0
      %vm436 = vcmask 1044480
      %v437 = vrot.slane %v200, 3
      %v438 = vrot.slane %v201, 3
      %v439 = vsel %vm436, %v437, %v438
      %v440 = vrot.slane %v202, 3
      %v441 = vsel %vm436, %v438, %v440
      %v442 = vrot.slane %v203, 3
      %v443 = vsel %vm436, %v440, %v442
      %v444 = vrot.slane %v204, 3
      %v445 = vsel %vm436, %v442, %v444
      %v446 = vsel %vm239, %v439, 0
      %v448 = vsel %vm239, %v441, 0
      %v450 = vsel %vm239, %v443, 0
      %v452 = vsel %vm239, %v445, 0
      %454 = vmatprep.subr.mxu0 0.0
      %455 = vmatpush1.xpose.msra.mxu0 %v446
      %456 = vmatprep.subr.mxu0 0.0
      %457 = vmatpush1.xpose.msra.mxu0 %v448
      %458 = vmatprep.subr.mxu0 0.0
      %459 = vmatpush1.xpose.msra.mxu0 %v450
      %460 = vmatprep.subr.mxu0 0.0
      %461 = vmatpush1.xpose.msra.mxu0 %v452
      %462 = vmatprep.subr.mxu0 0.0
      %463 = vmatpush1.xpose.msra.mxu0 0.0
      %464 = vmatprep.subr.mxu0 0.0
      %465 = vmatpush1.xpose.msra.mxu0 0.0
      %466 = vmatprep.subr.mxu0 0.0
      %467 = vmatpush1.xpose.msra.mxu0 0.0
      %468 = vmatprep.subr.mxu0 0.0
      %469 = vmatpush1.xpose.msra.mxu0 0.0
      %470 = vmatprep.subr.mxu0 0.0
      %471 = vmatpush1.xpose.msra.mxu0 0.0
      %472 = vmatprep.subr.mxu0 0.0
      %473 = vmatpush1.xpose.msra.mxu0 0.0
      %474 = vmatprep.subr.mxu0 0.0
      %475 = vmatpush1.xpose.msra.mxu0 0.0
      %476 = vmatprep.subr.mxu0 0.0
      %477 = vmatpush1.xpose.msra.mxu0 0.0
      %478 = vmatprep.subr.mxu0 0.0
      %479 = vmatpush1.xpose.msra.mxu0 0.0
      %480 = vmatprep.subr.mxu0 0.0
      %481 = vmatpush1.xpose.msra.mxu0 0.0
      %482 = vmatprep.subr.mxu0 0.0
      %483 = vmatpush1.xpose.msra.mxu0 0.0
      %484 = vmatprep.subr.mxu0 0.0
      %485 = vmatpush1.xpose.msra.mxu0 0.0
      %486 = vmatprep.subr.mxu0 0.0
      %487 = vmatpush1.xpose.msra.mxu0 0.0
      %488 = vmatprep.subr.mxu0 0.0
      %489 = vmatpush1.xpose.msra.mxu0 0.0
      %490 = vmatprep.subr.mxu0 0.0
      %491 = vmatpush1.xpose.msra.mxu0 0.0
      %492 = vmatprep.subr.mxu0 0.0
      %493 = vmatpush1.xpose.msra.mxu0 0.0
      %494 = vmatprep.subr.mxu0 0.0
      %495 = vmatpush1.xpose.msra.mxu0 0.0
      %496 = vmatprep.subr.mxu0 0.0
      %497 = vmatpush1.xpose.msra.mxu0 0.0
      %498 = vmatprep.subr.mxu0 0.0
      %499 = vmatpush1.xpose.msra.mxu0 0.0
      %500 = vmatprep.subr.mxu0 0.0
      %501 = vmatpush1.xpose.msra.mxu0 0.0
      %502 = vmatprep.subr.mxu0 0.0
      %503 = vmatpush1.xpose.msra.mxu0 0.0
      %504 = vmatprep.subr.mxu0 0.0
      %505 = vmatpush1.xpose.msra.mxu0 0.0
      %506 = vmatprep.subr.mxu0 0.0
      %507 = vmatpush1.xpose.msra.mxu0 0.0
      %508 = vmatprep.subr.mxu0 0.0
      %509 = vmatpush1.xpose.msra.mxu0 0.0
      %510 = vmatprep.subr.mxu0 0.0
      %511 = vmatpush1.xpose.msra.mxu0 0.0
      %512 = vmatprep.subr.mxu0 0.0
      %513 = vmatpush1.xpose.msra.mxu0 0.0
      %514 = vmatprep.subr.mxu0 0.0
      %515 = vmatpush1.xpose.msra.mxu0 0.0
      %516 = vmatprep.subr.mxu0 0.0
      %517 = vmatpush1.xpose.msra.mxu0 0.0
      %518 = vmatprep.mubr.f32.mxu0 0.0
      %519 = vmatmul.mubr.f32.gmra.mrb[0].mxu0 %v446
      %v520 = vpop.f32.mrb[0].mxu0
      %v521 = vadd.f32 0.0, %v520
      %v522 = vpop.f32.mrb[0].mxu0
      %523 = vmatprep.mubr.f32.mxu0 0.0
      %524 = vmatmul.mubr.f32.gmra.mrb[0].mxu0 %v448
      %v525 = vpop.f32.mrb[0].mxu0
      %v526 = vadd.f32 0.0, %v525
      %v527 = vpop.f32.mrb[0].mxu0
      %528 = vmatprep.mubr.f32.mxu0 0.0
      %529 = vmatmul.mubr.f32.gmra.mrb[0].mxu0 %v450
      %v530 = vpop.f32.mrb[0].mxu0
      %v531 = vadd.f32 0.0, %v530
      %v532 = vpop.f32.mrb[0].mxu0
      %533 = vmatprep.mubr.f32.mxu0 0.0
      %534 = vmatmul.mubr.f32.gmra.mrb[0].mxu0 %v452
      %v535 = vpop.f32.mrb[0].mxu0
      %v536 = vadd.f32 0.0, %v535
      %v537 = vpop.f32.mrb[0].mxu0
      %538 = vdwg.mxu0
      %vm539 = vcmask 1043456
      %v540 = vrot.slane %v200, 4
      %v541 = vrot.slane %v201, 4
      %v542 = vsel %vm539, %v540, %v541
      %v543 = vrot.slane %v202, 4
      %v544 = vsel %vm539, %v541, %v543
      %v545 = vrot.slane %v203, 4
      %v546 = vsel %vm539, %v543, %v545
      %v547 = vrot.slane %v204, 4
      %v548 = vsel %vm539, %v545, %v547
      %v549 = vsel %vm239, %v542, 0
      %v551 = vsel %vm239, %v544, 0
      %v553 = vsel %vm239, %v546, 0
      %v555 = vsel %vm239, %v548, 0
      %557 = vmatprep.subr.mxu0 0.0
      %558 = vmatpush1.xpose.msra.mxu0 %v549
      %559 = vmatprep.subr.mxu0 0.0
      %560 = vmatpush1.xpose.msra.mxu0 %v551
      %561 = vmatprep.subr.mxu0 0.0
      %562 = vmatpush1.xpose.msra.mxu0 %v553
      %563 = vmatprep.subr.mxu0 0.0
      %564 = vmatpush1.xpose.msra.mxu0 %v555
      %565 = vmatprep.subr.mxu0 0.0
      %566 = vmatpush1.xpose.msra.mxu0 0.0
      %567 = vmatprep.subr.mxu0 0.0
      %568 = vmatpush1.xpose.msra.mxu0 0.0
      %569 = vmatprep.subr.mxu0 0.0
      %570 = vmatpush1.xpose.msra.mxu0 0.0
      %571 = vmatprep.subr.mxu0 0.0
      %572 = vmatpush1.xpose.msra.mxu0 0.0
      %573 = vmatprep.subr.mxu0 0.0
      %574 = vmatpush1.xpose.msra.mxu0 0.0
      %575 = vmatprep.subr.mxu0 0.0
      %576 = vmatpush1.xpose.msra.mxu0 0.0
      %577 = vmatprep.subr.mxu0 0.0
      %578 = vmatpush1.xpose.msra.mxu0 0.0
      %579 = vmatprep.subr.mxu0 0.0
      %580 = vmatpush1.xpose.msra.mxu0 0.0
      %581 = vmatprep.subr.mxu0 0.0
      %582 = vmatpush1.xpose.msra.mxu0 0.0
      %583 = vmatprep.subr.mxu0 0.0
      %584 = vmatpush1.xpose.msra.mxu0 0.0
      %585 = vmatprep.subr.mxu0 0.0
      %586 = vmatpush1.xpose.msra.mxu0 0.0
      %587 = vmatprep.subr.mxu0 0.0
      %588 = vmatpush1.xpose.msra.mxu0 0.0
      %589 = vmatprep.subr.mxu0 0.0
      %590 = vmatpush1.xpose.msra.mxu0 0.0
      %591 = vmatprep.subr.mxu0 0.0
      %592 = vmatpush1.xpose.msra.mxu0 0.0
      %593 = vmatprep.subr.mxu0 0.0
      %594 = vmatpush1.xpose.msra.mxu0 0.0
      %595 = vmatprep.subr.mxu0 0.0
      %596 = vmatpush1.xpose.msra.mxu0 0.0
      %597 = vmatprep.subr.mxu0 0.0
      %598 = vmatpush1.xpose.msra.mxu0 0.0
      %599 = vmatprep.subr.mxu0 0.0
      %600 = vmatpush1.xpose.msra.mxu0 0.0
      %601 = vmatprep.subr.mxu0 0.0
      %602 = vmatpush1.xpose.msra.mxu0 0.0
      %603 = vmatprep.subr.mxu0 0.0
      %604 = vmatpush1.xpose.msra.mxu0 0.0
      %605 = vmatprep.subr.mxu0 0.0
      %606 = vmatpush1.xpose.msra.mxu0 0.0
      %607 = vmatprep.subr.mxu0 0.0
      %608 = vmatpush1.xpose.msra.mxu0 0.0
      %609 = vmatprep.subr.mxu0 0.0
      %610 = vmatpush1.xpose.msra.mxu0 0.0
      %611 = vmatprep.subr.mxu0 0.0
      %612 = vmatpush1.xpose.msra.mxu0 0.0
      %613 = vmatprep.subr.mxu0 0.0
      %614 = vmatpush1.xpose.msra.mxu0 0.0
      %615 = vmatprep.subr.mxu0 0.0
      %616 = vmatpush1.xpose.msra.mxu0 0.0
      %617 = vmatprep.subr.mxu0 0.0
      %618 = vmatpush1.xpose.msra.mxu0 0.0
      %619 = vmatprep.subr.mxu0 0.0
      %620 = vmatpush1.xpose.msra.mxu0 0.0
      %621 = vmatprep.mubr.f32.mxu0 0.0
      %622 = vmatmul.mubr.f32.gmra.mrb[0].mxu0 %v549
      %v623 = vpop.f32.mrb[0].mxu0
      %v624 = vadd.f32 0.0, %v623
      %v625 = vpop.f32.mrb[0].mxu0
      %626 = vmatprep.mubr.f32.mxu0 0.0
      %627 = vmatmul.mubr.f32.gmra.mrb[0].mxu0 %v551
      %v628 = vpop.f32.mrb[0].mxu0
      %v629 = vadd.f32 0.0, %v628
      %v630 = vpop.f32.mrb[0].mxu0
      %631 = vmatprep.mubr.f32.mxu0 0.0
      %632 = vmatmul.mubr.f32.gmra.mrb[0].mxu0 %v553
      %v633 = vpop.f32.mrb[0].mxu0
      %v634 = vadd.f32 0.0, %v633
      %v635 = vpop.f32.mrb[0].mxu0
      %636 = vmatprep.mubr.f32.mxu0 0.0
      %637 = vmatmul.mubr.f32.gmra.mrb[0].mxu0 %v555
      %v638 = vpop.f32.mrb[0].mxu0
      %v639 = vadd.f32 0.0, %v638
      %v640 = vpop.f32.mrb[0].mxu0
      %641 = vdwg.mxu0
      %642 = vrot.lane.b32.xlu0 %v232, 32
      %v643 = vpop.permute.xlu0 %642
      %644 = vrot.lane.b32.xlu0 %v234, 32
      %v645 = vpop.permute.xlu0 %644
      %646 = vrot.lane.b32.xlu0 %v236, 32
      %v647 = vpop.permute.xlu0 %646
      %648 = vrot.lane.b32.xlu0 %v238, 32
      %v649 = vpop.permute.xlu0 %648
      %650 = vrot.lane.b32.xlu0 %v237, 32
      %v651 = vpop.permute.xlu0 %650
      %657 = vrot.lane.b32.xlu0 %v336, 64
      %v658 = vpop.permute.xlu0 %657
      %659 = vrot.lane.b32.xlu0 %v338, 64
      %v660 = vpop.permute.xlu0 %659
      %661 = vrot.lane.b32.xlu0 %v340, 64
      %v662 = vpop.permute.xlu0 %661
      %663 = vrot.lane.b32.xlu0 %v342, 64
      %v664 = vpop.permute.xlu0 %663
      %665 = vrot.lane.b32.xlu0 %v341, 64
      %v666 = vpop.permute.xlu0 %665
      %672 = vrot.lane.b32.xlu0 %v439, 96
      %v673 = vpop.permute.xlu0 %672
      %674 = vrot.lane.b32.xlu0 %v441, 96
      %v675 = vpop.permute.xlu0 %674
      %676 = vrot.lane.b32.xlu0 %v443, 96
      %v677 = vpop.permute.xlu0 %676
      %678 = vrot.lane.b32.xlu0 %v445, 96
      %v679 = vpop.permute.xlu0 %678
      %680 = vrot.lane.b32.xlu0 %v444, 96
      %v681 = vpop.permute.xlu0 %680
      %v687 = vsel %vm239, %v200, %v643
      %v688 = vsel %vm239, %v201, %v645
      %v689 = vsel %vm239, %v202, %v647
      %v690 = vsel %vm239, %v203, %v649
      %v691 = vsel %vm239, %v204, %v651
      %vm692 = vcmask 523264
      %v693 = vsel %vm692, %v687, %v658
      %v694 = vsel %vm692, %v688, %v660
      %v695 = vsel %vm692, %v689, %v662
      %v696 = vsel %vm692, %v690, %v664
      %v697 = vsel %vm692, %v691, %v666
      %vm698 = vcmask 785408
      %v699 = vsel %vm698, %v693, %v673
      %v700 = vsel %vm698, %v694, %v675
      %v701 = vsel %vm698, %v695, %v677
      %v702 = vsel %vm698, %v696, %v679
      %v703 = vsel %vm698, %v697, %v681
      %708 = vrot.lane.b32.xlu0 %v418, 32
      %v709 = vpop.permute.xlu0 %708
      %710 = vrot.lane.b32.xlu0 %v423, 32
      %v711 = vpop.permute.xlu0 %710
      %712 = vrot.lane.b32.xlu0 %v428, 32
      %v713 = vpop.permute.xlu0 %712
      %714 = vrot.lane.b32.xlu0 %v433, 32
      %v715 = vpop.permute.xlu0 %714
      %724 = vrot.lane.b32.xlu0 %v521, 64
      %v725 = vpop.permute.xlu0 %724
      %726 = vrot.lane.b32.xlu0 %v526, 64
      %v727 = vpop.permute.xlu0 %726
      %728 = vrot.lane.b32.xlu0 %v531, 64
      %v729 = vpop.permute.xlu0 %728
      %730 = vrot.lane.b32.xlu0 %v536, 64
      %v731 = vpop.permute.xlu0 %730
      %740 = vrot.lane.b32.xlu0 %v624, 96
      %v741 = vpop.permute.xlu0 %740
      %742 = vrot.lane.b32.xlu0 %v629, 96
      %v743 = vpop.permute.xlu0 %742
      %744 = vrot.lane.b32.xlu0 %v634, 96
      %v745 = vpop.permute.xlu0 %744
      %746 = vrot.lane.b32.xlu0 %v639, 96
      %v747 = vpop.permute.xlu0 %746
      %v752 = vsel %vm239, %v315, %v709
      %v753 = vsel %vm239, %v320, %v711
      %v754 = vsel %vm239, %v325, %v713
      %v755 = vsel %vm239, %v330, %v715
      %v756 = vsel %vm692, %v752, %v725
      %v757 = vsel %vm692, %v753, %v727
      %v758 = vsel %vm692, %v754, %v729
      %v759 = vsel %vm692, %v755, %v731
      %v760 = vsel %vm698, %v756, %v741
      %v761 = vsel %vm698, %v757, %v743
      %v762 = vsel %vm698, %v758, %v745
      %v763 = vsel %vm698, %v759, %v747
      %v764 = vmul.f32 %v760, %v760
      %v765 = vmul.f32 %v761, %v761
      %v766 = vmul.f32 %v762, %v762
      %v767 = vmul.f32 %v763, %v763
      %v768 = vmul.f32 %v764, %v764
      %v769 = vmul.f32 %v765, %v765
      %v770 = vmul.f32 %v766, %v766
      %v771 = vmul.f32 %v767, %v767
      %v772 = vmul.f32 %v768, %v768
      %v773 = vmul.f32 %v769, %v769
      %v774 = vmul.f32 %v770, %v770
      %v775 = vmul.f32 %v771, %v771
      %v776 = vmul.f32 %v772, %v772
      %v777 = vmul.f32 %v773, %v773
      %v778 = vmul.f32 %v774, %v774
      %v779 = vmul.f32 %v775, %v775
      %v780 = vmul.f32 %v776, %v776
      %v781 = vmul.f32 %v777, %v777
      %v782 = vmul.f32 %v778, %v778
      %v783 = vmul.f32 %v779, %v779
      %v784 = vrcp.pop %v780
      %v785 = vrcp.pop %v781
      %v786 = vrcp.pop %v782
      %v787 = vrcp.pop %v783
      %788 = vmatprep.subr.mxu0 0.0
      %789 = vmatpush1.msra.mxu0 %v208
      %790 = vmatprep.subr.mxu0 0.0
      %791 = vmatpush1.msra.mxu0 %v209
      %792 = vmatprep.subr.mxu0 0.0
      %793 = vmatpush1.msra.mxu0 %v210
      %794 = vmatprep.subr.mxu0 0.0
      %795 = vmatpush1.msra.mxu0 %v211
      %796 = vmatprep.subr.mxu0 0.0
      %797 = vmatpush1.msra.mxu0 %v212
      %798 = vmatprep.subr.mxu0 0.0
      %799 = vmatpush1.msra.mxu0 %v213
      %800 = vmatprep.subr.mxu0 0.0
      %801 = vmatpush1.msra.mxu0 %v214
      %802 = vmatprep.subr.mxu0 0.0
      %803 = vmatpush1.msra.mxu0 %v215
      %804 = vmatprep.subr.mxu0 0.0
      %805 = vmatpush1.msra.mxu0 %v216
      %806 = vmatprep.subr.mxu0 0.0
      %807 = vmatpush1.msra.mxu0 %v217
      %808 = vmatprep.subr.mxu0 0.0
      %809 = vmatpush1.msra.mxu0 %v218
      %810 = vmatprep.subr.mxu0 0.0
      %811 = vmatpush1.msra.mxu0 %v219
      %812 = vmatprep.subr.mxu0 0.0
      %813 = vmatpush1.msra.mxu0 %v220
      %814 = vmatprep.subr.mxu0 0.0
      %815 = vmatpush1.msra.mxu0 %v221
      %816 = vmatprep.subr.mxu0 0.0
      %817 = vmatpush1.msra.mxu0 %v222
      %818 = vmatprep.subr.mxu0 0.0
      %819 = vmatpush1.msra.mxu0 %v223
      %820 = vmatprep.subr.mxu0 0.0
      %821 = vmatpush1.msra.mxu0 0.0
      %822 = vmatprep.subr.mxu0 0.0
      %823 = vmatpush1.msra.mxu0 0.0
      %824 = vmatprep.subr.mxu0 0.0
      %825 = vmatpush1.msra.mxu0 0.0
      %826 = vmatprep.subr.mxu0 0.0
      %827 = vmatpush1.msra.mxu0 0.0
      %828 = vmatprep.subr.mxu0 0.0
      %829 = vmatpush1.msra.mxu0 0.0
      %830 = vmatprep.subr.mxu0 0.0
      %831 = vmatpush1.msra.mxu0 0.0
      %832 = vmatprep.subr.mxu0 0.0
      %833 = vmatpush1.msra.mxu0 0.0
      %834 = vmatprep.subr.mxu0 0.0
      %835 = vmatpush1.msra.mxu0 0.0
      %836 = vmatprep.subr.mxu0 0.0
      %837 = vmatpush1.msra.mxu0 0.0
      %838 = vmatprep.subr.mxu0 0.0
      %839 = vmatpush1.msra.mxu0 0.0
      %840 = vmatprep.subr.mxu0 0.0
      %841 = vmatpush1.msra.mxu0 0.0
      %842 = vmatprep.subr.mxu0 0.0
      %843 = vmatpush1.msra.mxu0 0.0
      %844 = vmatprep.subr.mxu0 0.0
      %845 = vmatpush1.msra.mxu0 0.0
      %846 = vmatprep.subr.mxu0 0.0
      %847 = vmatpush1.msra.mxu0 0.0
      %848 = vmatprep.subr.mxu0 0.0
      %849 = vmatpush1.msra.mxu0 0.0
      %850 = vmatprep.subr.mxu0 0.0
      %851 = vmatpush1.msra.mxu0 0.0
      %852 = vmatprep.mubr.f32.mxu0 0.0
      %853 = vmatmul.mubr.f32.gmra.mrb[0].mxu0 %v784
      %v854 = vpop.f32.mrb[0].mxu0
      %v855 = vadd.f32 0.0, %v854
      %v856 = vpop.f32.mrb[0].mxu0
      %857 = vmatprep.mubr.f32.mxu0 0.0
      %858 = vmatmul.mubr.f32.gmra.mrb[0].mxu0 %v785
      %v859 = vpop.f32.mrb[0].mxu0
      %v860 = vadd.f32 0.0, %v859
      %v861 = vpop.f32.mrb[0].mxu0
      %862 = vmatprep.mubr.f32.mxu0 0.0
      %863 = vmatmul.mubr.f32.gmra.mrb[0].mxu0 %v786
      %v864 = vpop.f32.mrb[0].mxu0
      %v865 = vadd.f32 0.0, %v864
      %v866 = vpop.f32.mrb[0].mxu0
      %867 = vmatprep.mubr.f32.mxu0 0.0
      %868 = vmatmul.mubr.f32.gmra.mrb[0].mxu0 %v787
      %v869 = vpop.f32.mrb[0].mxu0
      %v870 = vadd.f32 0.0, %v869
      %v871 = vpop.f32.mrb[0].mxu0
      %872 = vdwg.mxu0
      %v873 = vrcp.pop %v855
      %v874 = vrcp.pop %v860
      %v875 = vrcp.pop %v865
      %v876 = vrcp.pop %v870
      %v877 = vmul.f32 %v784, %v873
      %v878 = vmul.f32 %v785, %v874
      %v879 = vmul.f32 %v786, %v875
      %v880 = vmul.f32 %v787, %v876
      %v886 = vrot.slane %v699, 1
      %v887 = vrot.slane %v700, 1
      %v888 = vsel %vm229, %v886, %v887
      %v889 = vrot.slane %v701, 1
      %v890 = vsel %vm229, %v887, %v889
      %v891 = vrot.slane %v702, 1
      %v892 = vsel %vm229, %v889, %v891
      %v893 = vrot.slane %v703, 1
      %v894 = vsel %vm229, %v891, %v893
      %v899 = vmul.f32 %v877, %v888
      %v900 = vmul.f32 %v878, %v890
      %v901 = vmul.f32 %v879, %v892
      %v902 = vmul.f32 %v880, %v894
      %v903 = vadd.f32 %v899, %v900
      %v904 = vadd.f32 %v903, %v901
      %v905 = vadd.f32 %v904, %v902
      %v906 = vrot.slane %v905, 4
      %v907 = vadd.f32 %v905, %v906
      %v908 = vrot.slane %v907, 2
      %v909 = vadd.f32 %v907, %v908
      %v910 = vrot.slane %v909, 1
      %v911 = vadd.f32 %v909, %v910
      %vm912 = vcmask 1042432
      %v913 = vrot.slane %v200, 5
      %v914 = vrot.slane %v201, 5
      %v915 = vsel %vm912, %v913, %v914
      %v916 = vrot.slane %v202, 5
      %v917 = vsel %vm912, %v914, %v916
      %v918 = vrot.slane %v203, 5
      %v919 = vsel %vm912, %v916, %v918
      %v920 = vrot.slane %v204, 5
      %v921 = vsel %vm912, %v918, %v920
      %v922 = vsel %vm239, %v915, 0
      %v924 = vsel %vm239, %v917, 0
      %v926 = vsel %vm239, %v919, 0
      %v928 = vsel %vm239, %v921, 0
      %930 = vmatprep.subr.mxu0 0.0
      %931 = vmatpush1.xpose.msra.mxu0 %v922
      %932 = vmatprep.subr.mxu0 0.0
      %933 = vmatpush1.xpose.msra.mxu0 %v924
      %934 = vmatprep.subr.mxu0 0.0
      %935 = vmatpush1.xpose.msra.mxu0 %v926
      %936 = vmatprep.subr.mxu0 0.0
      %937 = vmatpush1.xpose.msra.mxu0 %v928
      %938 = vmatprep.subr.mxu0 0.0
      %939 = vmatpush1.xpose.msra.mxu0 0.0
      %940 = vmatprep.subr.mxu0 0.0
      %941 = vmatpush1.xpose.msra.mxu0 0.0
      %942 = vmatprep.subr.mxu0 0.0
      %943 = vmatpush1.xpose.msra.mxu0 0.0
      %944 = vmatprep.subr.mxu0 0.0
      %945 = vmatpush1.xpose.msra.mxu0 0.0
      %946 = vmatprep.subr.mxu0 0.0
      %947 = vmatpush1.xpose.msra.mxu0 0.0
      %948 = vmatprep.subr.mxu0 0.0
      %949 = vmatpush1.xpose.msra.mxu0 0.0
      %950 = vmatprep.subr.mxu0 0.0
      %951 = vmatpush1.xpose.msra.mxu0 0.0
      %952 = vmatprep.subr.mxu0 0.0
      %953 = vmatpush1.xpose.msra.mxu0 0.0
      %954 = vmatprep.subr.mxu0 0.0
      %955 = vmatpush1.xpose.msra.mxu0 0.0
      %956 = vmatprep.subr.mxu0 0.0
      %957 = vmatpush1.xpose.msra.mxu0 0.0
      %958 = vmatprep.subr.mxu0 0.0
      %959 = vmatpush1.xpose.msra.mxu0 0.0
      %960 = vmatprep.subr.mxu0 0.0
      %961 = vmatpush1.xpose.msra.mxu0 0.0
      %962 = vmatprep.subr.mxu0 0.0
      %963 = vmatpush1.xpose.msra.mxu0 0.0
      %964 = vmatprep.subr.mxu0 0.0
      %965 = vmatpush1.xpose.msra.mxu0 0.0
      %966 = vmatprep.subr.mxu0 0.0
      %967 = vmatpush1.xpose.msra.mxu0 0.0
      %968 = vmatprep.subr.mxu0 0.0
      %969 = vmatpush1.xpose.msra.mxu0 0.0
      %970 = vmatprep.subr.mxu0 0.0
      %971 = vmatpush1.xpose.msra.mxu0 0.0
      %972 = vmatprep.subr.mxu0 0.0
      %973 = vmatpush1.xpose.msra.mxu0 0.0
      %974 = vmatprep.subr.mxu0 0.0
      %975 = vmatpush1.xpose.msra.mxu0 0.0
      %976 = vmatprep.subr.mxu0 0.0
      %977 = vmatpush1.xpose.msra.mxu0 0.0
      %978 = vmatprep.subr.mxu0 0.0
      %979 = vmatpush1.xpose.msra.mxu0 0.0
      %980 = vmatprep.subr.mxu0 0.0
      %981 = vmatpush1.xpose.msra.mxu0 0.0
      %982 = vmatprep.subr.mxu0 0.0
      %983 = vmatpush1.xpose.msra.mxu0 0.0
      %984 = vmatprep.subr.mxu0 0.0
      %985 = vmatpush1.xpose.msra.mxu0 0.0
      %986 = vmatprep.subr.mxu0 0.0
      %987 = vmatpush1.xpose.msra.mxu0 0.0
      %988 = vmatprep.subr.mxu0 0.0
      %989 = vmatpush1.xpose.msra.mxu0 0.0
      %990 = vmatprep.subr.mxu0 0.0
      %991 = vmatpush1.xpose.msra.mxu0 0.0
      %992 = vmatprep.subr.mxu0 0.0
      %993 = vmatpush1.xpose.msra.mxu0 0.0
      %994 = vmatprep.mubr.f32.mxu0 0.0
      %995 = vmatmul.mubr.f32.gmra.mrb[0].mxu0 %v922
      %v996 = vpop.f32.mrb[0].mxu0
      %v997 = vadd.f32 0.0, %v996
      %v998 = vpop.f32.mrb[0].mxu0
      %999 = vmatprep.mubr.f32.mxu0 0.0
      %1000 = vmatmul.mubr.f32.gmra.mrb[0].mxu0 %v924
      %v1001 = vpop.f32.mrb[0].mxu0
      %v1002 = vadd.f32 0.0, %v1001
      %v1003 = vpop.f32.mrb[0].mxu0
      %1004 = vmatprep.mubr.f32.mxu0 0.0
      %1005 = vmatmul.mubr.f32.gmra.mrb[0].mxu0 %v926
      %v1006 = vpop.f32.mrb[0].mxu0
      %v1007 = vadd.f32 0.0, %v1006
      %v1008 = vpop.f32.mrb[0].mxu0
      %1009 = vmatprep.mubr.f32.mxu0 0.0
      %1010 = vmatmul.mubr.f32.gmra.mrb[0].mxu0 %v928
      %v1011 = vpop.f32.mrb[0].mxu0
      %v1012 = vadd.f32 0.0, %v1011
      %v1013 = vpop.f32.mrb[0].mxu0
      %1014 = vdwg.mxu0
      %vm1015 = vcmask 1041408
      %v1016 = vrot.slane %v200, 6
      %v1017 = vrot.slane %v201, 6
      %v1018 = vsel %vm1015, %v1016, %v1017
      %v1019 = vrot.slane %v202, 6
      %v1020 = vsel %vm1015, %v1017, %v1019
      %v1021 = vrot.slane %v203, 6
      %v1022 = vsel %vm1015, %v1019, %v1021
      %v1023 = vrot.slane %v204, 6
      %v1024 = vsel %vm1015, %v1021, %v1023
      %v1025 = vsel %vm239, %v1018, 0
      %v1027 = vsel %vm239, %v1020, 0
      %v1029 = vsel %vm239, %v1022, 0
      %v1031 = vsel %vm239, %v1024, 0
      %1033 = vmatprep.subr.mxu0 0.0
      %1034 = vmatpush1.xpose.msra.mxu0 %v1025
      %1035 = vmatprep.subr.mxu0 0.0
      %1036 = vmatpush1.xpose.msra.mxu0 %v1027
      %1037 = vmatprep.subr.mxu0 0.0
      %1038 = vmatpush1.xpose.msra.mxu0 %v1029
      %1039 = vmatprep.subr.mxu0 0.0
      %1040 = vmatpush1.xpose.msra.mxu0 %v1031
      %1041 = vmatprep.subr.mxu0 0.0
      %1042 = vmatpush1.xpose.msra.mxu0 0.0
      %1043 = vmatprep.subr.mxu0 0.0
      %1044 = vmatpush1.xpose.msra.mxu0 0.0
      %1045 = vmatprep.subr.mxu0 0.0
      %1046 = vmatpush1.xpose.msra.mxu0 0.0
      %1047 = vmatprep.subr.mxu0 0.0
      %1048 = vmatpush1.xpose.msra.mxu0 0.0
      %1049 = vmatprep.subr.mxu0 0.0
      %1050 = vmatpush1.xpose.msra.mxu0 0.0
      %1051 = vmatprep.subr.mxu0 0.0
      %1052 = vmatpush1.xpose.msra.mxu0 0.0
      %1053 = vmatprep.subr.mxu0 0.0
      %1054 = vmatpush1.xpose.msra.mxu0 0.0
      %1055 = vmatprep.subr.mxu0 0.0
      %1056 = vmatpush1.xpose.msra.mxu0 0.0
      %1057 = vmatprep.subr.mxu0 0.0
      %1058 = vmatpush1.xpose.msra.mxu0 0.0
      %1059 = vmatprep.subr.mxu0 0.0
      %1060 = vmatpush1.xpose.msra.mxu0 0.0
      %1061 = vmatprep.subr.mxu0 0.0
      %1062 = vmatpush1.xpose.msra.mxu0 0.0
      %1063 = vmatprep.subr.mxu0 0.0
      %1064 = vmatpush1.xpose.msra.mxu0 0.0
      %1065 = vmatprep.subr.mxu0 0.0
      %1066 = vmatpush1.xpose.msra.mxu0 0.0
      %1067 = vmatprep.subr.mxu0 0.0
      %1068 = vmatpush1.xpose.msra.mxu0 0.0
      %1069 = vmatprep.subr.mxu0 0.0
      %1070 = vmatpush1.xpose.msra.mxu0 0.0
      %1071 = vmatprep.subr.mxu0 0.0
      %1072 = vmatpush1.xpose.msra.mxu0 0.0
      %1073 = vmatprep.subr.mxu0 0.0
      %1074 = vmatpush1.xpose.msra.mxu0 0.0
      %1075 = vmatprep.subr.mxu0 0.0
      %1076 = vmatpush1.xpose.msra.mxu0 0.0
      %1077 = vmatprep.subr.mxu0 0.0
      %1078 = vmatpush1.xpose.msra.mxu0 0.0
      %1079 = vmatprep.subr.mxu0 0.0
      %1080 = vmatpush1.xpose.msra.mxu0 0.0
      %1081 = vmatprep.subr.mxu0 0.0
      %1082 = vmatpush1.xpose.msra.mxu0 0.0
      %1083 = vmatprep.subr.mxu0 0.0
      %1084 = vmatpush1.xpose.msra.mxu0 0.0
      %1085 = vmatprep.subr.mxu0 0.0
      %1086 = vmatpush1.xpose.msra.mxu0 0.0
      %1087 = vmatprep.subr.mxu0 0.0
      %1088 = vmatpush1.xpose.msra.mxu0 0.0
      %1089 = vmatprep.subr.mxu0 0.0
      %1090 = vmatpush1.xpose.msra.mxu0 0.0
      %1091 = vmatprep.subr.mxu0 0.0
      %1092 = vmatpush1.xpose.msra.mxu0 0.0
      %1093 = vmatprep.subr.mxu0 0.0
      %1094 = vmatpush1.xpose.msra.mxu0 0.0
      %1095 = vmatprep.subr.mxu0 0.0
      %1096 = vmatpush1.xpose.msra.mxu0 0.0
      %1097 = vmatprep.mubr.f32.mxu0 0.0
      %1098 = vmatmul.mubr.f32.gmra.mrb[0].mxu0 %v1025
      %v1099 = vpop.f32.mrb[0].mxu0
      %v1100 = vadd.f32 0.0, %v1099
      %v1101 = vpop.f32.mrb[0].mxu0
      %1102 = vmatprep.mubr.f32.mxu0 0.0
      %1103 = vmatmul.mubr.f32.gmra.mrb[0].mxu0 %v1027
      %v1104 = vpop.f32.mrb[0].mxu0
      %v1105 = vadd.f32 0.0, %v1104
      %v1106 = vpop.f32.mrb[0].mxu0
      %1107 = vmatprep.mubr.f32.mxu0 0.0
      %1108 = vmatmul.mubr.f32.gmra.mrb[0].mxu0 %v1029
      %v1109 = vpop.f32.mrb[0].mxu0
      %v1110 = vadd.f32 0.0, %v1109
      %v1111 = vpop.f32.mrb[0].mxu0
      %1112 = vmatprep.mubr.f32.mxu0 0.0
      %1113 = vmatmul.mubr.f32.gmra.mrb[0].mxu0 %v1031
      %v1114 = vpop.f32.mrb[0].mxu0
      %v1115 = vadd.f32 0.0, %v1114
      %v1116 = vpop.f32.mrb[0].mxu0
      %1117 = vdwg.mxu0
      %vm1118 = vcmask 1040384
      %v1119 = vrot.slane %v200, 7
      %v1120 = vrot.slane %v201, 7
      %v1121 = vsel %vm1118, %v1119, %v1120
      %v1122 = vrot.slane %v202, 7
      %v1123 = vsel %vm1118, %v1120, %v1122
      %v1124 = vrot.slane %v203, 7
      %v1125 = vsel %vm1118, %v1122, %v1124
      %v1126 = vrot.slane %v204, 7
      %v1127 = vsel %vm1118, %v1124, %v1126
      %v1128 = vsel %vm239, %v1121, 0
      %v1130 = vsel %vm239, %v1123, 0
      %v1132 = vsel %vm239, %v1125, 0
      %v1134 = vsel %vm239, %v1127, 0
      %1136 = vmatprep.subr.mxu0 0.0
      %1137 = vmatpush1.xpose.msra.mxu0 %v1128
      %1138 = vmatprep.subr.mxu0 0.0
      %1139 = vmatpush1.xpose.msra.mxu0 %v1130
      %1140 = vmatprep.subr.mxu0 0.0
      %1141 = vmatpush1.xpose.msra.mxu0 %v1132
      %1142 = vmatprep.subr.mxu0 0.0
      %1143 = vmatpush1.xpose.msra.mxu0 %v1134
      %1144 = vmatprep.subr.mxu0 0.0
      %1145 = vmatpush1.xpose.msra.mxu0 0.0
      %1146 = vmatprep.subr.mxu0 0.0
      %1147 = vmatpush1.xpose.msra.mxu0 0.0
      %1148 = vmatprep.subr.mxu0 0.0
      %1149 = vmatpush1.xpose.msra.mxu0 0.0
      %1150 = vmatprep.subr.mxu0 0.0
      %1151 = vmatpush1.xpose.msra.mxu0 0.0
      %1152 = vmatprep.subr.mxu0 0.0
      %1153 = vmatpush1.xpose.msra.mxu0 0.0
      %1154 = vmatprep.subr.mxu0 0.0
      %1155 = vmatpush1.xpose.msra.mxu0 0.0
      %1156 = vmatprep.subr.mxu0 0.0
      %1157 = vmatpush1.xpose.msra.mxu0 0.0
      %1158 = vmatprep.subr.mxu0 0.0
      %1159 = vmatpush1.xpose.msra.mxu0 0.0
      %1160 = vmatprep.subr.mxu0 0.0
      %1161 = vmatpush1.xpose.msra.mxu0 0.0
      %1162 = vmatprep.subr.mxu0 0.0
      %1163 = vmatpush1.xpose.msra.mxu0 0.0
      %1164 = vmatprep.subr.mxu0 0.0
      %1165 = vmatpush1.xpose.msra.mxu0 0.0
      %1166 = vmatprep.subr.mxu0 0.0
      %1167 = vmatpush1.xpose.msra.mxu0 0.0
      %1168 = vmatprep.subr.mxu0 0.0
      %1169 = vmatpush1.xpose.msra.mxu0 0.0
      %1170 = vmatprep.subr.mxu0 0.0
      %1171 = vmatpush1.xpose.msra.mxu0 0.0
      %1172 = vmatprep.subr.mxu0 0.0
      %1173 = vmatpush1.xpose.msra.mxu0 0.0
      %1174 = vmatprep.subr.mxu0 0.0
      %1175 = vmatpush1.xpose.msra.mxu0 0.0
      %1176 = vmatprep.subr.mxu0 0.0
      %1177 = vmatpush1.xpose.msra.mxu0 0.0
      %1178 = vmatprep.subr.mxu0 0.0
      %1179 = vmatpush1.xpose.msra.mxu0 0.0
      %1180 = vmatprep.subr.mxu0 0.0
      %1181 = vmatpush1.xpose.msra.mxu0 0.0
      %1182 = vmatprep.subr.mxu0 0.0
      %1183 = vmatpush1.xpose.msra.mxu0 0.0
      %1184 = vmatprep.subr.mxu0 0.0
      %1185 = vmatpush1.xpose.msra.mxu0 0.0
      %1186 = vmatprep.subr.mxu0 0.0
      %1187 = vmatpush1.xpose.msra.mxu0 0.0
      %1188 = vmatprep.subr.mxu0 0.0
      %1189 = vmatpush1.xpose.msra.mxu0 0.0
      %1190 = vmatprep.subr.mxu0 0.0
      %1191 = vmatpush1.xpose.msra.mxu0 0.0
      %1192 = vmatprep.subr.mxu0 0.0
      %1193 = vmatpush1.xpose.msra.mxu0 0.0
      %1194 = vmatprep.subr.mxu0 0.0
      %1195 = vmatpush1.xpose.msra.mxu0 0.0
      %1196 = vmatprep.subr.mxu0 0.0
      %1197 = vmatpush1.xpose.msra.mxu0 0.0
      %1198 = vmatprep.subr.mxu0 0.0
      %1199 = vmatpush1.xpose.msra.mxu0 0.0
      %1200 = vmatprep.mubr.f32.mxu0 0.0
      %1201 = vmatmul.mubr.f32.gmra.mrb[0].mxu0 %v1128
      %v1202 = vpop.f32.mrb[0].mxu0
      %v1203 = vadd.f32 0.0, %v1202
      %v1204 = vpop.f32.mrb[0].mxu0
      %1205 = vmatprep.mubr.f32.mxu0 0.0
      %1206 = vmatmul.mubr.f32.gmra.mrb[0].mxu0 %v1130
      %v1207 = vpop.f32.mrb[0].mxu0
      %v1208 = vadd.f32 0.0, %v1207
      %v1209 = vpop.f32.mrb[0].mxu0
      %1210 = vmatprep.mubr.f32.mxu0 0.0
      %1211 = vmatmul.mubr.f32.gmra.mrb[0].mxu0 %v1132
      %v1212 = vpop.f32.mrb[0].mxu0
      %v1213 = vadd.f32 0.0, %v1212
      %v1214 = vpop.f32.mrb[0].mxu0
      %1215 = vmatprep.mubr.f32.mxu0 0.0
      %1216 = vmatmul.mubr.f32.gmra.mrb[0].mxu0 %v1134
      %v1217 = vpop.f32.mrb[0].mxu0
      %v1218 = vadd.f32 0.0, %v1217
      %v1219 = vpop.f32.mrb[0].mxu0
      %1220 = vdwg.mxu0
      %v1221 = vsel %vm239, %v201, 0
      %v1223 = vsel %vm239, %v202, 0
      %v1225 = vsel %vm239, %v203, 0
      %v1227 = vsel %vm239, %v204, 0
      %1229 = vmatprep.subr.mxu0 0.0
      %1230 = vmatpush1.xpose.msra.mxu0 %v1221
      %1231 = vmatprep.subr.mxu0 0.0
      %1232 = vmatpush1.xpose.msra.mxu0 %v1223
      %1233 = vmatprep.subr.mxu0 0.0
      %1234 = vmatpush1.xpose.msra.mxu0 %v1225
      %1235 = vmatprep.subr.mxu0 0.0
      %1236 = vmatpush1.xpose.msra.mxu0 %v1227
      %1237 = vmatprep.subr.mxu0 0.0
      %1238 = vmatpush1.xpose.msra.mxu0 0.0
      %1239 = vmatprep.subr.mxu0 0.0
      %1240 = vmatpush1.xpose.msra.mxu0 0.0
      %1241 = vmatprep.subr.mxu0 0.0
      %1242 = vmatpush1.xpose.msra.mxu0 0.0
      %1243 = vmatprep.subr.mxu0 0.0
      %1244 = vmatpush1.xpose.msra.mxu0 0.0
      %1245 = vmatprep.subr.mxu0 0.0
      %1246 = vmatpush1.xpose.msra.mxu0 0.0
      %1247 = vmatprep.subr.mxu0 0.0
      %1248 = vmatpush1.xpose.msra.mxu0 0.0
      %1249 = vmatprep.subr.mxu0 0.0
      %1250 = vmatpush1.xpose.msra.mxu0 0.0
      %1251 = vmatprep.subr.mxu0 0.0
      %1252 = vmatpush1.xpose.msra.mxu0 0.0
      %1253 = vmatprep.subr.mxu0 0.0
      %1254 = vmatpush1.xpose.msra.mxu0 0.0
      %1255 = vmatprep.subr.mxu0 0.0
      %1256 = vmatpush1.xpose.msra.mxu0 0.0
      %1257 = vmatprep.subr.mxu0 0.0
      %1258 = vmatpush1.xpose.msra.mxu0 0.0
      %1259 = vmatprep.subr.mxu0 0.0
      %1260 = vmatpush1.xpose.msra.mxu0 0.0
      %1261 = vmatprep.subr.mxu0 0.0
      %1262 = vmatpush1.xpose.msra.mxu0 0.0
      %1263 = vmatprep.subr.mxu0 0.0
      %1264 = vmatpush1.xpose.msra.mxu0 0.0
      %1265 = vmatprep.subr.mxu0 0.0
      %1266 = vmatpush1.xpose.msra.mxu0 0.0
      %1267 = vmatprep.subr.mxu0 0.0
      %1268 = vmatpush1.xpose.msra.mxu0 0.0
      %1269 = vmatprep.subr.mxu0 0.0
      %1270 = vmatpush1.xpose.msra.mxu0 0.0
      %1271 = vmatprep.subr.mxu0 0.0
      %1272 = vmatpush1.xpose.msra.mxu0 0.0
      %1273 = vmatprep.subr.mxu0 0.0
      %1274 = vmatpush1.xpose.msra.mxu0 0.0
      %1275 = vmatprep.subr.mxu0 0.0
      %1276 = vmatpush1.xpose.msra.mxu0 0.0
      %1277 = vmatprep.subr.mxu0 0.0
      %1278 = vmatpush1.xpose.msra.mxu0 0.0
      %1279 = vmatprep.subr.mxu0 0.0
      %1280 = vmatpush1.xpose.msra.mxu0 0.0
      %1281 = vmatprep.subr.mxu0 0.0
      %1282 = vmatpush1.xpose.msra.mxu0 0.0
      %1283 = vmatprep.subr.mxu0 0.0
      %1284 = vmatpush1.xpose.msra.mxu0 0.0
      %1285 = vmatprep.subr.mxu0 0.0
      %1286 = vmatpush1.xpose.msra.mxu0 0.0
      %1287 = vmatprep.subr.mxu0 0.0
      %1288 = vmatpush1.xpose.msra.mxu0 0.0
      %1289 = vmatprep.subr.mxu0 0.0
      %1290 = vmatpush1.xpose.msra.mxu0 0.0
      %1291 = vmatprep.subr.mxu0 0.0
      %1292 = vmatpush1.xpose.msra.mxu0 0.0
      %1293 = vmatprep.mubr.f32.mxu0 0.0
      %1294 = vmatmul.mubr.f32.gmra.mrb[0].mxu0 %v1221
      %v1295 = vpop.f32.mrb[0].mxu0
      %v1296 = vadd.f32 0.0, %v1295
      %v1297 = vpop.f32.mrb[0].mxu0
      %1298 = vmatprep.mubr.f32.mxu0 0.0
      %1299 = vmatmul.mubr.f32.gmra.mrb[0].mxu0 %v1223
      %v1300 = vpop.f32.mrb[0].mxu0
      %v1301 = vadd.f32 0.0, %v1300
      %v1302 = vpop.f32.mrb[0].mxu0
      %1303 = vmatprep.mubr.f32.mxu0 0.0
      %1304 = vmatmul.mubr.f32.gmra.mrb[0].mxu0 %v1225
      %v1305 = vpop.f32.mrb[0].mxu0
      %v1306 = vadd.f32 0.0, %v1305
      %v1307 = vpop.f32.mrb[0].mxu0
      %1308 = vmatprep.mubr.f32.mxu0 0.0
      %1309 = vmatmul.mubr.f32.gmra.mrb[0].mxu0 %v1227
      %v1310 = vpop.f32.mrb[0].mxu0
      %v1311 = vadd.f32 0.0, %v1310
      %v1312 = vpop.f32.mrb[0].mxu0
      %1313 = vdwg.mxu0
      %1314 = vrot.lane.b32.xlu0 %v438, 96
      %v1315 = vpop.permute.xlu0 %1314
      %v1317 = vsel %vm698, %v693, %v1315
      %1322 = vrot.lane.b32.xlu0 %v1100, 32
      %v1323 = vpop.permute.xlu0 %1322
      %1324 = vrot.lane.b32.xlu0 %v1105, 32
      %v1325 = vpop.permute.xlu0 %1324
      %1326 = vrot.lane.b32.xlu0 %v1110, 32
      %v1327 = vpop.permute.xlu0 %1326
      %1328 = vrot.lane.b32.xlu0 %v1115, 32
      %v1329 = vpop.permute.xlu0 %1328
      %1338 = vrot.lane.b32.xlu0 %v1203, 64
      %v1339 = vpop.permute.xlu0 %1338
      %1340 = vrot.lane.b32.xlu0 %v1208, 64
      %v1341 = vpop.permute.xlu0 %1340
      %1342 = vrot.lane.b32.xlu0 %v1213, 64
      %v1343 = vpop.permute.xlu0 %1342
      %1344 = vrot.lane.b32.xlu0 %v1218, 64
      %v1345 = vpop.permute.xlu0 %1344
      %1354 = vrot.lane.b32.xlu0 %v1296, 96
      %v1355 = vpop.permute.xlu0 %1354
      %1356 = vrot.lane.b32.xlu0 %v1301, 96
      %v1357 = vpop.permute.xlu0 %1356
      %1358 = vrot.lane.b32.xlu0 %v1306, 96
      %v1359 = vpop.permute.xlu0 %1358
      %1360 = vrot.lane.b32.xlu0 %v1311, 96
      %v1361 = vpop.permute.xlu0 %1360
      %v1366 = vsel %vm239, %v997, %v1323
      %v1367 = vsel %vm239, %v1002, %v1325
      %v1368 = vsel %vm239, %v1007, %v1327
      %v1369 = vsel %vm239, %v1012, %v1329
      %v1370 = vsel %vm692, %v1366, %v1339
      %v1371 = vsel %vm692, %v1367, %v1341
      %v1372 = vsel %vm692, %v1368, %v1343
      %v1373 = vsel %vm692, %v1369, %v1345
      %v1374 = vsel %vm698, %v1370, %v1355
      %v1375 = vsel %vm698, %v1371, %v1357
      %v1376 = vsel %vm698, %v1372, %v1359
      %v1377 = vsel %vm698, %v1373, %v1361
      %v1378 = vmul.f32 %v1374, %v1374
      %v1379 = vmul.f32 %v1375, %v1375
      %v1380 = vmul.f32 %v1376, %v1376
      %v1381 = vmul.f32 %v1377, %v1377
      %v1382 = vmul.f32 %v1378, %v1378
      %v1383 = vmul.f32 %v1379, %v1379
      %v1384 = vmul.f32 %v1380, %v1380
      %v1385 = vmul.f32 %v1381, %v1381
      %v1386 = vmul.f32 %v1382, %v1382
      %v1387 = vmul.f32 %v1383, %v1383
      %v1388 = vmul.f32 %v1384, %v1384
      %v1389 = vmul.f32 %v1385, %v1385
      %v1390 = vmul.f32 %v1386, %v1386
      %v1391 = vmul.f32 %v1387, %v1387
      %v1392 = vmul.f32 %v1388, %v1388
      %v1393 = vmul.f32 %v1389, %v1389
      %v1394 = vmul.f32 %v1390, %v1390
      %v1395 = vmul.f32 %v1391, %v1391
      %v1396 = vmul.f32 %v1392, %v1392
      %v1397 = vmul.f32 %v1393, %v1393
      %v1398 = vrcp.pop %v1394
      %v1399 = vrcp.pop %v1395
      %v1400 = vrcp.pop %v1396
      %v1401 = vrcp.pop %v1397
      %1402 = vmatprep.subr.mxu0 0.0
      %1403 = vmatpush1.msra.mxu0 %v208
      %1404 = vmatprep.subr.mxu0 0.0
      %1405 = vmatpush1.msra.mxu0 %v209
      %1406 = vmatprep.subr.mxu0 0.0
      %1407 = vmatpush1.msra.mxu0 %v210
      %1408 = vmatprep.subr.mxu0 0.0
      %1409 = vmatpush1.msra.mxu0 %v211
      %1410 = vmatprep.subr.mxu0 0.0
      %1411 = vmatpush1.msra.mxu0 %v212
      %1412 = vmatprep.subr.mxu0 0.0
      %1413 = vmatpush1.msra.mxu0 %v213
      %1414 = vmatprep.subr.mxu0 0.0
      %1415 = vmatpush1.msra.mxu0 %v214
      %1416 = vmatprep.subr.mxu0 0.0
      %1417 = vmatpush1.msra.mxu0 %v215
      %1418 = vmatprep.subr.mxu0 0.0
      %1419 = vmatpush1.msra.mxu0 %v216
      %1420 = vmatprep.subr.mxu0 0.0
      %1421 = vmatpush1.msra.mxu0 %v217
      %1422 = vmatprep.subr.mxu0 0.0
      %1423 = vmatpush1.msra.mxu0 %v218
      %1424 = vmatprep.subr.mxu0 0.0
      %1425 = vmatpush1.msra.mxu0 %v219
      %1426 = vmatprep.subr.mxu0 0.0
      %1427 = vmatpush1.msra.mxu0 %v220
      %1428 = vmatprep.subr.mxu0 0.0
      %1429 = vmatpush1.msra.mxu0 %v221
      %1430 = vmatprep.subr.mxu0 0.0
      %1431 = vmatpush1.msra.mxu0 %v222
      %1432 = vmatprep.subr.mxu0 0.0
      %1433 = vmatpush1.msra.mxu0 %v223
      %1434 = vmatprep.subr.mxu0 0.0
      %1435 = vmatpush1.msra.mxu0 0.0
      %1436 = vmatprep.subr.mxu0 0.0
      %1437 = vmatpush1.msra.mxu0 0.0
      %1438 = vmatprep.subr.mxu0 0.0
      %1439 = vmatpush1.msra.mxu0 0.0
      %1440 = vmatprep.subr.mxu0 0.0
      %1441 = vmatpush1.msra.mxu0 0.0
      %1442 = vmatprep.subr.mxu0 0.0
      %1443 = vmatpush1.msra.mxu0 0.0
      %1444 = vmatprep.subr.mxu0 0.0
      %1445 = vmatpush1.msra.mxu0 0.0
      %1446 = vmatprep.subr.mxu0 0.0
      %1447 = vmatpush1.msra.mxu0 0.0
      %1448 = vmatprep.subr.mxu0 0.0
      %1449 = vmatpush1.msra.mxu0 0.0
      %1450 = vmatprep.subr.mxu0 0.0
      %1451 = vmatpush1.msra.mxu0 0.0
      %1452 = vmatprep.subr.mxu0 0.0
      %1453 = vmatpush1.msra.mxu0 0.0
      %1454 = vmatprep.subr.mxu0 0.0
      %1455 = vmatpush1.msra.mxu0 0.0
      %1456 = vmatprep.subr.mxu0 0.0
      %1457 = vmatpush1.msra.mxu0 0.0
      %1458 = vmatprep.subr.mxu0 0.0
      %1459 = vmatpush1.msra.mxu0 0.0
      %1460 = vmatprep.subr.mxu0 0.0
      %1461 = vmatpush1.msra.mxu0 0.0
      %1462 = vmatprep.subr.mxu0 0.0
      %1463 = vmatpush1.msra.mxu0 0.0
      %1464 = vmatprep.subr.mxu0 0.0
      %1465 = vmatpush1.msra.mxu0 0.0
      %1466 = vmatprep.mubr.f32.mxu0 0.0
      %1467 = vmatmul.mubr.f32.gmra.mrb[0].mxu0 %v1398
      %v1468 = vpop.f32.mrb[0].mxu0
      %v1469 = vadd.f32 0.0, %v1468
      %v1470 = vpop.f32.mrb[0].mxu0
      %1471 = vmatprep.mubr.f32.mxu0 0.0
      %1472 = vmatmul.mubr.f32.gmra.mrb[0].mxu0 %v1399
      %v1473 = vpop.f32.mrb[0].mxu0
      %v1474 = vadd.f32 0.0, %v1473
      %v1475 = vpop.f32.mrb[0].mxu0
      %1476 = vmatprep.mubr.f32.mxu0 0.0
      %1477 = vmatmul.mubr.f32.gmra.mrb[0].mxu0 %v1400
      %v1478 = vpop.f32.mrb[0].mxu0
      %v1479 = vadd.f32 0.0, %v1478
      %v1480 = vpop.f32.mrb[0].mxu0
      %1481 = vmatprep.mubr.f32.mxu0 0.0
      %1482 = vmatmul.mubr.f32.gmra.mrb[0].mxu0 %v1401
      %v1483 = vpop.f32.mrb[0].mxu0
      %v1484 = vadd.f32 0.0, %v1483
      %v1485 = vpop.f32.mrb[0].mxu0
      %1486 = vdwg.mxu0
      %v1487 = vrcp.pop %v1469
      %v1488 = vrcp.pop %v1474
      %v1489 = vrcp.pop %v1479
      %v1490 = vrcp.pop %v1484
      %v1491 = vmul.f32 %v1398, %v1487
      %v1492 = vmul.f32 %v1399, %v1488
      %v1493 = vmul.f32 %v1400, %v1489
      %v1494 = vmul.f32 %v1401, %v1490
      %v1496 = vrot.slane %v1317, 5
      %v1497 = vrot.slane %v700, 5
      %v1498 = vsel %vm912, %v1496, %v1497
      %v1499 = vrot.slane %v701, 5
      %v1500 = vsel %vm912, %v1497, %v1499
      %v1501 = vrot.slane %v702, 5
      %v1502 = vsel %vm912, %v1499, %v1501
      %v1503 = vrot.slane %v703, 5
      %v1504 = vsel %vm912, %v1501, %v1503
      %v1509 = vmul.f32 %v1491, %v1498
      %v1510 = vmul.f32 %v1492, %v1500
      %v1511 = vmul.f32 %v1493, %v1502
      %v1512 = vmul.f32 %v1494, %v1504
      %v1513 = vadd.f32 %v1509, %v1510
      %v1514 = vadd.f32 %v1513, %v1511
      %v1515 = vadd.f32 %v1514, %v1512
      %v1516 = vrot.slane %v1515, 4
      %v1517 = vadd.f32 %v1515, %v1516
      %v1518 = vrot.slane %v1517, 2
      %v1519 = vadd.f32 %v1517, %v1518
      %v1520 = vrot.slane %v1519, 1
      %v1521 = vadd.f32 %v1519, %v1520
      %v1523 = vrot.slane %v205, 1
      %v1524 = vsel %vm229, %v237, %v1523
      %v1525 = vsel %vm239, %v1524, 0
      %1527 = vmatprep.subr.mxu0 0.0
      %1528 = vmatpush1.xpose.msra.mxu0 %v242
      %1529 = vmatprep.subr.mxu0 0.0
      %1530 = vmatpush1.xpose.msra.mxu0 %v244
      %1531 = vmatprep.subr.mxu0 0.0
      %1532 = vmatpush1.xpose.msra.mxu0 %v246
      %1533 = vmatprep.subr.mxu0 0.0
      %1534 = vmatpush1.xpose.msra.mxu0 %v1525
      %1535 = vmatprep.subr.mxu0 0.0
      %1536 = vmatpush1.xpose.msra.mxu0 0.0
      %1537 = vmatprep.subr.mxu0 0.0
      %1538 = vmatpush1.xpose.msra.mxu0 0.0
      %1539 = vmatprep.subr.mxu0 0.0
      %1540 = vmatpush1.xpose.msra.mxu0 0.0
      %1541 = vmatprep.subr.mxu0 0.0
      %1542 = vmatpush1.xpose.msra.mxu0 0.0
      %1543 = vmatprep.subr.mxu0 0.0
      %1544 = vmatpush1.xpose.msra.mxu0 0.0
      %1545 = vmatprep.subr.mxu0 0.0
      %1546 = vmatpush1.xpose.msra.mxu0 0.0
      %1547 = vmatprep.subr.mxu0 0.0
      %1548 = vmatpush1.xpose.msra.mxu0 0.0
      %1549 = vmatprep.subr.mxu0 0.0
      %1550 = vmatpush1.xpose.msra.mxu0 0.0
      %1551 = vmatprep.subr.mxu0 0.0
      %1552 = vmatpush1.xpose.msra.mxu0 0.0
      %1553 = vmatprep.subr.mxu0 0.0
      %1554 = vmatpush1.xpose.msra.mxu0 0.0
      %1555 = vmatprep.subr.mxu0 0.0
      %1556 = vmatpush1.xpose.msra.mxu0 0.0
      %1557 = vmatprep.subr.mxu0 0.0
      %1558 = vmatpush1.xpose.msra.mxu0 0.0
      %1559 = vmatprep.subr.mxu0 0.0
      %1560 = vmatpush1.xpose.msra.mxu0 0.0
      %1561 = vmatprep.subr.mxu0 0.0
      %1562 = vmatpush1.xpose.msra.mxu0 0.0
      %1563 = vmatprep.subr.mxu0 0.0
      %1564 = vmatpush1.xpose.msra.mxu0 0.0
      %1565 = vmatprep.subr.mxu0 0.0
      %1566 = vmatpush1.xpose.msra.mxu0 0.0
      %1567 = vmatprep.subr.mxu0 0.0
      %1568 = vmatpush1.xpose.msra.mxu0 0.0
      %1569 = vmatprep.subr.mxu0 0.0
      %1570 = vmatpush1.xpose.msra.mxu0 0.0
      %1571 = vmatprep.subr.mxu0 0.0
      %1572 = vmatpush1.xpose.msra.mxu0 0.0
      %1573 = vmatprep.subr.mxu0 0.0
      %1574 = vmatpush1.xpose.msra.mxu0 0.0
      %1575 = vmatprep.subr.mxu0 0.0
      %1576 = vmatpush1.xpose.msra.mxu0 0.0
      %1577 = vmatprep.subr.mxu0 0.0
      %1578 = vmatpush1.xpose.msra.mxu0 0.0
      %1579 = vmatprep.subr.mxu0 0.0
      %1580 = vmatpush1.xpose.msra.mxu0 0.0
      %1581 = vmatprep.subr.mxu0 0.0
      %1582 = vmatpush1.xpose.msra.mxu0 0.0
      %1583 = vmatprep.subr.mxu0 0.0
      %1584 = vmatpush1.xpose.msra.mxu0 0.0
      %1585 = vmatprep.subr.mxu0 0.0
      %1586 = vmatpush1.xpose.msra.mxu0 0.0
      %1587 = vmatprep.subr.mxu0 0.0
      %1588 = vmatpush1.xpose.msra.mxu0 0.0
      %1589 = vmatprep.subr.mxu0 0.0
      %1590 = vmatpush1.xpose.msra.mxu0 0.0
      %1591 = vmatprep.mubr.f32.mxu0 0.0
      %1592 = vmatmul.mubr.f32.gmra.mrb[0].mxu0 %v242
      %v1593 = vpop.f32.mrb[0].mxu0
      %v1594 = vadd.f32 0.0, %v1593
      %v1595 = vpop.f32.mrb[0].mxu0
      %1596 = vmatprep.mubr.f32.mxu0 0.0
      %1597 = vmatmul.mubr.f32.gmra.mrb[0].mxu0 %v244
      %v1598 = vpop.f32.mrb[0].mxu0
      %v1599 = vadd.f32 0.0, %v1598
      %v1600 = vpop.f32.mrb[0].mxu0
      %1601 = vmatprep.mubr.f32.mxu0 0.0
      %1602 = vmatmul.mubr.f32.gmra.mrb[0].mxu0 %v246
      %v1603 = vpop.f32.mrb[0].mxu0
      %v1604 = vadd.f32 0.0, %v1603
      %v1605 = vpop.f32.mrb[0].mxu0
      %1606 = vmatprep.mubr.f32.mxu0 0.0
      %1607 = vmatmul.mubr.f32.gmra.mrb[0].mxu0 %v1525
      %v1608 = vpop.f32.mrb[0].mxu0
      %v1609 = vadd.f32 0.0, %v1608
      %v1610 = vpop.f32.mrb[0].mxu0
      %1611 = vdwg.mxu0
      %v1612 = vrot.slane %v205, 2
      %v1613 = vsel %vm333, %v341, %v1612
      %v1614 = vsel %vm239, %v1613, 0
      %1616 = vmatprep.subr.mxu0 0.0
      %1617 = vmatpush1.xpose.msra.mxu0 %v345
      %1618 = vmatprep.subr.mxu0 0.0
      %1619 = vmatpush1.xpose.msra.mxu0 %v347
      %1620 = vmatprep.subr.mxu0 0.0
      %1621 = vmatpush1.xpose.msra.mxu0 %v349
      %1622 = vmatprep.subr.mxu0 0.0
      %1623 = vmatpush1.xpose.msra.mxu0 %v1614
      %1624 = vmatprep.subr.mxu0 0.0
      %1625 = vmatpush1.xpose.msra.mxu0 0.0
      %1626 = vmatprep.subr.mxu0 0.0
      %1627 = vmatpush1.xpose.msra.mxu0 0.0
      %1628 = vmatprep.subr.mxu0 0.0
      %1629 = vmatpush1.xpose.msra.mxu0 0.0
      %1630 = vmatprep.subr.mxu0 0.0
      %1631 = vmatpush1.xpose.msra.mxu0 0.0
      %1632 = vmatprep.subr.mxu0 0.0
      %1633 = vmatpush1.xpose.msra.mxu0 0.0
      %1634 = vmatprep.subr.mxu0 0.0
      %1635 = vmatpush1.xpose.msra.mxu0 0.0
      %1636 = vmatprep.subr.mxu0 0.0
      %1637 = vmatpush1.xpose.msra.mxu0 0.0
      %1638 = vmatprep.subr.mxu0 0.0
      %1639 = vmatpush1.xpose.msra.mxu0 0.0
      %1640 = vmatprep.subr.mxu0 0.0
      %1641 = vmatpush1.xpose.msra.mxu0 0.0
      %1642 = vmatprep.subr.mxu0 0.0
      %1643 = vmatpush1.xpose.msra.mxu0 0.0
      %1644 = vmatprep.subr.mxu0 0.0
      %1645 = vmatpush1.xpose.msra.mxu0 0.0
      %1646 = vmatprep.subr.mxu0 0.0
      %1647 = vmatpush1.xpose.msra.mxu0 0.0
      %1648 = vmatprep.subr.mxu0 0.0
      %1649 = vmatpush1.xpose.msra.mxu0 0.0
      %1650 = vmatprep.subr.mxu0 0.0
      %1651 = vmatpush1.xpose.msra.mxu0 0.0
      %1652 = vmatprep.subr.mxu0 0.0
      %1653 = vmatpush1.xpose.msra.mxu0 0.0
      %1654 = vmatprep.subr.mxu0 0.0
      %1655 = vmatpush1.xpose.msra.mxu0 0.0
      %1656 = vmatprep.subr.mxu0 0.0
      %1657 = vmatpush1.xpose.msra.mxu0 0.0
      %1658 = vmatprep.subr.mxu0 0.0
      %1659 = vmatpush1.xpose.msra.mxu0 0.0
      %1660 = vmatprep.subr.mxu0 0.0
      %1661 = vmatpush1.xpose.msra.mxu0 0.0
      %1662 = vmatprep.subr.mxu0 0.0
      %1663 = vmatpush1.xpose.msra.mxu0 0.0
      %1664 = vmatprep.subr.mxu0 0.0
      %1665 = vmatpush1.xpose.msra.mxu0 0.0
      %1666 = vmatprep.subr.mxu0 0.0
      %1667 = vmatpush1.xpose.msra.mxu0 0.0
      %1668 = vmatprep.subr.mxu0 0.0
      %1669 = vmatpush1.xpose.msra.mxu0 0.0
      %1670 = vmatprep.subr.mxu0 0.0
      %1671 = vmatpush1.xpose.msra.mxu0 0.0
      %1672 = vmatprep.subr.mxu0 0.0
      %1673 = vmatpush1.xpose.msra.mxu0 0.0
      %1674 = vmatprep.subr.mxu0 0.0
      %1675 = vmatpush1.xpose.msra.mxu0 0.0
      %1676 = vmatprep.subr.mxu0 0.0
      %1677 = vmatpush1.xpose.msra.mxu0 0.0
      %1678 = vmatprep.subr.mxu0 0.0
      %1679 = vmatpush1.xpose.msra.mxu0 0.0
      %1680 = vmatprep.mubr.f32.mxu0 0.0
      %1681 = vmatmul.mubr.f32.gmra.mrb[0].mxu0 %v345
      %v1682 = vpop.f32.mrb[0].mxu0
      %v1683 = vadd.f32 0.0, %v1682
      %v1684 = vpop.f32.mrb[0].mxu0
      %1685 = vmatprep.mubr.f32.mxu0 0.0
      %1686 = vmatmul.mubr.f32.gmra.mrb[0].mxu0 %v347
      %v1687 = vpop.f32.mrb[0].mxu0
      %v1688 = vadd.f32 0.0, %v1687
      %v1689 = vpop.f32.mrb[0].mxu0
      %1690 = vmatprep.mubr.f32.mxu0 0.0
      %1691 = vmatmul.mubr.f32.gmra.mrb[0].mxu0 %v349
      %v1692 = vpop.f32.mrb[0].mxu0
      %v1693 = vadd.f32 0.0, %v1692
      %v1694 = vpop.f32.mrb[0].mxu0
      %1695 = vmatprep.mubr.f32.mxu0 0.0
      %1696 = vmatmul.mubr.f32.gmra.mrb[0].mxu0 %v1614
      %v1697 = vpop.f32.mrb[0].mxu0
      %v1698 = vadd.f32 0.0, %v1697
      %v1699 = vpop.f32.mrb[0].mxu0
      %1700 = vdwg.mxu0
      %v1701 = vrot.slane %v205, 3
      %v1702 = vsel %vm436, %v444, %v1701
      %v1703 = vsel %vm239, %v1702, 0
      %1705 = vmatprep.subr.mxu0 0.0
      %1706 = vmatpush1.xpose.msra.mxu0 %v448
      %1707 = vmatprep.subr.mxu0 0.0
      %1708 = vmatpush1.xpose.msra.mxu0 %v450
      %1709 = vmatprep.subr.mxu0 0.0
      %1710 = vmatpush1.xpose.msra.mxu0 %v452
      %1711 = vmatprep.subr.mxu0 0.0
      %1712 = vmatpush1.xpose.msra.mxu0 %v1703
      %1713 = vmatprep.subr.mxu0 0.0
      %1714 = vmatpush1.xpose.msra.mxu0 0.0
      %1715 = vmatprep.subr.mxu0 0.0
      %1716 = vmatpush1.xpose.msra.mxu0 0.0
      %1717 = vmatprep.subr.mxu0 0.0
      %1718 = vmatpush1.xpose.msra.mxu0 0.0
      %1719 = vmatprep.subr.mxu0 0.0
      %1720 = vmatpush1.xpose.msra.mxu0 0.0
      %1721 = vmatprep.subr.mxu0 0.0
      %1722 = vmatpush1.xpose.msra.mxu0 0.0
      %1723 = vmatprep.subr.mxu0 0.0
      %1724 = vmatpush1.xpose.msra.mxu0 0.0
      %1725 = vmatprep.subr.mxu0 0.0
      %1726 = vmatpush1.xpose.msra.mxu0 0.0
      %1727 = vmatprep.subr.mxu0 0.0
      %1728 = vmatpush1.xpose.msra.mxu0 0.0
      %1729 = vmatprep.subr.mxu0 0.0
      %1730 = vmatpush1.xpose.msra.mxu0 0.0
      %1731 = vmatprep.subr.mxu0 0.0
      %1732 = vmatpush1.xpose.msra.mxu0 0.0
      %1733 = vmatprep.subr.mxu0 0.0
      %1734 = vmatpush1.xpose.msra.mxu0 0.0
      %1735 = vmatprep.subr.mxu0 0.0
      %1736 = vmatpush1.xpose.msra.mxu0 0.0
      %1737 = vmatprep.subr.mxu0 0.0
      %1738 = vmatpush1.xpose.msra.mxu0 0.0
      %1739 = vmatprep.subr.mxu0 0.0
      %1740 = vmatpush1.xpose.msra.mxu0 0.0
      %1741 = vmatprep.subr.mxu0 0.0
      %1742 = vmatpush1.xpose.msra.mxu0 0.0
      %1743 = vmatprep.subr.mxu0 0.0
      %1744 = vmatpush1.xpose.msra.mxu0 0.0
      %1745 = vmatprep.subr.mxu0 0.0
      %1746 = vmatpush1.xpose.msra.mxu0 0.0
      %1747 = vmatprep.subr.mxu0 0.0
      %1748 = vmatpush1.xpose.msra.mxu0 0.0
      %1749 = vmatprep.subr.mxu0 0.0
      %1750 = vmatpush1.xpose.msra.mxu0 0.0
      %1751 = vmatprep.subr.mxu0 0.0
      %1752 = vmatpush1.xpose.msra.mxu0 0.0
      %1753 = vmatprep.subr.mxu0 0.0
      %1754 = vmatpush1.xpose.msra.mxu0 0.0
      %1755 = vmatprep.subr.mxu0 0.0
      %1756 = vmatpush1.xpose.msra.mxu0 0.0
      %1757 = vmatprep.subr.mxu0 0.0
      %1758 = vmatpush1.xpose.msra.mxu0 0.0
      %1759 = vmatprep.subr.mxu0 0.0
      %1760 = vmatpush1.xpose.msra.mxu0 0.0
      %1761 = vmatprep.subr.mxu0 0.0
      %1762 = vmatpush1.xpose.msra.mxu0 0.0
      %1763 = vmatprep.subr.mxu0 0.0
      %1764 = vmatpush1.xpose.msra.mxu0 0.0
      %1765 = vmatprep.subr.mxu0 0.0
      %1766 = vmatpush1.xpose.msra.mxu0 0.0
      %1767 = vmatprep.subr.mxu0 0.0
      %1768 = vmatpush1.xpose.msra.mxu0 0.0
      %1769 = vmatprep.mubr.f32.mxu0 0.0
      %1770 = vmatmul.mubr.f32.gmra.mrb[0].mxu0 %v448
      %v1771 = vpop.f32.mrb[0].mxu0
      %v1772 = vadd.f32 0.0, %v1771
      %v1773 = vpop.f32.mrb[0].mxu0
      %1774 = vmatprep.mubr.f32.mxu0 0.0
      %1775 = vmatmul.mubr.f32.gmra.mrb[0].mxu0 %v450
      %v1776 = vpop.f32.mrb[0].mxu0
      %v1777 = vadd.f32 0.0, %v1776
      %v1778 = vpop.f32.mrb[0].mxu0
      %1779 = vmatprep.mubr.f32.mxu0 0.0
      %1780 = vmatmul.mubr.f32.gmra.mrb[0].mxu0 %v452
      %v1781 = vpop.f32.mrb[0].mxu0
      %v1782 = vadd.f32 0.0, %v1781
      %v1783 = vpop.f32.mrb[0].mxu0
      %1784 = vmatprep.mubr.f32.mxu0 0.0
      %1785 = vmatmul.mubr.f32.gmra.mrb[0].mxu0 %v1703
      %v1786 = vpop.f32.mrb[0].mxu0
      %v1787 = vadd.f32 0.0, %v1786
      %v1788 = vpop.f32.mrb[0].mxu0
      %1789 = vdwg.mxu0
      %v1790 = vrot.slane %v205, 4
      %v1791 = vsel %vm539, %v547, %v1790
      %v1792 = vsel %vm239, %v1791, 0
      %1794 = vmatprep.subr.mxu0 0.0
      %1795 = vmatpush1.xpose.msra.mxu0 %v551
      %1796 = vmatprep.subr.mxu0 0.0
      %1797 = vmatpush1.xpose.msra.mxu0 %v553
      %1798 = vmatprep.subr.mxu0 0.0
      %1799 = vmatpush1.xpose.msra.mxu0 %v555
      %1800 = vmatprep.subr.mxu0 0.0
      %1801 = vmatpush1.xpose.msra.mxu0 %v1792
      %1802 = vmatprep.subr.mxu0 0.0
      %1803 = vmatpush1.xpose.msra.mxu0 0.0
      %1804 = vmatprep.subr.mxu0 0.0
      %1805 = vmatpush1.xpose.msra.mxu0 0.0
      %1806 = vmatprep.subr.mxu0 0.0
      %1807 = vmatpush1.xpose.msra.mxu0 0.0
      %1808 = vmatprep.subr.mxu0 0.0
      %1809 = vmatpush1.xpose.msra.mxu0 0.0
      %1810 = vmatprep.subr.mxu0 0.0
      %1811 = vmatpush1.xpose.msra.mxu0 0.0
      %1812 = vmatprep.subr.mxu0 0.0
      %1813 = vmatpush1.xpose.msra.mxu0 0.0
      %1814 = vmatprep.subr.mxu0 0.0
      %1815 = vmatpush1.xpose.msra.mxu0 0.0
      %1816 = vmatprep.subr.mxu0 0.0
      %1817 = vmatpush1.xpose.msra.mxu0 0.0
      %1818 = vmatprep.subr.mxu0 0.0
      %1819 = vmatpush1.xpose.msra.mxu0 0.0
      %1820 = vmatprep.subr.mxu0 0.0
      %1821 = vmatpush1.xpose.msra.mxu0 0.0
      %1822 = vmatprep.subr.mxu0 0.0
      %1823 = vmatpush1.xpose.msra.mxu0 0.0
      %1824 = vmatprep.subr.mxu0 0.0
      %1825 = vmatpush1.xpose.msra.mxu0 0.0
      %1826 = vmatprep.subr.mxu0 0.0
      %1827 = vmatpush1.xpose.msra.mxu0 0.0
      %1828 = vmatprep.subr.mxu0 0.0
      %1829 = vmatpush1.xpose.msra.mxu0 0.0
      %1830 = vmatprep.subr.mxu0 0.0
      %1831 = vmatpush1.xpose.msra.mxu0 0.0
      %1832 = vmatprep.subr.mxu0 0.0
      %1833 = vmatpush1.xpose.msra.mxu0 0.0
      %1834 = vmatprep.subr.mxu0 0.0
      %1835 = vmatpush1.xpose.msra.mxu0 0.0
      %1836 = vmatprep.subr.mxu0 0.0
      %1837 = vmatpush1.xpose.msra.mxu0 0.0
      %1838 = vmatprep.subr.mxu0 0.0
      %1839 = vmatpush1.xpose.msra.mxu0 0.0
      %1840 = vmatprep.subr.mxu0 0.0
      %1841 = vmatpush1.xpose.msra.mxu0 0.0
      %1842 = vmatprep.subr.mxu0 0.0
      %1843 = vmatpush1.xpose.msra.mxu0 0.0
      %1844 = vmatprep.subr.mxu0 0.0
      %1845 = vmatpush1.xpose.msra.mxu0 0.0
      %1846 = vmatprep.subr.mxu0 0.0
      %1847 = vmatpush1.xpose.msra.mxu0 0.0
      %1848 = vmatprep.subr.mxu0 0.0
      %1849 = vmatpush1.xpose.msra.mxu0 0.0
      %1850 = vmatprep.subr.mxu0 0.0
      %1851 = vmatpush1.xpose.msra.mxu0 0.0
      %1852 = vmatprep.subr.mxu0 0.0
      %1853 = vmatpush1.xpose.msra.mxu0 0.0
      %1854 = vmatprep.subr.mxu0 0.0
      %1855 = vmatpush1.xpose.msra.mxu0 0.0
      %1856 = vmatprep.subr.mxu0 0.0
      %1857 = vmatpush1.xpose.msra.mxu0 0.0
      %1858 = vmatprep.mubr.f32.mxu0 0.0
      %1859 = vmatmul.mubr.f32.gmra.mrb[0].mxu0 %v551
      %v1860 = vpop.f32.mrb[0].mxu0
      %v1861 = vadd.f32 0.0, %v1860
      %v1862 = vpop.f32.mrb[0].mxu0
      %1863 = vmatprep.mubr.f32.mxu0 0.0
      %1864 = vmatmul.mubr.f32.gmra.mrb[0].mxu0 %v553
      %v1865 = vpop.f32.mrb[0].mxu0
      %v1866 = vadd.f32 0.0, %v1865
      %v1867 = vpop.f32.mrb[0].mxu0
      %1868 = vmatprep.mubr.f32.mxu0 0.0
      %1869 = vmatmul.mubr.f32.gmra.mrb[0].mxu0 %v555
      %v1870 = vpop.f32.mrb[0].mxu0
      %v1871 = vadd.f32 0.0, %v1870
      %v1872 = vpop.f32.mrb[0].mxu0
      %1873 = vmatprep.mubr.f32.mxu0 0.0
      %1874 = vmatmul.mubr.f32.gmra.mrb[0].mxu0 %v1792
      %v1875 = vpop.f32.mrb[0].mxu0
      %v1876 = vadd.f32 0.0, %v1875
      %v1877 = vpop.f32.mrb[0].mxu0
      %1878 = vdwg.mxu0
      %1879 = vrot.lane.b32.xlu0 %v1524, 32
      %v1880 = vpop.permute.xlu0 %1879
      %1881 = vrot.lane.b32.xlu0 %v1523, 32
      %v1882 = vpop.permute.xlu0 %1881
      %1885 = vrot.lane.b32.xlu0 %v1613, 64
      %v1886 = vpop.permute.xlu0 %1885
      %1887 = vrot.lane.b32.xlu0 %v1612, 64
      %v1888 = vpop.permute.xlu0 %1887
      %1891 = vrot.lane.b32.xlu0 %v1702, 96
      %v1892 = vpop.permute.xlu0 %1891
      %1893 = vrot.lane.b32.xlu0 %v1701, 96
      %v1894 = vpop.permute.xlu0 %1893
      %v1897 = vsel %vm239, %v204, %v1880
      %v1898 = vsel %vm239, %v205, %v1882
      %v1899 = vsel %vm692, %v1897, %v1886
      %v1900 = vsel %vm692, %v1898, %v1888
      %v1901 = vsel %vm698, %v1899, %v1892
      %v1902 = vsel %vm698, %v1900, %v1894
      %1907 = vrot.lane.b32.xlu0 %v1683, 32
      %v1908 = vpop.permute.xlu0 %1907
      %1909 = vrot.lane.b32.xlu0 %v1688, 32
      %v1910 = vpop.permute.xlu0 %1909
      %1911 = vrot.lane.b32.xlu0 %v1693, 32
      %v1912 = vpop.permute.xlu0 %1911
      %1913 = vrot.lane.b32.xlu0 %v1698, 32
      %v1914 = vpop.permute.xlu0 %1913
      %1923 = vrot.lane.b32.xlu0 %v1772, 64
      %v1924 = vpop.permute.xlu0 %1923
      %1925 = vrot.lane.b32.xlu0 %v1777, 64
      %v1926 = vpop.permute.xlu0 %1925
      %1927 = vrot.lane.b32.xlu0 %v1782, 64
      %v1928 = vpop.permute.xlu0 %1927
      %1929 = vrot.lane.b32.xlu0 %v1787, 64
      %v1930 = vpop.permute.xlu0 %1929
      %1939 = vrot.lane.b32.xlu0 %v1861, 96
      %v1940 = vpop.permute.xlu0 %1939
      %1941 = vrot.lane.b32.xlu0 %v1866, 96
      %v1942 = vpop.permute.xlu0 %1941
      %1943 = vrot.lane.b32.xlu0 %v1871, 96
      %v1944 = vpop.permute.xlu0 %1943
      %1945 = vrot.lane.b32.xlu0 %v1876, 96
      %v1946 = vpop.permute.xlu0 %1945
      %v1951 = vsel %vm239, %v1594, %v1908
      %v1952 = vsel %vm239, %v1599, %v1910
      %v1953 = vsel %vm239, %v1604, %v1912
      %v1954 = vsel %vm239, %v1609, %v1914
      %v1955 = vsel %vm692, %v1951, %v1924
      %v1956 = vsel %vm692, %v1952, %v1926
      %v1957 = vsel %vm692, %v1953, %v1928
      %v1958 = vsel %vm692, %v1954, %v1930
      %v1959 = vsel %vm698, %v1955, %v1940
      %v1960 = vsel %vm698, %v1956, %v1942
      %v1961 = vsel %vm698, %v1957, %v1944
      %v1962 = vsel %vm698, %v1958, %v1946
      %v1963 = vmul.f32 %v1959, %v1959
      %v1964 = vmul.f32 %v1960, %v1960
      %v1965 = vmul.f32 %v1961, %v1961
      %v1966 = vmul.f32 %v1962, %v1962
      %v1967 = vmul.f32 %v1963, %v1963
      %v1968 = vmul.f32 %v1964, %v1964
      %v1969 = vmul.f32 %v1965, %v1965
      %v1970 = vmul.f32 %v1966, %v1966
      %v1971 = vmul.f32 %v1967, %v1967
      %v1972 = vmul.f32 %v1968, %v1968
      %v1973 = vmul.f32 %v1969, %v1969
      %v1974 = vmul.f32 %v1970, %v1970
      %v1975 = vmul.f32 %v1971, %v1971
      %v1976 = vmul.f32 %v1972, %v1972
      %v1977 = vmul.f32 %v1973, %v1973
      %v1978 = vmul.f32 %v1974, %v1974
      %v1979 = vmul.f32 %v1975, %v1975
      %v1980 = vmul.f32 %v1976, %v1976
      %v1981 = vmul.f32 %v1977, %v1977
      %v1982 = vmul.f32 %v1978, %v1978
      %v1983 = vrcp.pop %v1979
      %v1984 = vrcp.pop %v1980
      %v1985 = vrcp.pop %v1981
      %v1986 = vrcp.pop %v1982
      %1987 = vmatprep.subr.mxu0 0.0
      %1988 = vmatpush1.msra.mxu0 %v208
      %1989 = vmatprep.subr.mxu0 0.0
      %1990 = vmatpush1.msra.mxu0 %v209
      %1991 = vmatprep.subr.mxu0 0.0
      %1992 = vmatpush1.msra.mxu0 %v210
      %1993 = vmatprep.subr.mxu0 0.0
      %1994 = vmatpush1.msra.mxu0 %v211
      %1995 = vmatprep.subr.mxu0 0.0
      %1996 = vmatpush1.msra.mxu0 %v212
      %1997 = vmatprep.subr.mxu0 0.0
      %1998 = vmatpush1.msra.mxu0 %v213
      %1999 = vmatprep.subr.mxu0 0.0
      %2000 = vmatpush1.msra.mxu0 %v214
      %2001 = vmatprep.subr.mxu0 0.0
      %2002 = vmatpush1.msra.mxu0 %v215
      %2003 = vmatprep.subr.mxu0 0.0
      %2004 = vmatpush1.msra.mxu0 %v216
      %2005 = vmatprep.subr.mxu0 0.0
      %2006 = vmatpush1.msra.mxu0 %v217
      %2007 = vmatprep.subr.mxu0 0.0
      %2008 = vmatpush1.msra.mxu0 %v218
      %2009 = vmatprep.subr.mxu0 0.0
      %2010 = vmatpush1.msra.mxu0 %v219
      %2011 = vmatprep.subr.mxu0 0.0
      %2012 = vmatpush1.msra.mxu0 %v220
      %2013 = vmatprep.subr.mxu0 0.0
      %2014 = vmatpush1.msra.mxu0 %v221
      %2015 = vmatprep.subr.mxu0 0.0
      %2016 = vmatpush1.msra.mxu0 %v222
      %2017 = vmatprep.subr.mxu0 0.0
      %2018 = vmatpush1.msra.mxu0 %v223
      %2019 = vmatprep.subr.mxu0 0.0
      %2020 = vmatpush1.msra.mxu0 0.0
      %2021 = vmatprep.subr.mxu0 0.0
      %2022 = vmatpush1.msra.mxu0 0.0
      %2023 = vmatprep.subr.mxu0 0.0
      %2024 = vmatpush1.msra.mxu0 0.0
      %2025 = vmatprep.subr.mxu0 0.0
      %2026 = vmatpush1.msra.mxu0 0.0
      %2027 = vmatprep.subr.mxu0 0.0
      %2028 = vmatpush1.msra.mxu0 0.0
      %2029 = vmatprep.subr.mxu0 0.0
      %2030 = vmatpush1.msra.mxu0 0.0
      %2031 = vmatprep.subr.mxu0 0.0
      %2032 = vmatpush1.msra.mxu0 0.0
      %2033 = vmatprep.subr.mxu0 0.0
      %2034 = vmatpush1.msra.mxu0 0.0
      %2035 = vmatprep.subr.mxu0 0.0
      %2036 = vmatpush1.msra.mxu0 0.0
      %2037 = vmatprep.subr.mxu0 0.0
      %2038 = vmatpush1.msra.mxu0 0.0
      %2039 = vmatprep.subr.mxu0 0.0
      %2040 = vmatpush1.msra.mxu0 0.0
      %2041 = vmatprep.subr.mxu0 0.0
      %2042 = vmatpush1.msra.mxu0 0.0
      %2043 = vmatprep.subr.mxu0 0.0
      %2044 = vmatpush1.msra.mxu0 0.0
      %2045 = vmatprep.subr.mxu0 0.0
      %2046 = vmatpush1.msra.mxu0 0.0
      %2047 = vmatprep.subr.mxu0 0.0
      %2048 = vmatpush1.msra.mxu0 0.0
      %2049 = vmatprep.subr.mxu0 0.0
      %2050 = vmatpush1.msra.mxu0 0.0
      %2051 = vmatprep.mubr.f32.mxu0 0.0
      %2052 = vmatmul.mubr.f32.gmra.mrb[0].mxu0 %v1983
      %v2053 = vpop.f32.mrb[0].mxu0
      %v2054 = vadd.f32 0.0, %v2053
      %v2055 = vpop.f32.mrb[0].mxu0
      %2056 = vmatprep.mubr.f32.mxu0 0.0
      %2057 = vmatmul.mubr.f32.gmra.mrb[0].mxu0 %v1984
      %v2058 = vpop.f32.mrb[0].mxu0
      %v2059 = vadd.f32 0.0, %v2058
      %v2060 = vpop.f32.mrb[0].mxu0
      %2061 = vmatprep.mubr.f32.mxu0 0.0
      %2062 = vmatmul.mubr.f32.gmra.mrb[0].mxu0 %v1985
      %v2063 = vpop.f32.mrb[0].mxu0
      %v2064 = vadd.f32 0.0, %v2063
      %v2065 = vpop.f32.mrb[0].mxu0
      %2066 = vmatprep.mubr.f32.mxu0 0.0
      %2067 = vmatmul.mubr.f32.gmra.mrb[0].mxu0 %v1986
      %v2068 = vpop.f32.mrb[0].mxu0
      %v2069 = vadd.f32 0.0, %v2068
      %v2070 = vpop.f32.mrb[0].mxu0
      %2071 = vdwg.mxu0
      %v2072 = vrcp.pop %v2054
      %v2073 = vrcp.pop %v2059
      %v2074 = vrcp.pop %v2064
      %v2075 = vrcp.pop %v2069
      %v2076 = vmul.f32 %v1983, %v2072
      %v2077 = vmul.f32 %v1984, %v2073
      %v2078 = vmul.f32 %v1985, %v2074
      %v2079 = vmul.f32 %v1986, %v2075
      %v2082 = vrot.slane %v1901, 1
      %v2083 = vsel %vm229, %v891, %v2082
      %v2084 = vrot.slane %v1902, 1
      %v2085 = vsel %vm229, %v2082, %v2084
      %v2088 = vmul.f32 %v2076, %v890
      %v2089 = vmul.f32 %v2077, %v892
      %v2090 = vmul.f32 %v2078, %v2083
      %v2091 = vmul.f32 %v2079, %v2085
      %v2092 = vadd.f32 %v2088, %v2089
      %v2093 = vadd.f32 %v2092, %v2090
      %v2094 = vadd.f32 %v2093, %v2091
      %v2095 = vrot.slane %v2094, 4
      %v2096 = vadd.f32 %v2094, %v2095
      %v2097 = vrot.slane %v2096, 2
      %v2098 = vadd.f32 %v2096, %v2097
      %v2099 = vrot.slane %v2098, 1
      %v2100 = vadd.f32 %v2098, %v2099
      %v2101 = vrot.slane %v205, 5
      %v2102 = vsel %vm912, %v920, %v2101
      %v2103 = vsel %vm239, %v2102, 0
      %2105 = vmatprep.subr.mxu0 0.0
      %2106 = vmatpush1.xpose.msra.mxu0 %v924
      %2107 = vmatprep.subr.mxu0 0.0
      %2108 = vmatpush1.xpose.msra.mxu0 %v926
      %2109 = vmatprep.subr.mxu0 0.0
      %2110 = vmatpush1.xpose.msra.mxu0 %v928
      %2111 = vmatprep.subr.mxu0 0.0
      %2112 = vmatpush1.xpose.msra.mxu0 %v2103
      %2113 = vmatprep.subr.mxu0 0.0
      %2114 = vmatpush1.xpose.msra.mxu0 0.0
      %2115 = vmatprep.subr.mxu0 0.0
      %2116 = vmatpush1.xpose.msra.mxu0 0.0
      %2117 = vmatprep.subr.mxu0 0.0
      %2118 = vmatpush1.xpose.msra.mxu0 0.0
      %2119 = vmatprep.subr.mxu0 0.0
      %2120 = vmatpush1.xpose.msra.mxu0 0.0
      %2121 = vmatprep.subr.mxu0 0.0
      %2122 = vmatpush1.xpose.msra.mxu0 0.0
      %2123 = vmatprep.subr.mxu0 0.0
      %2124 = vmatpush1.xpose.msra.mxu0 0.0
      %2125 = vmatprep.subr.mxu0 0.0
      %2126 = vmatpush1.xpose.msra.mxu0 0.0
      %2127 = vmatprep.subr.mxu0 0.0
      %2128 = vmatpush1.xpose.msra.mxu0 0.0
      %2129 = vmatprep.subr.mxu0 0.0
      %2130 = vmatpush1.xpose.msra.mxu0 0.0
      %2131 = vmatprep.subr.mxu0 0.0
      %2132 = vmatpush1.xpose.msra.mxu0 0.0
      %2133 = vmatprep.subr.mxu0 0.0
      %2134 = vmatpush1.xpose.msra.mxu0 0.0
      %2135 = vmatprep.subr.mxu0 0.0
      %2136 = vmatpush1.xpose.msra.mxu0 0.0
      %2137 = vmatprep.subr.mxu0 0.0
      %2138 = vmatpush1.xpose.msra.mxu0 0.0
      %2139 = vmatprep.subr.mxu0 0.0
      %2140 = vmatpush1.xpose.msra.mxu0 0.0
      %2141 = vmatprep.subr.mxu0 0.0
      %2142 = vmatpush1.xpose.msra.mxu0 0.0
      %2143 = vmatprep.subr.mxu0 0.0
      %2144 = vmatpush1.xpose.msra.mxu0 0.0
      %2145 = vmatprep.subr.mxu0 0.0
      %2146 = vmatpush1.xpose.msra.mxu0 0.0
      %2147 = vmatprep.subr.mxu0 0.0
      %2148 = vmatpush1.xpose.msra.mxu0 0.0
      %2149 = vmatprep.subr.mxu0 0.0
      %2150 = vmatpush1.xpose.msra.mxu0 0.0
      %2151 = vmatprep.subr.mxu0 0.0
      %2152 = vmatpush1.xpose.msra.mxu0 0.0
      %2153 = vmatprep.subr.mxu0 0.0
      %2154 = vmatpush1.xpose.msra.mxu0 0.0
      %2155 = vmatprep.subr.mxu0 0.0
      %2156 = vmatpush1.xpose.msra.mxu0 0.0
      %2157 = vmatprep.subr.mxu0 0.0
      %2158 = vmatpush1.xpose.msra.mxu0 0.0
      %2159 = vmatprep.subr.mxu0 0.0
      %2160 = vmatpush1.xpose.msra.mxu0 0.0
      %2161 = vmatprep.subr.mxu0 0.0
      %2162 = vmatpush1.xpose.msra.mxu0 0.0
      %2163 = vmatprep.subr.mxu0 0.0
      %2164 = vmatpush1.xpose.msra.mxu0 0.0
      %2165 = vmatprep.subr.mxu0 0.0
      %2166 = vmatpush1.xpose.msra.mxu0 0.0
      %2167 = vmatprep.subr.mxu0 0.0
      %2168 = vmatpush1.xpose.msra.mxu0 0.0
      %2169 = vmatprep.mubr.f32.mxu0 0.0
      %2170 = vmatmul.mubr.f32.gmra.mrb[0].mxu0 %v924
      %v2171 = vpop.f32.mrb[0].mxu0
      %v2172 = vadd.f32 0.0, %v2171
      %v2173 = vpop.f32.mrb[0].mxu0
      %2174 = vmatprep.mubr.f32.mxu0 0.0
      %2175 = vmatmul.mubr.f32.gmra.mrb[0].mxu0 %v926
      %v2176 = vpop.f32.mrb[0].mxu0
      %v2177 = vadd.f32 0.0, %v2176
      %v2178 = vpop.f32.mrb[0].mxu0
      %2179 = vmatprep.mubr.f32.mxu0 0.0
      %2180 = vmatmul.mubr.f32.gmra.mrb[0].mxu0 %v928
      %v2181 = vpop.f32.mrb[0].mxu0
      %v2182 = vadd.f32 0.0, %v2181
      %v2183 = vpop.f32.mrb[0].mxu0
      %2184 = vmatprep.mubr.f32.mxu0 0.0
      %2185 = vmatmul.mubr.f32.gmra.mrb[0].mxu0 %v2103
      %v2186 = vpop.f32.mrb[0].mxu0
      %v2187 = vadd.f32 0.0, %v2186
      %v2188 = vpop.f32.mrb[0].mxu0
      %2189 = vdwg.mxu0
      %v2190 = vrot.slane %v205, 6
      %v2191 = vsel %vm1015, %v1023, %v2190
      %v2192 = vsel %vm239, %v2191, 0
      %2194 = vmatprep.subr.mxu0 0.0
      %2195 = vmatpush1.xpose.msra.mxu0 %v1027
      %2196 = vmatprep.subr.mxu0 0.0
      %2197 = vmatpush1.xpose.msra.mxu0 %v1029
      %2198 = vmatprep.subr.mxu0 0.0
      %2199 = vmatpush1.xpose.msra.mxu0 %v1031
      %2200 = vmatprep.subr.mxu0 0.0
      %2201 = vmatpush1.xpose.msra.mxu0 %v2192
      %2202 = vmatprep.subr.mxu0 0.0
      %2203 = vmatpush1.xpose.msra.mxu0 0.0
      %2204 = vmatprep.subr.mxu0 0.0
      %2205 = vmatpush1.xpose.msra.mxu0 0.0
      %2206 = vmatprep.subr.mxu0 0.0
      %2207 = vmatpush1.xpose.msra.mxu0 0.0
      %2208 = vmatprep.subr.mxu0 0.0
      %2209 = vmatpush1.xpose.msra.mxu0 0.0
      %2210 = vmatprep.subr.mxu0 0.0
      %2211 = vmatpush1.xpose.msra.mxu0 0.0
      %2212 = vmatprep.subr.mxu0 0.0
      %2213 = vmatpush1.xpose.msra.mxu0 0.0
      %2214 = vmatprep.subr.mxu0 0.0
      %2215 = vmatpush1.xpose.msra.mxu0 0.0
      %2216 = vmatprep.subr.mxu0 0.0
      %2217 = vmatpush1.xpose.msra.mxu0 0.0
      %2218 = vmatprep.subr.mxu0 0.0
      %2219 = vmatpush1.xpose.msra.mxu0 0.0
      %2220 = vmatprep.subr.mxu0 0.0
      %2221 = vmatpush1.xpose.msra.mxu0 0.0
      %2222 = vmatprep.subr.mxu0 0.0
      %2223 = vmatpush1.xpose.msra.mxu0 0.0
      %2224 = vmatprep.subr.mxu0 0.0
      %2225 = vmatpush1.xpose.msra.mxu0 0.0
      %2226 = vmatprep.subr.mxu0 0.0
      %2227 = vmatpush1.xpose.msra.mxu0 0.0
      %2228 = vmatprep.subr.mxu0 0.0
      %2229 = vmatpush1.xpose.msra.mxu0 0.0
      %2230 = vmatprep.subr.mxu0 0.0
      %2231 = vmatpush1.xpose.msra.mxu0 0.0
      %2232 = vmatprep.subr.mxu0 0.0
      %2233 = vmatpush1.xpose.msra.mxu0 0.0
      %2234 = vmatprep.subr.mxu0 0.0
      %2235 = vmatpush1.xpose.msra.mxu0 0.0
      %2236 = vmatprep.subr.mxu0 0.0
      %2237 = vmatpush1.xpose.msra.mxu0 0.0
      %2238 = vmatprep.subr.mxu0 0.0
      %2239 = vmatpush1.xpose.msra.mxu0 0.0
      %2240 = vmatprep.subr.mxu0 0.0
      %2241 = vmatpush1.xpose.msra.mxu0 0.0
      %2242 = vmatprep.subr.mxu0 0.0
      %2243 = vmatpush1.xpose.msra.mxu0 0.0
      %2244 = vmatprep.subr.mxu0 0.0
      %2245 = vmatpush1.xpose.msra.mxu0 0.0
      %2246 = vmatprep.subr.mxu0 0.0
      %2247 = vmatpush1.xpose.msra.mxu0 0.0
      %2248 = vmatprep.subr.mxu0 0.0
      %2249 = vmatpush1.xpose.msra.mxu0 0.0
      %2250 = vmatprep.subr.mxu0 0.0
      %2251 = vmatpush1.xpose.msra.mxu0 0.0
      %2252 = vmatprep.subr.mxu0 0.0
      %2253 = vmatpush1.xpose.msra.mxu0 0.0
      %2254 = vmatprep.subr.mxu0 0.0
      %2255 = vmatpush1.xpose.msra.mxu0 0.0
      %2256 = vmatprep.subr.mxu0 0.0
      %2257 = vmatpush1.xpose.msra.mxu0 0.0
      %2258 = vmatprep.mubr.f32.mxu0 0.0
      %2259 = vmatmul.mubr.f32.gmra.mrb[0].mxu0 %v1027
      %v2260 = vpop.f32.mrb[0].mxu0
      %v2261 = vadd.f32 0.0, %v2260
      %v2262 = vpop.f32.mrb[0].mxu0
      %2263 = vmatprep.mubr.f32.mxu0 0.0
      %2264 = vmatmul.mubr.f32.gmra.mrb[0].mxu0 %v1029
      %v2265 = vpop.f32.mrb[0].mxu0
      %v2266 = vadd.f32 0.0, %v2265
      %v2267 = vpop.f32.mrb[0].mxu0
      %2268 = vmatprep.mubr.f32.mxu0 0.0
      %2269 = vmatmul.mubr.f32.gmra.mrb[0].mxu0 %v1031
      %v2270 = vpop.f32.mrb[0].mxu0
      %v2271 = vadd.f32 0.0, %v2270
      %v2272 = vpop.f32.mrb[0].mxu0
      %2273 = vmatprep.mubr.f32.mxu0 0.0
      %2274 = vmatmul.mubr.f32.gmra.mrb[0].mxu0 %v2192
      %v2275 = vpop.f32.mrb[0].mxu0
      %v2276 = vadd.f32 0.0, %v2275
      %v2277 = vpop.f32.mrb[0].mxu0
      %2278 = vdwg.mxu0
      %v2279 = vrot.slane %v205, 7
      %v2280 = vsel %vm1118, %v1126, %v2279
      %v2281 = vsel %vm239, %v2280, 0
      %2283 = vmatprep.subr.mxu0 0.0
      %2284 = vmatpush1.xpose.msra.mxu0 %v1130
      %2285 = vmatprep.subr.mxu0 0.0
      %2286 = vmatpush1.xpose.msra.mxu0 %v1132
      %2287 = vmatprep.subr.mxu0 0.0
      %2288 = vmatpush1.xpose.msra.mxu0 %v1134
      %2289 = vmatprep.subr.mxu0 0.0
      %2290 = vmatpush1.xpose.msra.mxu0 %v2281
      %2291 = vmatprep.subr.mxu0 0.0
      %2292 = vmatpush1.xpose.msra.mxu0 0.0
      %2293 = vmatprep.subr.mxu0 0.0
      %2294 = vmatpush1.xpose.msra.mxu0 0.0
      %2295 = vmatprep.subr.mxu0 0.0
      %2296 = vmatpush1.xpose.msra.mxu0 0.0
      %2297 = vmatprep.subr.mxu0 0.0
      %2298 = vmatpush1.xpose.msra.mxu0 0.0
      %2299 = vmatprep.subr.mxu0 0.0
      %2300 = vmatpush1.xpose.msra.mxu0 0.0
      %2301 = vmatprep.subr.mxu0 0.0
      %2302 = vmatpush1.xpose.msra.mxu0 0.0
      %2303 = vmatprep.subr.mxu0 0.0
      %2304 = vmatpush1.xpose.msra.mxu0 0.0
      %2305 = vmatprep.subr.mxu0 0.0
      %2306 = vmatpush1.xpose.msra.mxu0 0.0
      %2307 = vmatprep.subr.mxu0 0.0
      %2308 = vmatpush1.xpose.msra.mxu0 0.0
      %2309 = vmatprep.subr.mxu0 0.0
      %2310 = vmatpush1.xpose.msra.mxu0 0.0
      %2311 = vmatprep.subr.mxu0 0.0
      %2312 = vmatpush1.xpose.msra.mxu0 0.0
      %2313 = vmatprep.subr.mxu0 0.0
      %2314 = vmatpush1.xpose.msra.mxu0 0.0
      %2315 = vmatprep.subr.mxu0 0.0
      %2316 = vmatpush1.xpose.msra.mxu0 0.0
      %2317 = vmatprep.subr.mxu0 0.0
      %2318 = vmatpush1.xpose.msra.mxu0 0.0
      %2319 = vmatprep.subr.mxu0 0.0
      %2320 = vmatpush1.xpose.msra.mxu0 0.0
      %2321 = vmatprep.subr.mxu0 0.0
      %2322 = vmatpush1.xpose.msra.mxu0 0.0
      %2323 = vmatprep.subr.mxu0 0.0
      %2324 = vmatpush1.xpose.msra.mxu0 0.0
      %2325 = vmatprep.subr.mxu0 0.0
      %2326 = vmatpush1.xpose.msra.mxu0 0.0
      %2327 = vmatprep.subr.mxu0 0.0
      %2328 = vmatpush1.xpose.msra.mxu0 0.0
      %2329 = vmatprep.subr.mxu0 0.0
      %2330 = vmatpush1.xpose.msra.mxu0 0.0
      %2331 = vmatprep.subr.mxu0 0.0
      %2332 = vmatpush1.xpose.msra.mxu0 0.0
      %2333 = vmatprep.subr.mxu0 0.0
      %2334 = vmatpush1.xpose.msra.mxu0 0.0
      %2335 = vmatprep.subr.mxu0 0.0
      %2336 = vmatpush1.xpose.msra.mxu0 0.0
      %2337 = vmatprep.subr.mxu0 0.0
      %2338 = vmatpush1.xpose.msra.mxu0 0.0
      %2339 = vmatprep.subr.mxu0 0.0
      %2340 = vmatpush1.xpose.msra.mxu0 0.0
      %2341 = vmatprep.subr.mxu0 0.0
      %2342 = vmatpush1.xpose.msra.mxu0 0.0
      %2343 = vmatprep.subr.mxu0 0.0
      %2344 = vmatpush1.xpose.msra.mxu0 0.0
      %2345 = vmatprep.subr.mxu0 0.0
      %2346 = vmatpush1.xpose.msra.mxu0 0.0
      %2347 = vmatprep.mubr.f32.mxu0 0.0
      %2348 = vmatmul.mubr.f32.gmra.mrb[0].mxu0 %v1130
      %v2349 = vpop.f32.mrb[0].mxu0
      %v2350 = vadd.f32 0.0, %v2349
      %v2351 = vpop.f32.mrb[0].mxu0
      %2352 = vmatprep.mubr.f32.mxu0 0.0
      %2353 = vmatmul.mubr.f32.gmra.mrb[0].mxu0 %v1132
      %v2354 = vpop.f32.mrb[0].mxu0
      %v2355 = vadd.f32 0.0, %v2354
      %v2356 = vpop.f32.mrb[0].mxu0
      %2357 = vmatprep.mubr.f32.mxu0 0.0
      %2358 = vmatmul.mubr.f32.gmra.mrb[0].mxu0 %v1134
      %v2359 = vpop.f32.mrb[0].mxu0
      %v2360 = vadd.f32 0.0, %v2359
      %v2361 = vpop.f32.mrb[0].mxu0
      %2362 = vmatprep.mubr.f32.mxu0 0.0
      %2363 = vmatmul.mubr.f32.gmra.mrb[0].mxu0 %v2281
      %v2364 = vpop.f32.mrb[0].mxu0
      %v2365 = vadd.f32 0.0, %v2364
      %v2366 = vpop.f32.mrb[0].mxu0
      %2367 = vdwg.mxu0
      %v2368 = vsel %vm239, %v205, 0
      %2370 = vmatprep.subr.mxu0 0.0
      %2371 = vmatpush1.xpose.msra.mxu0 %v1223
      %2372 = vmatprep.subr.mxu0 0.0
      %2373 = vmatpush1.xpose.msra.mxu0 %v1225
      %2374 = vmatprep.subr.mxu0 0.0
      %2375 = vmatpush1.xpose.msra.mxu0 %v1227
      %2376 = vmatprep.subr.mxu0 0.0
      %2377 = vmatpush1.xpose.msra.mxu0 %v2368
      %2378 = vmatprep.subr.mxu0 0.0
      %2379 = vmatpush1.xpose.msra.mxu0 0.0
      %2380 = vmatprep.subr.mxu0 0.0
      %2381 = vmatpush1.xpose.msra.mxu0 0.0
      %2382 = vmatprep.subr.mxu0 0.0
      %2383 = vmatpush1.xpose.msra.mxu0 0.0
      %2384 = vmatprep.subr.mxu0 0.0
      %2385 = vmatpush1.xpose.msra.mxu0 0.0
      %2386 = vmatprep.subr.mxu0 0.0
      %2387 = vmatpush1.xpose.msra.mxu0 0.0
      %2388 = vmatprep.subr.mxu0 0.0
      %2389 = vmatpush1.xpose.msra.mxu0 0.0
      %2390 = vmatprep.subr.mxu0 0.0
      %2391 = vmatpush1.xpose.msra.mxu0 0.0
      %2392 = vmatprep.subr.mxu0 0.0
      %2393 = vmatpush1.xpose.msra.mxu0 0.0
      %2394 = vmatprep.subr.mxu0 0.0
      %2395 = vmatpush1.xpose.msra.mxu0 0.0
      %2396 = vmatprep.subr.mxu0 0.0
      %2397 = vmatpush1.xpose.msra.mxu0 0.0
      %2398 = vmatprep.subr.mxu0 0.0
      %2399 = vmatpush1.xpose.msra.mxu0 0.0
      %2400 = vmatprep.subr.mxu0 0.0
      %2401 = vmatpush1.xpose.msra.mxu0 0.0
      %2402 = vmatprep.subr.mxu0 0.0
      %2403 = vmatpush1.xpose.msra.mxu0 0.0
      %2404 = vmatprep.subr.mxu0 0.0
      %2405 = vmatpush1.xpose.msra.mxu0 0.0
      %2406 = vmatprep.subr.mxu0 0.0
      %2407 = vmatpush1.xpose.msra.mxu0 0.0
      %2408 = vmatprep.subr.mxu0 0.0
      %2409 = vmatpush1.xpose.msra.mxu0 0.0
      %2410 = vmatprep.subr.mxu0 0.0
      %2411 = vmatpush1.xpose.msra.mxu0 0.0
      %2412 = vmatprep.subr.mxu0 0.0
      %2413 = vmatpush1.xpose.msra.mxu0 0.0
      %2414 = vmatprep.subr.mxu0 0.0
      %2415 = vmatpush1.xpose.msra.mxu0 0.0
      %2416 = vmatprep.subr.mxu0 0.0
      %2417 = vmatpush1.xpose.msra.mxu0 0.0
      %2418 = vmatprep.subr.mxu0 0.0
      %2419 = vmatpush1.xpose.msra.mxu0 0.0
      %2420 = vmatprep.subr.mxu0 0.0
      %2421 = vmatpush1.xpose.msra.mxu0 0.0
      %2422 = vmatprep.subr.mxu0 0.0
      %2423 = vmatpush1.xpose.msra.mxu0 0.0
      %2424 = vmatprep.subr.mxu0 0.0
      %2425 = vmatpush1.xpose.msra.mxu0 0.0
      %2426 = vmatprep.subr.mxu0 0.0
      %2427 = vmatpush1.xpose.msra.mxu0 0.0
      %2428 = vmatprep.subr.mxu0 0.0
      %2429 = vmatpush1.xpose.msra.mxu0 0.0
      %2430 = vmatprep.subr.mxu0 0.0
      %2431 = vmatpush1.xpose.msra.mxu0 0.0
      %2432 = vmatprep.subr.mxu0 0.0
      %2433 = vmatpush1.xpose.msra.mxu0 0.0
      %2434 = vmatprep.mubr.f32.mxu0 0.0
      %2435 = vmatmul.mubr.f32.gmra.mrb[0].mxu0 %v1223
      %v2436 = vpop.f32.mrb[0].mxu0
      %v2437 = vadd.f32 0.0, %v2436
      %v2438 = vpop.f32.mrb[0].mxu0
      %2439 = vmatprep.mubr.f32.mxu0 0.0
      %2440 = vmatmul.mubr.f32.gmra.mrb[0].mxu0 %v1225
      %v2441 = vpop.f32.mrb[0].mxu0
      %v2442 = vadd.f32 0.0, %v2441
      %v2443 = vpop.f32.mrb[0].mxu0
      %2444 = vmatprep.mubr.f32.mxu0 0.0
      %2445 = vmatmul.mubr.f32.gmra.mrb[0].mxu0 %v1227
      %v2446 = vpop.f32.mrb[0].mxu0
      %v2447 = vadd.f32 0.0, %v2446
      %v2448 = vpop.f32.mrb[0].mxu0
      %2449 = vmatprep.mubr.f32.mxu0 0.0
      %2450 = vmatmul.mubr.f32.gmra.mrb[0].mxu0 %v2368
      %v2451 = vpop.f32.mrb[0].mxu0
      %v2452 = vadd.f32 0.0, %v2451
      %v2453 = vpop.f32.mrb[0].mxu0
      %2454 = vdwg.mxu0
      %2455 = vrot.lane.b32.xlu0 %v440, 96
      %v2456 = vpop.permute.xlu0 %2455
      %v2458 = vsel %vm698, %v694, %v2456
      %2463 = vrot.lane.b32.xlu0 %v2261, 32
      %v2464 = vpop.permute.xlu0 %2463
      %2465 = vrot.lane.b32.xlu0 %v2266, 32
      %v2466 = vpop.permute.xlu0 %2465
      %2467 = vrot.lane.b32.xlu0 %v2271, 32
      %v2468 = vpop.permute.xlu0 %2467
      %2469 = vrot.lane.b32.xlu0 %v2276, 32
      %v2470 = vpop.permute.xlu0 %2469
      %2479 = vrot.lane.b32.xlu0 %v2350, 64
      %v2480 = vpop.permute.xlu0 %2479
      %2481 = vrot.lane.b32.xlu0 %v2355, 64
      %v2482 = vpop.permute.xlu0 %2481
      %2483 = vrot.lane.b32.xlu0 %v2360, 64
      %v2484 = vpop.permute.xlu0 %2483
      %2485 = vrot.lane.b32.xlu0 %v2365, 64
      %v2486 = vpop.permute.xlu0 %2485
      %2495 = vrot.lane.b32.xlu0 %v2437, 96
      %v2496 = vpop.permute.xlu0 %2495
      %2497 = vrot.lane.b32.xlu0 %v2442, 96
      %v2498 = vpop.permute.xlu0 %2497
      %2499 = vrot.lane.b32.xlu0 %v2447, 96
      %v2500 = vpop.permute.xlu0 %2499
      %2501 = vrot.lane.b32.xlu0 %v2452, 96
      %v2502 = vpop.permute.xlu0 %2501
      %v2507 = vsel %vm239, %v2172, %v2464
      %v2508 = vsel %vm239, %v2177, %v2466
      %v2509 = vsel %vm239, %v2182, %v2468
      %v2510 = vsel %vm239, %v2187, %v2470
      %v2511 = vsel %vm692, %v2507, %v2480
      %v2512 = vsel %vm692, %v2508, %v2482
      %v2513 = vsel %vm692, %v2509, %v2484
      %v2514 = vsel %vm692, %v2510, %v2486
      %v2515 = vsel %vm698, %v2511, %v2496
      %v2516 = vsel %vm698, %v2512, %v2498
      %v2517 = vsel %vm698, %v2513, %v2500
      %v2518 = vsel %vm698, %v2514, %v2502
      %v2519 = vmul.f32 %v2515, %v2515
      %v2520 = vmul.f32 %v2516, %v2516
      %v2521 = vmul.f32 %v2517, %v2517
      %v2522 = vmul.f32 %v2518, %v2518
      %v2523 = vmul.f32 %v2519, %v2519
      %v2524 = vmul.f32 %v2520, %v2520
      %v2525 = vmul.f32 %v2521, %v2521
      %v2526 = vmul.f32 %v2522, %v2522
      %v2527 = vmul.f32 %v2523, %v2523
      %v2528 = vmul.f32 %v2524, %v2524
      %v2529 = vmul.f32 %v2525, %v2525
      %v2530 = vmul.f32 %v2526, %v2526
      %v2531 = vmul.f32 %v2527, %v2527
      %v2532 = vmul.f32 %v2528, %v2528
      %v2533 = vmul.f32 %v2529, %v2529
      %v2534 = vmul.f32 %v2530, %v2530
      %v2535 = vmul.f32 %v2531, %v2531
      %v2536 = vmul.f32 %v2532, %v2532
      %v2537 = vmul.f32 %v2533, %v2533
      %v2538 = vmul.f32 %v2534, %v2534
      %v2539 = vrcp.pop %v2535
      %v2540 = vrcp.pop %v2536
      %v2541 = vrcp.pop %v2537
      %v2542 = vrcp.pop %v2538
      %2543 = vmatprep.subr.mxu0 0.0
      %2544 = vmatpush1.msra.mxu0 %v208
      %2545 = vmatprep.subr.mxu0 0.0
      %2546 = vmatpush1.msra.mxu0 %v209
      %2547 = vmatprep.subr.mxu0 0.0
      %2548 = vmatpush1.msra.mxu0 %v210
      %2549 = vmatprep.subr.mxu0 0.0
      %2550 = vmatpush1.msra.mxu0 %v211
      %2551 = vmatprep.subr.mxu0 0.0
      %2552 = vmatpush1.msra.mxu0 %v212
      %2553 = vmatprep.subr.mxu0 0.0
      %2554 = vmatpush1.msra.mxu0 %v213
      %2555 = vmatprep.subr.mxu0 0.0
      %2556 = vmatpush1.msra.mxu0 %v214
      %2557 = vmatprep.subr.mxu0 0.0
      %2558 = vmatpush1.msra.mxu0 %v215
      %2559 = vmatprep.subr.mxu0 0.0
      %2560 = vmatpush1.msra.mxu0 %v216
      %2561 = vmatprep.subr.mxu0 0.0
      %2562 = vmatpush1.msra.mxu0 %v217
      %2563 = vmatprep.subr.mxu0 0.0
      %2564 = vmatpush1.msra.mxu0 %v218
      %2565 = vmatprep.subr.mxu0 0.0
      %2566 = vmatpush1.msra.mxu0 %v219
      %2567 = vmatprep.subr.mxu0 0.0
      %2568 = vmatpush1.msra.mxu0 %v220
      %2569 = vmatprep.subr.mxu0 0.0
      %2570 = vmatpush1.msra.mxu0 %v221
      %2571 = vmatprep.subr.mxu0 0.0
      %2572 = vmatpush1.msra.mxu0 %v222
      %2573 = vmatprep.subr.mxu0 0.0
      %2574 = vmatpush1.msra.mxu0 %v223
      %2575 = vmatprep.subr.mxu0 0.0
      %2576 = vmatpush1.msra.mxu0 0.0
      %2577 = vmatprep.subr.mxu0 0.0
      %2578 = vmatpush1.msra.mxu0 0.0
      %2579 = vmatprep.subr.mxu0 0.0
      %2580 = vmatpush1.msra.mxu0 0.0
      %2581 = vmatprep.subr.mxu0 0.0
      %2582 = vmatpush1.msra.mxu0 0.0
      %2583 = vmatprep.subr.mxu0 0.0
      %2584 = vmatpush1.msra.mxu0 0.0
      %2585 = vmatprep.subr.mxu0 0.0
      %2586 = vmatpush1.msra.mxu0 0.0
      %2587 = vmatprep.subr.mxu0 0.0
      %2588 = vmatpush1.msra.mxu0 0.0
      %2589 = vmatprep.subr.mxu0 0.0
      %2590 = vmatpush1.msra.mxu0 0.0
      %2591 = vmatprep.subr.mxu0 0.0
      %2592 = vmatpush1.msra.mxu0 0.0
      %2593 = vmatprep.subr.mxu0 0.0
      %2594 = vmatpush1.msra.mxu0 0.0
      %2595 = vmatprep.subr.mxu0 0.0
      %2596 = vmatpush1.msra.mxu0 0.0
      %2597 = vmatprep.subr.mxu0 0.0
      %2598 = vmatpush1.msra.mxu0 0.0
      %2599 = vmatprep.subr.mxu0 0.0
      %2600 = vmatpush1.msra.mxu0 0.0
      %2601 = vmatprep.subr.mxu0 0.0
      %2602 = vmatpush1.msra.mxu0 0.0
      %2603 = vmatprep.subr.mxu0 0.0
      %2604 = vmatpush1.msra.mxu0 0.0
      %2605 = vmatprep.subr.mxu0 0.0
      %2606 = vmatpush1.msra.mxu0 0.0
      %2607 = vmatprep.mubr.f32.mxu0 0.0
      %2608 = vmatmul.mubr.f32.gmra.mrb[0].mxu0 %v2539
      %v2609 = vpop.f32.mrb[0].mxu0
      %v2610 = vadd.f32 0.0, %v2609
      %v2611 = vpop.f32.mrb[0].mxu0
      %2612 = vmatprep.mubr.f32.mxu0 0.0
      %2613 = vmatmul.mubr.f32.gmra.mrb[0].mxu0 %v2540
      %v2614 = vpop.f32.mrb[0].mxu0
      %v2615 = vadd.f32 0.0, %v2614
      %v2616 = vpop.f32.mrb[0].mxu0
      %2617 = vmatprep.mubr.f32.mxu0 0.0
      %2618 = vmatmul.mubr.f32.gmra.mrb[0].mxu0 %v2541
      %v2619 = vpop.f32.mrb[0].mxu0
      %v2620 = vadd.f32 0.0, %v2619
      %v2621 = vpop.f32.mrb[0].mxu0
      %2622 = vmatprep.mubr.f32.mxu0 0.0
      %2623 = vmatmul.mubr.f32.gmra.mrb[0].mxu0 %v2542
      %v2624 = vpop.f32.mrb[0].mxu0
      %v2625 = vadd.f32 0.0, %v2624
      %v2626 = vpop.f32.mrb[0].mxu0
      %2627 = vdwg.mxu0
      %v2628 = vrcp.pop %v2610
      %v2629 = vrcp.pop %v2615
      %v2630 = vrcp.pop %v2620
      %v2631 = vrcp.pop %v2625
      %v2632 = vmul.f32 %v2539, %v2628
      %v2633 = vmul.f32 %v2540, %v2629
      %v2634 = vmul.f32 %v2541, %v2630
      %v2635 = vmul.f32 %v2542, %v2631
      %v2637 = vrot.slane %v2458, 5
      %v2638 = vsel %vm912, %v2637, %v1499
      %v2639 = vrot.slane %v1901, 5
      %v2640 = vsel %vm912, %v1501, %v2639
      %v2641 = vrot.slane %v1902, 5
      %v2642 = vsel %vm912, %v2639, %v2641
      %v2646 = vmul.f32 %v2632, %v2638
      %v2647 = vmul.f32 %v2633, %v1502
      %v2648 = vmul.f32 %v2634, %v2640
      %v2649 = vmul.f32 %v2635, %v2642
      %v2650 = vadd.f32 %v2646, %v2647
      %v2651 = vadd.f32 %v2650, %v2648
      %v2652 = vadd.f32 %v2651, %v2649
      %v2653 = vrot.slane %v2652, 4
      %v2654 = vadd.f32 %v2652, %v2653
      %v2655 = vrot.slane %v2654, 2
      %v2656 = vadd.f32 %v2654, %v2655
      %v2657 = vrot.slane %v2656, 1
      %v2658 = vadd.f32 %v2656, %v2657
      %v2660 = vrot.slane %v206, 1
      %v2661 = vsel %vm229, %v1523, %v2660
      %v2662 = vsel %vm239, %v2661, 0
      %2664 = vmatprep.subr.mxu0 0.0
      %2665 = vmatpush1.xpose.msra.mxu0 %v244
      %2666 = vmatprep.subr.mxu0 0.0
      %2667 = vmatpush1.xpose.msra.mxu0 %v246
      %2668 = vmatprep.subr.mxu0 0.0
      %2669 = vmatpush1.xpose.msra.mxu0 %v1525
      %2670 = vmatprep.subr.mxu0 0.0
      %2671 = vmatpush1.xpose.msra.mxu0 %v2662
      %2672 = vmatprep.subr.mxu0 0.0
      %2673 = vmatpush1.xpose.msra.mxu0 0.0
      %2674 = vmatprep.subr.mxu0 0.0
      %2675 = vmatpush1.xpose.msra.mxu0 0.0
      %2676 = vmatprep.subr.mxu0 0.0
      %2677 = vmatpush1.xpose.msra.mxu0 0.0
      %2678 = vmatprep.subr.mxu0 0.0
      %2679 = vmatpush1.xpose.msra.mxu0 0.0
      %2680 = vmatprep.subr.mxu0 0.0
      %2681 = vmatpush1.xpose.msra.mxu0 0.0
      %2682 = vmatprep.subr.mxu0 0.0
      %2683 = vmatpush1.xpose.msra.mxu0 0.0
      %2684 = vmatprep.subr.mxu0 0.0
      %2685 = vmatpush1.xpose.msra.mxu0 0.0
      %2686 = vmatprep.subr.mxu0 0.0
      %2687 = vmatpush1.xpose.msra.mxu0 0.0
      %2688 = vmatprep.subr.mxu0 0.0
      %2689 = vmatpush1.xpose.msra.mxu0 0.0
      %2690 = vmatprep.subr.mxu0 0.0
      %2691 = vmatpush1.xpose.msra.mxu0 0.0
      %2692 = vmatprep.subr.mxu0 0.0
      %2693 = vmatpush1.xpose.msra.mxu0 0.0
      %2694 = vmatprep.subr.mxu0 0.0
      %2695 = vmatpush1.xpose.msra.mxu0 0.0
      %2696 = vmatprep.subr.mxu0 0.0
      %2697 = vmatpush1.xpose.msra.mxu0 0.0
      %2698 = vmatprep.subr.mxu0 0.0
      %2699 = vmatpush1.xpose.msra.mxu0 0.0
      %2700 = vmatprep.subr.mxu0 0.0
      %2701 = vmatpush1.xpose.msra.mxu0 0.0
      %2702 = vmatprep.subr.mxu0 0.0
      %2703 = vmatpush1.xpose.msra.mxu0 0.0
      %2704 = vmatprep.subr.mxu0 0.0
      %2705 = vmatpush1.xpose.msra.mxu0 0.0
      %2706 = vmatprep.subr.mxu0 0.0
      %2707 = vmatpush1.xpose.msra.mxu0 0.0
      %2708 = vmatprep.subr.mxu0 0.0
      %2709 = vmatpush1.xpose.msra.mxu0 0.0
      %2710 = vmatprep.subr.mxu0 0.0
      %2711 = vmatpush1.xpose.msra.mxu0 0.0
      %2712 = vmatprep.subr.mxu0 0.0
      %2713 = vmatpush1.xpose.msra.mxu0 0.0
      %2714 = vmatprep.subr.mxu0 0.0
      %2715 = vmatpush1.xpose.msra.mxu0 0.0
      %2716 = vmatprep.subr.mxu0 0.0
      %2717 = vmatpush1.xpose.msra.mxu0 0.0
      %2718 = vmatprep.subr.mxu0 0.0
      %2719 = vmatpush1.xpose.msra.mxu0 0.0
      %2720 = vmatprep.subr.mxu0 0.0
      %2721 = vmatpush1.xpose.msra.mxu0 0.0
      %2722 = vmatprep.subr.mxu0 0.0
      %2723 = vmatpush1.xpose.msra.mxu0 0.0
      %2724 = vmatprep.subr.mxu0 0.0
      %2725 = vmatpush1.xpose.msra.mxu0 0.0
      %2726 = vmatprep.subr.mxu0 0.0
      %2727 = vmatpush1.xpose.msra.mxu0 0.0
      %2728 = vmatprep.mubr.f32.mxu0 0.0
      %2729 = vmatmul.mubr.f32.gmra.mrb[0].mxu0 %v244
      %v2730 = vpop.f32.mrb[0].mxu0
      %v2731 = vadd.f32 0.0, %v2730
      %v2732 = vpop.f32.mrb[0].mxu0
      %2733 = vmatprep.mubr.f32.mxu0 0.0
      %2734 = vmatmul.mubr.f32.gmra.mrb[0].mxu0 %v246
      %v2735 = vpop.f32.mrb[0].mxu0
      %v2736 = vadd.f32 0.0, %v2735
      %v2737 = vpop.f32.mrb[0].mxu0
      %2738 = vmatprep.mubr.f32.mxu0 0.0
      %2739 = vmatmul.mubr.f32.gmra.mrb[0].mxu0 %v1525
      %v2740 = vpop.f32.mrb[0].mxu0
      %v2741 = vadd.f32 0.0, %v2740
      %v2742 = vpop.f32.mrb[0].mxu0
      %2743 = vmatprep.mubr.f32.mxu0 0.0
      %2744 = vmatmul.mubr.f32.gmra.mrb[0].mxu0 %v2662
      %v2745 = vpop.f32.mrb[0].mxu0
      %v2746 = vadd.f32 0.0, %v2745
      %v2747 = vpop.f32.mrb[0].mxu0
      %2748 = vdwg.mxu0
      %v2749 = vrot.slane %v206, 2
      %v2750 = vsel %vm333, %v1612, %v2749
      %v2751 = vsel %vm239, %v2750, 0
      %2753 = vmatprep.subr.mxu0 0.0
      %2754 = vmatpush1.xpose.msra.mxu0 %v347
      %2755 = vmatprep.subr.mxu0 0.0
      %2756 = vmatpush1.xpose.msra.mxu0 %v349
      %2757 = vmatprep.subr.mxu0 0.0
      %2758 = vmatpush1.xpose.msra.mxu0 %v1614
      %2759 = vmatprep.subr.mxu0 0.0
      %2760 = vmatpush1.xpose.msra.mxu0 %v2751
      %2761 = vmatprep.subr.mxu0 0.0
      %2762 = vmatpush1.xpose.msra.mxu0 0.0
      %2763 = vmatprep.subr.mxu0 0.0
      %2764 = vmatpush1.xpose.msra.mxu0 0.0
      %2765 = vmatprep.subr.mxu0 0.0
      %2766 = vmatpush1.xpose.msra.mxu0 0.0
      %2767 = vmatprep.subr.mxu0 0.0
      %2768 = vmatpush1.xpose.msra.mxu0 0.0
      %2769 = vmatprep.subr.mxu0 0.0
      %2770 = vmatpush1.xpose.msra.mxu0 0.0
      %2771 = vmatprep.subr.mxu0 0.0
      %2772 = vmatpush1.xpose.msra.mxu0 0.0
      %2773 = vmatprep.subr.mxu0 0.0
      %2774 = vmatpush1.xpose.msra.mxu0 0.0
      %2775 = vmatprep.subr.mxu0 0.0
      %2776 = vmatpush1.xpose.msra.mxu0 0.0
      %2777 = vmatprep.subr.mxu0 0.0
      %2778 = vmatpush1.xpose.msra.mxu0 0.0
      %2779 = vmatprep.subr.mxu0 0.0
      %2780 = vmatpush1.xpose.msra.mxu0 0.0
      %2781 = vmatprep.subr.mxu0 0.0
      %2782 = vmatpush1.xpose.msra.mxu0 0.0
      %2783 = vmatprep.subr.mxu0 0.0
      %2784 = vmatpush1.xpose.msra.mxu0 0.0
      %2785 = vmatprep.subr.mxu0 0.0
      %2786 = vmatpush1.xpose.msra.mxu0 0.0
      %2787 = vmatprep.subr.mxu0 0.0
      %2788 = vmatpush1.xpose.msra.mxu0 0.0
      %2789 = vmatprep.subr.mxu0 0.0
      %2790 = vmatpush1.xpose.msra.mxu0 0.0
      %2791 = vmatprep.subr.mxu0 0.0
      %2792 = vmatpush1.xpose.msra.mxu0 0.0
      %2793 = vmatprep.subr.mxu0 0.0
      %2794 = vmatpush1.xpose.msra.mxu0 0.0
      %2795 = vmatprep.subr.mxu0 0.0
      %2796 = vmatpush1.xpose.msra.mxu0 0.0
      %2797 = vmatprep.subr.mxu0 0.0
      %2798 = vmatpush1.xpose.msra.mxu0 0.0
      %2799 = vmatprep.subr.mxu0 0.0
      %2800 = vmatpush1.xpose.msra.mxu0 0.0
      %2801 = vmatprep.subr.mxu0 0.0
      %2802 = vmatpush1.xpose.msra.mxu0 0.0
      %2803 = vmatprep.subr.mxu0 0.0
      %2804 = vmatpush1.xpose.msra.mxu0 0.0
      %2805 = vmatprep.subr.mxu0 0.0
      %2806 = vmatpush1.xpose.msra.mxu0 0.0
      %2807 = vmatprep.subr.mxu0 0.0
      %2808 = vmatpush1.xpose.msra.mxu0 0.0
      %2809 = vmatprep.subr.mxu0 0.0
      %2810 = vmatpush1.xpose.msra.mxu0 0.0
      %2811 = vmatprep.subr.mxu0 0.0
      %2812 = vmatpush1.xpose.msra.mxu0 0.0
      %2813 = vmatprep.subr.mxu0 0.0
      %2814 = vmatpush1.xpose.msra.mxu0 0.0
      %2815 = vmatprep.subr.mxu0 0.0
      %2816 = vmatpush1.xpose.msra.mxu0 0.0
      %2817 = vmatprep.mubr.f32.mxu0 0.0
      %2818 = vmatmul.mubr.f32.gmra.mrb[0].mxu0 %v347
      %v2819 = vpop.f32.mrb[0].mxu0
      %v2820 = vadd.f32 0.0, %v2819
      %v2821 = vpop.f32.mrb[0].mxu0
      %2822 = vmatprep.mubr.f32.mxu0 0.0
      %2823 = vmatmul.mubr.f32.gmra.mrb[0].mxu0 %v349
      %v2824 = vpop.f32.mrb[0].mxu0
      %v2825 = vadd.f32 0.0, %v2824
      %v2826 = vpop.f32.mrb[0].mxu0
      %2827 = vmatprep.mubr.f32.mxu0 0.0
      %2828 = vmatmul.mubr.f32.gmra.mrb[0].mxu0 %v1614
      %v2829 = vpop.f32.mrb[0].mxu0
      %v2830 = vadd.f32 0.0, %v2829
      %v2831 = vpop.f32.mrb[0].mxu0
      %2832 = vmatprep.mubr.f32.mxu0 0.0
      %2833 = vmatmul.mubr.f32.gmra.mrb[0].mxu0 %v2751
      %v2834 = vpop.f32.mrb[0].mxu0
      %v2835 = vadd.f32 0.0, %v2834
      %v2836 = vpop.f32.mrb[0].mxu0
      %2837 = vdwg.mxu0
      %v2838 = vrot.slane %v206, 3
      %v2839 = vsel %vm436, %v1701, %v2838
      %v2840 = vsel %vm239, %v2839, 0
      %2842 = vmatprep.subr.mxu0 0.0
      %2843 = vmatpush1.xpose.msra.mxu0 %v450
      %2844 = vmatprep.subr.mxu0 0.0
      %2845 = vmatpush1.xpose.msra.mxu0 %v452
      %2846 = vmatprep.subr.mxu0 0.0
      %2847 = vmatpush1.xpose.msra.mxu0 %v1703
      %2848 = vmatprep.subr.mxu0 0.0
      %2849 = vmatpush1.xpose.msra.mxu0 %v2840
      %2850 = vmatprep.subr.mxu0 0.0
      %2851 = vmatpush1.xpose.msra.mxu0 0.0
      %2852 = vmatprep.subr.mxu0 0.0
      %2853 = vmatpush1.xpose.msra.mxu0 0.0
      %2854 = vmatprep.subr.mxu0 0.0
      %2855 = vmatpush1.xpose.msra.mxu0 0.0
      %2856 = vmatprep.subr.mxu0 0.0
      %2857 = vmatpush1.xpose.msra.mxu0 0.0
      %2858 = vmatprep.subr.mxu0 0.0
      %2859 = vmatpush1.xpose.msra.mxu0 0.0
      %2860 = vmatprep.subr.mxu0 0.0
      %2861 = vmatpush1.xpose.msra.mxu0 0.0
      %2862 = vmatprep.subr.mxu0 0.0
      %2863 = vmatpush1.xpose.msra.mxu0 0.0
      %2864 = vmatprep.subr.mxu0 0.0
      %2865 = vmatpush1.xpose.msra.mxu0 0.0
      %2866 = vmatprep.subr.mxu0 0.0
      %2867 = vmatpush1.xpose.msra.mxu0 0.0
      %2868 = vmatprep.subr.mxu0 0.0
      %2869 = vmatpush1.xpose.msra.mxu0 0.0
      %2870 = vmatprep.subr.mxu0 0.0
      %2871 = vmatpush1.xpose.msra.mxu0 0.0
      %2872 = vmatprep.subr.mxu0 0.0
      %2873 = vmatpush1.xpose.msra.mxu0 0.0
      %2874 = vmatprep.subr.mxu0 0.0
      %2875 = vmatpush1.xpose.msra.mxu0 0.0
      %2876 = vmatprep.subr.mxu0 0.0
      %2877 = vmatpush1.xpose.msra.mxu0 0.0
      %2878 = vmatprep.subr.mxu0 0.0
      %2879 = vmatpush1.xpose.msra.mxu0 0.0
      %2880 = vmatprep.subr.mxu0 0.0
      %2881 = vmatpush1.xpose.msra.mxu0 0.0
      %2882 = vmatprep.subr.mxu0 0.0
      %2883 = vmatpush1.xpose.msra.mxu0 0.0
      %2884 = vmatprep.subr.mxu0 0.0
      %2885 = vmatpush1.xpose.msra.mxu0 0.0
      %2886 = vmatprep.subr.mxu0 0.0
      %2887 = vmatpush1.xpose.msra.mxu0 0.0
      %2888 = vmatprep.subr.mxu0 0.0
      %2889 = vmatpush1.xpose.msra.mxu0 0.0
      %2890 = vmatprep.subr.mxu0 0.0
      %2891 = vmatpush1.xpose.msra.mxu0 0.0
      %2892 = vmatprep.subr.mxu0 0.0
      %2893 = vmatpush1.xpose.msra.mxu0 0.0
      %2894 = vmatprep.subr.mxu0 0.0
      %2895 = vmatpush1.xpose.msra.mxu0 0.0
      %2896 = vmatprep.subr.mxu0 0.0
      %2897 = vmatpush1.xpose.msra.mxu0 0.0
      %2898 = vmatprep.subr.mxu0 0.0
      %2899 = vmatpush1.xpose.msra.mxu0 0.0
      %2900 = vmatprep.subr.mxu0 0.0
      %2901 = vmatpush1.xpose.msra.mxu0 0.0
      %2902 = vmatprep.subr.mxu0 0.0
      %2903 = vmatpush1.xpose.msra.mxu0 0.0
      %2904 = vmatprep.subr.mxu0 0.0
      %2905 = vmatpush1.xpose.msra.mxu0 0.0
      %2906 = vmatprep.mubr.f32.mxu0 0.0
      %2907 = vmatmul.mubr.f32.gmra.mrb[0].mxu0 %v450
      %v2908 = vpop.f32.mrb[0].mxu0
      %v2909 = vadd.f32 0.0, %v2908
      %v2910 = vpop.f32.mrb[0].mxu0
      %2911 = vmatprep.mubr.f32.mxu0 0.0
      %2912 = vmatmul.mubr.f32.gmra.mrb[0].mxu0 %v452
      %v2913 = vpop.f32.mrb[0].mxu0
      %v2914 = vadd.f32 0.0, %v2913
      %v2915 = vpop.f32.mrb[0].mxu0
      %2916 = vmatprep.mubr.f32.mxu0 0.0
      %2917 = vmatmul.mubr.f32.gmra.mrb[0].mxu0 %v1703
      %v2918 = vpop.f32.mrb[0].mxu0
      %v2919 = vadd.f32 0.0, %v2918
      %v2920 = vpop.f32.mrb[0].mxu0
      %2921 = vmatprep.mubr.f32.mxu0 0.0
      %2922 = vmatmul.mubr.f32.gmra.mrb[0].mxu0 %v2840
      %v2923 = vpop.f32.mrb[0].mxu0
      %v2924 = vadd.f32 0.0, %v2923
      %v2925 = vpop.f32.mrb[0].mxu0
      %2926 = vdwg.mxu0
      %v2927 = vrot.slane %v206, 4
      %v2928 = vsel %vm539, %v1790, %v2927
      %v2929 = vsel %vm239, %v2928, 0
      %2931 = vmatprep.subr.mxu0 0.0
      %2932 = vmatpush1.xpose.msra.mxu0 %v553
      %2933 = vmatprep.subr.mxu0 0.0
      %2934 = vmatpush1.xpose.msra.mxu0 %v555
      %2935 = vmatprep.subr.mxu0 0.0
      %2936 = vmatpush1.xpose.msra.mxu0 %v1792
      %2937 = vmatprep.subr.mxu0 0.0
      %2938 = vmatpush1.xpose.msra.mxu0 %v2929
      %2939 = vmatprep.subr.mxu0 0.0
      %2940 = vmatpush1.xpose.msra.mxu0 0.0
      %2941 = vmatprep.subr.mxu0 0.0
      %2942 = vmatpush1.xpose.msra.mxu0 0.0
      %2943 = vmatprep.subr.mxu0 0.0
      %2944 = vmatpush1.xpose.msra.mxu0 0.0
      %2945 = vmatprep.subr.mxu0 0.0
      %2946 = vmatpush1.xpose.msra.mxu0 0.0
      %2947 = vmatprep.subr.mxu0 0.0
      %2948 = vmatpush1.xpose.msra.mxu0 0.0
      %2949 = vmatprep.subr.mxu0 0.0
      %2950 = vmatpush1.xpose.msra.mxu0 0.0
      %2951 = vmatprep.subr.mxu0 0.0
      %2952 = vmatpush1.xpose.msra.mxu0 0.0
      %2953 = vmatprep.subr.mxu0 0.0
      %2954 = vmatpush1.xpose.msra.mxu0 0.0
      %2955 = vmatprep.subr.mxu0 0.0
      %2956 = vmatpush1.xpose.msra.mxu0 0.0
      %2957 = vmatprep.subr.mxu0 0.0
      %2958 = vmatpush1.xpose.msra.mxu0 0.0
      %2959 = vmatprep.subr.mxu0 0.0
      %2960 = vmatpush1.xpose.msra.mxu0 0.0
      %2961 = vmatprep.subr.mxu0 0.0
      %2962 = vmatpush1.xpose.msra.mxu0 0.0
      %2963 = vmatprep.subr.mxu0 0.0
      %2964 = vmatpush1.xpose.msra.mxu0 0.0
      %2965 = vmatprep.subr.mxu0 0.0
      %2966 = vmatpush1.xpose.msra.mxu0 0.0
      %2967 = vmatprep.subr.mxu0 0.0
      %2968 = vmatpush1.xpose.msra.mxu0 0.0
      %2969 = vmatprep.subr.mxu0 0.0
      %2970 = vmatpush1.xpose.msra.mxu0 0.0
      %2971 = vmatprep.subr.mxu0 0.0
      %2972 = vmatpush1.xpose.msra.mxu0 0.0
      %2973 = vmatprep.subr.mxu0 0.0
      %2974 = vmatpush1.xpose.msra.mxu0 0.0
      %2975 = vmatprep.subr.mxu0 0.0
      %2976 = vmatpush1.xpose.msra.mxu0 0.0
      %2977 = vmatprep.subr.mxu0 0.0
      %2978 = vmatpush1.xpose.msra.mxu0 0.0
      %2979 = vmatprep.subr.mxu0 0.0
      %2980 = vmatpush1.xpose.msra.mxu0 0.0
      %2981 = vmatprep.subr.mxu0 0.0
      %2982 = vmatpush1.xpose.msra.mxu0 0.0
      %2983 = vmatprep.subr.mxu0 0.0
      %2984 = vmatpush1.xpose.msra.mxu0 0.0
      %2985 = vmatprep.subr.mxu0 0.0
      %2986 = vmatpush1.xpose.msra.mxu0 0.0
      %2987 = vmatprep.subr.mxu0 0.0
      %2988 = vmatpush1.xpose.msra.mxu0 0.0
      %2989 = vmatprep.subr.mxu0 0.0
      %2990 = vmatpush1.xpose.msra.mxu0 0.0
      %2991 = vmatprep.subr.mxu0 0.0
      %2992 = vmatpush1.xpose.msra.mxu0 0.0
      %2993 = vmatprep.subr.mxu0 0.0
      %2994 = vmatpush1.xpose.msra.mxu0 0.0
      %2995 = vmatprep.mubr.f32.mxu0 0.0
      %2996 = vmatmul.mubr.f32.gmra.mrb[0].mxu0 %v553
      %v2997 = vpop.f32.mrb[0].mxu0
      %v2998 = vadd.f32 0.0, %v2997
      %v2999 = vpop.f32.mrb[0].mxu0
      %3000 = vmatprep.mubr.f32.mxu0 0.0
      %3001 = vmatmul.mubr.f32.gmra.mrb[0].mxu0 %v555
      %v3002 = vpop.f32.mrb[0].mxu0
      %v3003 = vadd.f32 0.0, %v3002
      %v3004 = vpop.f32.mrb[0].mxu0
      %3005 = vmatprep.mubr.f32.mxu0 0.0
      %3006 = vmatmul.mubr.f32.gmra.mrb[0].mxu0 %v1792
      %v3007 = vpop.f32.mrb[0].mxu0
      %v3008 = vadd.f32 0.0, %v3007
      %v3009 = vpop.f32.mrb[0].mxu0
      %3010 = vmatprep.mubr.f32.mxu0 0.0
      %3011 = vmatmul.mubr.f32.gmra.mrb[0].mxu0 %v2929
      %v3012 = vpop.f32.mrb[0].mxu0
      %v3013 = vadd.f32 0.0, %v3012
      %v3014 = vpop.f32.mrb[0].mxu0
      %3015 = vdwg.mxu0
      %3016 = vrot.lane.b32.xlu0 %v2661, 32
      %v3017 = vpop.permute.xlu0 %3016
      %3018 = vrot.lane.b32.xlu0 %v2660, 32
      %v3019 = vpop.permute.xlu0 %3018
      %3022 = vrot.lane.b32.xlu0 %v2750, 64
      %v3023 = vpop.permute.xlu0 %3022
      %3024 = vrot.lane.b32.xlu0 %v2749, 64
      %v3025 = vpop.permute.xlu0 %3024
      %3028 = vrot.lane.b32.xlu0 %v2839, 96
      %v3029 = vpop.permute.xlu0 %3028
      %3030 = vrot.lane.b32.xlu0 %v2838, 96
      %v3031 = vpop.permute.xlu0 %3030
      %v3034 = vsel %vm239, %v205, %v3017
      %v3035 = vsel %vm239, %v206, %v3019
      %v3036 = vsel %vm692, %v3034, %v3023
      %v3037 = vsel %vm692, %v3035, %v3025
      %v3038 = vsel %vm698, %v3036, %v3029
      %v3039 = vsel %vm698, %v3037, %v3031
      %3044 = vrot.lane.b32.xlu0 %v2820, 32
      %v3045 = vpop.permute.xlu0 %3044
      %3046 = vrot.lane.b32.xlu0 %v2825, 32
      %v3047 = vpop.permute.xlu0 %3046
      %3048 = vrot.lane.b32.xlu0 %v2830, 32
      %v3049 = vpop.permute.xlu0 %3048
      %3050 = vrot.lane.b32.xlu0 %v2835, 32
      %v3051 = vpop.permute.xlu0 %3050
      %3060 = vrot.lane.b32.xlu0 %v2909, 64
      %v3061 = vpop.permute.xlu0 %3060
      %3062 = vrot.lane.b32.xlu0 %v2914, 64
      %v3063 = vpop.permute.xlu0 %3062
      %3064 = vrot.lane.b32.xlu0 %v2919, 64
      %v3065 = vpop.permute.xlu0 %3064
      %3066 = vrot.lane.b32.xlu0 %v2924, 64
      %v3067 = vpop.permute.xlu0 %3066
      %3076 = vrot.lane.b32.xlu0 %v2998, 96
      %v3077 = vpop.permute.xlu0 %3076
      %3078 = vrot.lane.b32.xlu0 %v3003, 96
      %v3079 = vpop.permute.xlu0 %3078
      %3080 = vrot.lane.b32.xlu0 %v3008, 96
      %v3081 = vpop.permute.xlu0 %3080
      %3082 = vrot.lane.b32.xlu0 %v3013, 96
      %v3083 = vpop.permute.xlu0 %3082
      %v3088 = vsel %vm239, %v2731, %v3045
      %v3089 = vsel %vm239, %v2736, %v3047
      %v3090 = vsel %vm239, %v2741, %v3049
      %v3091 = vsel %vm239, %v2746, %v3051
      %v3092 = vsel %vm692, %v3088, %v3061
      %v3093 = vsel %vm692, %v3089, %v3063
      %v3094 = vsel %vm692, %v3090, %v3065
      %v3095 = vsel %vm692, %v3091, %v3067
      %v3096 = vsel %vm698, %v3092, %v3077
      %v3097 = vsel %vm698, %v3093, %v3079
      %v3098 = vsel %vm698, %v3094, %v3081
      %v3099 = vsel %vm698, %v3095, %v3083
      %v3100 = vmul.f32 %v3096, %v3096
      %v3101 = vmul.f32 %v3097, %v3097
      %v3102 = vmul.f32 %v3098, %v3098
      %v3103 = vmul.f32 %v3099, %v3099
      %v3104 = vmul.f32 %v3100, %v3100
      %v3105 = vmul.f32 %v3101, %v3101
      %v3106 = vmul.f32 %v3102, %v3102
      %v3107 = vmul.f32 %v3103, %v3103
      %v3108 = vmul.f32 %v3104, %v3104
      %v3109 = vmul.f32 %v3105, %v3105
      %v3110 = vmul.f32 %v3106, %v3106
      %v3111 = vmul.f32 %v3107, %v3107
      %v3112 = vmul.f32 %v3108, %v3108
      %v3113 = vmul.f32 %v3109, %v3109
      %v3114 = vmul.f32 %v3110, %v3110
      %v3115 = vmul.f32 %v3111, %v3111
      %v3116 = vmul.f32 %v3112, %v3112
      %v3117 = vmul.f32 %v3113, %v3113
      %v3118 = vmul.f32 %v3114, %v3114
      %v3119 = vmul.f32 %v3115, %v3115
      %v3120 = vrcp.pop %v3116
      %v3121 = vrcp.pop %v3117
      %v3122 = vrcp.pop %v3118
      %v3123 = vrcp.pop %v3119
      %3124 = vmatprep.subr.mxu0 0.0
      %3125 = vmatpush1.msra.mxu0 %v208
      %3126 = vmatprep.subr.mxu0 0.0
      %3127 = vmatpush1.msra.mxu0 %v209
      %3128 = vmatprep.subr.mxu0 0.0
      %3129 = vmatpush1.msra.mxu0 %v210
      %3130 = vmatprep.subr.mxu0 0.0
      %3131 = vmatpush1.msra.mxu0 %v211
      %3132 = vmatprep.subr.mxu0 0.0
      %3133 = vmatpush1.msra.mxu0 %v212
      %3134 = vmatprep.subr.mxu0 0.0
      %3135 = vmatpush1.msra.mxu0 %v213
      %3136 = vmatprep.subr.mxu0 0.0
      %3137 = vmatpush1.msra.mxu0 %v214
      %3138 = vmatprep.subr.mxu0 0.0
      %3139 = vmatpush1.msra.mxu0 %v215
      %3140 = vmatprep.subr.mxu0 0.0
      %3141 = vmatpush1.msra.mxu0 %v216
      %3142 = vmatprep.subr.mxu0 0.0
      %3143 = vmatpush1.msra.mxu0 %v217
      %3144 = vmatprep.subr.mxu0 0.0
      %3145 = vmatpush1.msra.mxu0 %v218
      %3146 = vmatprep.subr.mxu0 0.0
      %3147 = vmatpush1.msra.mxu0 %v219
      %3148 = vmatprep.subr.mxu0 0.0
      %3149 = vmatpush1.msra.mxu0 %v220
      %3150 = vmatprep.subr.mxu0 0.0
      %3151 = vmatpush1.msra.mxu0 %v221
      %3152 = vmatprep.subr.mxu0 0.0
      %3153 = vmatpush1.msra.mxu0 %v222
      %3154 = vmatprep.subr.mxu0 0.0
      %3155 = vmatpush1.msra.mxu0 %v223
      %3156 = vmatprep.subr.mxu0 0.0
      %3157 = vmatpush1.msra.mxu0 0.0
      %3158 = vmatprep.subr.mxu0 0.0
      %3159 = vmatpush1.msra.mxu0 0.0
      %3160 = vmatprep.subr.mxu0 0.0
      %3161 = vmatpush1.msra.mxu0 0.0
      %3162 = vmatprep.subr.mxu0 0.0
      %3163 = vmatpush1.msra.mxu0 0.0
      %3164 = vmatprep.subr.mxu0 0.0
      %3165 = vmatpush1.msra.mxu0 0.0
      %3166 = vmatprep.subr.mxu0 0.0
      %3167 = vmatpush1.msra.mxu0 0.0
      %3168 = vmatprep.subr.mxu0 0.0
      %3169 = vmatpush1.msra.mxu0 0.0
      %3170 = vmatprep.subr.mxu0 0.0
      %3171 = vmatpush1.msra.mxu0 0.0
      %3172 = vmatprep.subr.mxu0 0.0
      %3173 = vmatpush1.msra.mxu0 0.0
      %3174 = vmatprep.subr.mxu0 0.0
      %3175 = vmatpush1.msra.mxu0 0.0
      %3176 = vmatprep.subr.mxu0 0.0
      %3177 = vmatpush1.msra.mxu0 0.0
      %3178 = vmatprep.subr.mxu0 0.0
      %3179 = vmatpush1.msra.mxu0 0.0
      %3180 = vmatprep.subr.mxu0 0.0
      %3181 = vmatpush1.msra.mxu0 0.0
      %3182 = vmatprep.subr.mxu0 0.0
      %3183 = vmatpush1.msra.mxu0 0.0
      %3184 = vmatprep.subr.mxu0 0.0
      %3185 = vmatpush1.msra.mxu0 0.0
      %3186 = vmatprep.subr.mxu0 0.0
      %3187 = vmatpush1.msra.mxu0 0.0
      %3188 = vmatprep.mubr.f32.mxu0 0.0
      %3189 = vmatmul.mubr.f32.gmra.mrb[0].mxu0 %v3120
      %v3190 = vpop.f32.mrb[0].mxu0
      %v3191 = vadd.f32 0.0, %v3190
      %v3192 = vpop.f32.mrb[0].mxu0
      %3193 = vmatprep.mubr.f32.mxu0 0.0
      %3194 = vmatmul.mubr.f32.gmra.mrb[0].mxu0 %v3121
      %v3195 = vpop.f32.mrb[0].mxu0
      %v3196 = vadd.f32 0.0, %v3195
      %v3197 = vpop.f32.mrb[0].mxu0
      %3198 = vmatprep.mubr.f32.mxu0 0.0
      %3199 = vmatmul.mubr.f32.gmra.mrb[0].mxu0 %v3122
      %v3200 = vpop.f32.mrb[0].mxu0
      %v3201 = vadd.f32 0.0, %v3200
      %v3202 = vpop.f32.mrb[0].mxu0
      %3203 = vmatprep.mubr.f32.mxu0 0.0
      %3204 = vmatmul.mubr.f32.gmra.mrb[0].mxu0 %v3123
      %v3205 = vpop.f32.mrb[0].mxu0
      %v3206 = vadd.f32 0.0, %v3205
      %v3207 = vpop.f32.mrb[0].mxu0
      %3208 = vdwg.mxu0
      %v3209 = vrcp.pop %v3191
      %v3210 = vrcp.pop %v3196
      %v3211 = vrcp.pop %v3201
      %v3212 = vrcp.pop %v3206
      %v3213 = vmul.f32 %v3120, %v3209
      %v3214 = vmul.f32 %v3121, %v3210
      %v3215 = vmul.f32 %v3122, %v3211
      %v3216 = vmul.f32 %v3123, %v3212
      %v3219 = vrot.slane %v3038, 1
      %v3220 = vsel %vm229, %v2082, %v3219
      %v3221 = vrot.slane %v3039, 1
      %v3222 = vsel %vm229, %v3219, %v3221
      %v3225 = vmul.f32 %v3213, %v892
      %v3226 = vmul.f32 %v3214, %v2083
      %v3227 = vmul.f32 %v3215, %v3220
      %v3228 = vmul.f32 %v3216, %v3222
      %v3229 = vadd.f32 %v3225, %v3226
      %v3230 = vadd.f32 %v3229, %v3227
      %v3231 = vadd.f32 %v3230, %v3228
      %v3232 = vrot.slane %v3231, 4
      %v3233 = vadd.f32 %v3231, %v3232
      %v3234 = vrot.slane %v3233, 2
      %v3235 = vadd.f32 %v3233, %v3234
      %v3236 = vrot.slane %v3235, 1
      %v3237 = vadd.f32 %v3235, %v3236
      %v3238 = vrot.slane %v206, 5
      %v3239 = vsel %vm912, %v2101, %v3238
      %v3240 = vsel %vm239, %v3239, 0
      %3242 = vmatprep.subr.mxu0 0.0
      %3243 = vmatpush1.xpose.msra.mxu0 %v926
      %3244 = vmatprep.subr.mxu0 0.0
      %3245 = vmatpush1.xpose.msra.mxu0 %v928
      %3246 = vmatprep.subr.mxu0 0.0
      %3247 = vmatpush1.xpose.msra.mxu0 %v2103
      %3248 = vmatprep.subr.mxu0 0.0
      %3249 = vmatpush1.xpose.msra.mxu0 %v3240
      %3250 = vmatprep.subr.mxu0 0.0
      %3251 = vmatpush1.xpose.msra.mxu0 0.0
      %3252 = vmatprep.subr.mxu0 0.0
      %3253 = vmatpush1.xpose.msra.mxu0 0.0
      %3254 = vmatprep.subr.mxu0 0.0
      %3255 = vmatpush1.xpose.msra.mxu0 0.0
      %3256 = vmatprep.subr.mxu0 0.0
      %3257 = vmatpush1.xpose.msra.mxu0 0.0
      %3258 = vmatprep.subr.mxu0 0.0
      %3259 = vmatpush1.xpose.msra.mxu0 0.0
      %3260 = vmatprep.subr.mxu0 0.0
      %3261 = vmatpush1.xpose.msra.mxu0 0.0
      %3262 = vmatprep.subr.mxu0 0.0
      %3263 = vmatpush1.xpose.msra.mxu0 0.0
      %3264 = vmatprep.subr.mxu0 0.0
      %3265 = vmatpush1.xpose.msra.mxu0 0.0
      %3266 = vmatprep.subr.mxu0 0.0
      %3267 = vmatpush1.xpose.msra.mxu0 0.0
      %3268 = vmatprep.subr.mxu0 0.0
      %3269 = vmatpush1.xpose.msra.mxu0 0.0
      %3270 = vmatprep.subr.mxu0 0.0
      %3271 = vmatpush1.xpose.msra.mxu0 0.0
      %3272 = vmatprep.subr.mxu0 0.0
      %3273 = vmatpush1.xpose.msra.mxu0 0.0
      %3274 = vmatprep.subr.mxu0 0.0
      %3275 = vmatpush1.xpose.msra.mxu0 0.0
      %3276 = vmatprep.subr.mxu0 0.0
      %3277 = vmatpush1.xpose.msra.mxu0 0.0
      %3278 = vmatprep.subr.mxu0 0.0
      %3279 = vmatpush1.xpose.msra.mxu0 0.0
      %3280 = vmatprep.subr.mxu0 0.0
      %3281 = vmatpush1.xpose.msra.mxu0 0.0
      %3282 = vmatprep.subr.mxu0 0.0
      %3283 = vmatpush1.xpose.msra.mxu0 0.0
      %3284 = vmatprep.subr.mxu0 0.0
      %3285 = vmatpush1.xpose.msra.mxu0 0.0
      %3286 = vmatprep.subr.mxu0 0.0
      %3287 = vmatpush1.xpose.msra.mxu0 0.0
      %3288 = vmatprep.subr.mxu0 0.0
      %3289 = vmatpush1.xpose.msra.mxu0 0.0
      %3290 = vmatprep.subr.mxu0 0.0
      %3291 = vmatpush1.xpose.msra.mxu0 0.0
      %3292 = vmatprep.subr.mxu0 0.0
      %3293 = vmatpush1.xpose.msra.mxu0 0.0
      %3294 = vmatprep.subr.mxu0 0.0
      %3295 = vmatpush1.xpose.msra.mxu0 0.0
      %3296 = vmatprep.subr.mxu0 0.0
      %3297 = vmatpush1.xpose.msra.mxu0 0.0
      %3298 = vmatprep.subr.mxu0 0.0
      %3299 = vmatpush1.xpose.msra.mxu0 0.0
      %3300 = vmatprep.subr.mxu0 0.0
      %3301 = vmatpush1.xpose.msra.mxu0 0.0
      %3302 = vmatprep.subr.mxu0 0.0
      %3303 = vmatpush1.xpose.msra.mxu0 0.0
      %3304 = vmatprep.subr.mxu0 0.0
      %3305 = vmatpush1.xpose.msra.mxu0 0.0
      %3306 = vmatprep.mubr.f32.mxu0 0.0
      %3307 = vmatmul.mubr.f32.gmra.mrb[0].mxu0 %v926
      %v3308 = vpop.f32.mrb[0].mxu0
      %v3309 = vadd.f32 0.0, %v3308
      %v3310 = vpop.f32.mrb[0].mxu0
      %3311 = vmatprep.mubr.f32.mxu0 0.0
      %3312 = vmatmul.mubr.f32.gmra.mrb[0].mxu0 %v928
      %v3313 = vpop.f32.mrb[0].mxu0
      %v3314 = vadd.f32 0.0, %v3313
      %v3315 = vpop.f32.mrb[0].mxu0
      %3316 = vmatprep.mubr.f32.mxu0 0.0
      %3317 = vmatmul.mubr.f32.gmra.mrb[0].mxu0 %v2103
      %v3318 = vpop.f32.mrb[0].mxu0
      %v3319 = vadd.f32 0.0, %v3318
      %v3320 = vpop.f32.mrb[0].mxu0
      %3321 = vmatprep.mubr.f32.mxu0 0.0
      %3322 = vmatmul.mubr.f32.gmra.mrb[0].mxu0 %v3240
      %v3323 = vpop.f32.mrb[0].mxu0
      %v3324 = vadd.f32 0.0, %v3323
      %v3325 = vpop.f32.mrb[0].mxu0
      %3326 = vdwg.mxu0
      %v3327 = vrot.slane %v206, 6
      %v3328 = vsel %vm1015, %v2190, %v3327
      %v3329 = vsel %vm239, %v3328, 0
      %3331 = vmatprep.subr.mxu0 0.0
      %3332 = vmatpush1.xpose.msra.mxu0 %v1029
      %3333 = vmatprep.subr.mxu0 0.0
      %3334 = vmatpush1.xpose.msra.mxu0 %v1031
      %3335 = vmatprep.subr.mxu0 0.0
      %3336 = vmatpush1.xpose.msra.mxu0 %v2192
      %3337 = vmatprep.subr.mxu0 0.0
      %3338 = vmatpush1.xpose.msra.mxu0 %v3329
      %3339 = vmatprep.subr.mxu0 0.0
      %3340 = vmatpush1.xpose.msra.mxu0 0.0
      %3341 = vmatprep.subr.mxu0 0.0
      %3342 = vmatpush1.xpose.msra.mxu0 0.0
      %3343 = vmatprep.subr.mxu0 0.0
      %3344 = vmatpush1.xpose.msra.mxu0 0.0
      %3345 = vmatprep.subr.mxu0 0.0
      %3346 = vmatpush1.xpose.msra.mxu0 0.0
      %3347 = vmatprep.subr.mxu0 0.0
      %3348 = vmatpush1.xpose.msra.mxu0 0.0
      %3349 = vmatprep.subr.mxu0 0.0
      %3350 = vmatpush1.xpose.msra.mxu0 0.0
      %3351 = vmatprep.subr.mxu0 0.0
      %3352 = vmatpush1.xpose.msra.mxu0 0.0
      %3353 = vmatprep.subr.mxu0 0.0
      %3354 = vmatpush1.xpose.msra.mxu0 0.0
      %3355 = vmatprep.subr.mxu0 0.0
      %3356 = vmatpush1.xpose.msra.mxu0 0.0
      %3357 = vmatprep.subr.mxu0 0.0
      %3358 = vmatpush1.xpose.msra.mxu0 0.0
      %3359 = vmatprep.subr.mxu0 0.0
      %3360 = vmatpush1.xpose.msra.mxu0 0.0
      %3361 = vmatprep.subr.mxu0 0.0
      %3362 = vmatpush1.xpose.msra.mxu0 0.0
      %3363 = vmatprep.subr.mxu0 0.0
      %3364 = vmatpush1.xpose.msra.mxu0 0.0
      %3365 = vmatprep.subr.mxu0 0.0
      %3366 = vmatpush1.xpose.msra.mxu0 0.0
      %3367 = vmatprep.subr.mxu0 0.0
      %3368 = vmatpush1.xpose.msra.mxu0 0.0
      %3369 = vmatprep.subr.mxu0 0.0
      %3370 = vmatpush1.xpose.msra.mxu0 0.0
      %3371 = vmatprep.subr.mxu0 0.0
      %3372 = vmatpush1.xpose.msra.mxu0 0.0
      %3373 = vmatprep.subr.mxu0 0.0
      %3374 = vmatpush1.xpose.msra.mxu0 0.0
      %3375 = vmatprep.subr.mxu0 0.0
      %3376 = vmatpush1.xpose.msra.mxu0 0.0
      %3377 = vmatprep.subr.mxu0 0.0
      %3378 = vmatpush1.xpose.msra.mxu0 0.0
      %3379 = vmatprep.subr.mxu0 0.0
      %3380 = vmatpush1.xpose.msra.mxu0 0.0
      %3381 = vmatprep.subr.mxu0 0.0
      %3382 = vmatpush1.xpose.msra.mxu0 0.0
      %3383 = vmatprep.subr.mxu0 0.0
      %3384 = vmatpush1.xpose.msra.mxu0 0.0
      %3385 = vmatprep.subr.mxu0 0.0
      %3386 = vmatpush1.xpose.msra.mxu0 0.0
      %3387 = vmatprep.subr.mxu0 0.0
      %3388 = vmatpush1.xpose.msra.mxu0 0.0
      %3389 = vmatprep.subr.mxu0 0.0
      %3390 = vmatpush1.xpose.msra.mxu0 0.0
      %3391 = vmatprep.subr.mxu0 0.0
      %3392 = vmatpush1.xpose.msra.mxu0 0.0
      %3393 = vmatprep.subr.mxu0 0.0
      %3394 = vmatpush1.xpose.msra.mxu0 0.0
      %3395 = vmatprep.mubr.f32.mxu0 0.0
      %3396 = vmatmul.mubr.f32.gmra.mrb[0].mxu0 %v1029
      %v3397 = vpop.f32.mrb[0].mxu0
      %v3398 = vadd.f32 0.0, %v3397
      %v3399 = vpop.f32.mrb[0].mxu0
      %3400 = vmatprep.mubr.f32.mxu0 0.0
      %3401 = vmatmul.mubr.f32.gmra.mrb[0].mxu0 %v1031
      %v3402 = vpop.f32.mrb[0].mxu0
      %v3403 = vadd.f32 0.0, %v3402
      %v3404 = vpop.f32.mrb[0].mxu0
      %3405 = vmatprep.mubr.f32.mxu0 0.0
      %3406 = vmatmul.mubr.f32.gmra.mrb[0].mxu0 %v2192
      %v3407 = vpop.f32.mrb[0].mxu0
      %v3408 = vadd.f32 0.0, %v3407
      %v3409 = vpop.f32.mrb[0].mxu0
      %3410 = vmatprep.mubr.f32.mxu0 0.0
      %3411 = vmatmul.mubr.f32.gmra.mrb[0].mxu0 %v3329
      %v3412 = vpop.f32.mrb[0].mxu0
      %v3413 = vadd.f32 0.0, %v3412
      %v3414 = vpop.f32.mrb[0].mxu0
      %3415 = vdwg.mxu0
      %v3416 = vrot.slane %v206, 7
      %v3417 = vsel %vm1118, %v2279, %v3416
      %v3418 = vsel %vm239, %v3417, 0
      %3420 = vmatprep.subr.mxu0 0.0
      %3421 = vmatpush1.xpose.msra.mxu0 %v1132
      %3422 = vmatprep.subr.mxu0 0.0
      %3423 = vmatpush1.xpose.msra.mxu0 %v1134
      %3424 = vmatprep.subr.mxu0 0.0
      %3425 = vmatpush1.xpose.msra.mxu0 %v2281
      %3426 = vmatprep.subr.mxu0 0.0
      %3427 = vmatpush1.xpose.msra.mxu0 %v3418
      %3428 = vmatprep.subr.mxu0 0.0
      %3429 = vmatpush1.xpose.msra.mxu0 0.0
      %3430 = vmatprep.subr.mxu0 0.0
      %3431 = vmatpush1.xpose.msra.mxu0 0.0
      %3432 = vmatprep.subr.mxu0 0.0
      %3433 = vmatpush1.xpose.msra.mxu0 0.0
      %3434 = vmatprep.subr.mxu0 0.0
      %3435 = vmatpush1.xpose.msra.mxu0 0.0
      %3436 = vmatprep.subr.mxu0 0.0
      %3437 = vmatpush1.xpose.msra.mxu0 0.0
      %3438 = vmatprep.subr.mxu0 0.0
      %3439 = vmatpush1.xpose.msra.mxu0 0.0
      %3440 = vmatprep.subr.mxu0 0.0
      %3441 = vmatpush1.xpose.msra.mxu0 0.0
      %3442 = vmatprep.subr.mxu0 0.0
      %3443 = vmatpush1.xpose.msra.mxu0 0.0
      %3444 = vmatprep.subr.mxu0 0.0
      %3445 = vmatpush1.xpose.msra.mxu0 0.0
      %3446 = vmatprep.subr.mxu0 0.0
      %3447 = vmatpush1.xpose.msra.mxu0 0.0
      %3448 = vmatprep.subr.mxu0 0.0
      %3449 = vmatpush1.xpose.msra.mxu0 0.0
      %3450 = vmatprep.subr.mxu0 0.0
      %3451 = vmatpush1.xpose.msra.mxu0 0.0
      %3452 = vmatprep.subr.mxu0 0.0
      %3453 = vmatpush1.xpose.msra.mxu0 0.0
      %3454 = vmatprep.subr.mxu0 0.0
      %3455 = vmatpush1.xpose.msra.mxu0 0.0
      %3456 = vmatprep.subr.mxu0 0.0
      %3457 = vmatpush1.xpose.msra.mxu0 0.0
      %3458 = vmatprep.subr.mxu0 0.0
      %3459 = vmatpush1.xpose.msra.mxu0 0.0
      %3460 = vmatprep.subr.mxu0 0.0
      %3461 = vmatpush1.xpose.msra.mxu0 0.0
      %3462 = vmatprep.subr.mxu0 0.0
      %3463 = vmatpush1.xpose.msra.mxu0 0.0
      %3464 = vmatprep.subr.mxu0 0.0
      %3465 = vmatpush1.xpose.msra.mxu0 0.0
      %3466 = vmatprep.subr.mxu0 0.0
      %3467 = vmatpush1.xpose.msra.mxu0 0.0
      %3468 = vmatprep.subr.mxu0 0.0
      %3469 = vmatpush1.xpose.msra.mxu0 0.0
      %3470 = vmatprep.subr.mxu0 0.0
      %3471 = vmatpush1.xpose.msra.mxu0 0.0
      %3472 = vmatprep.subr.mxu0 0.0
      %3473 = vmatpush1.xpose.msra.mxu0 0.0
      %3474 = vmatprep.subr.mxu0 0.0
      %3475 = vmatpush1.xpose.msra.mxu0 0.0
      %3476 = vmatprep.subr.mxu0 0.0
      %3477 = vmatpush1.xpose.msra.mxu0 0.0
      %3478 = vmatprep.subr.mxu0 0.0
      %3479 = vmatpush1.xpose.msra.mxu0 0.0
      %3480 = vmatprep.subr.mxu0 0.0
      %3481 = vmatpush1.xpose.msra.mxu0 0.0
      %3482 = vmatprep.subr.mxu0 0.0
      %3483 = vmatpush1.xpose.msra.mxu0 0.0
      %3484 = vmatprep.mubr.f32.mxu0 0.0
      %3485 = vmatmul.mubr.f32.gmra.mrb[0].mxu0 %v1132
      %v3486 = vpop.f32.mrb[0].mxu0
      %v3487 = vadd.f32 0.0, %v3486
      %v3488 = vpop.f32.mrb[0].mxu0
      %3489 = vmatprep.mubr.f32.mxu0 0.0
      %3490 = vmatmul.mubr.f32.gmra.mrb[0].mxu0 %v1134
      %v3491 = vpop.f32.mrb[0].mxu0
      %v3492 = vadd.f32 0.0, %v3491
      %v3493 = vpop.f32.mrb[0].mxu0
      %3494 = vmatprep.mubr.f32.mxu0 0.0
      %3495 = vmatmul.mubr.f32.gmra.mrb[0].mxu0 %v2281
      %v3496 = vpop.f32.mrb[0].mxu0
      %v3497 = vadd.f32 0.0, %v3496
      %v3498 = vpop.f32.mrb[0].mxu0
      %3499 = vmatprep.mubr.f32.mxu0 0.0
      %3500 = vmatmul.mubr.f32.gmra.mrb[0].mxu0 %v3418
      %v3501 = vpop.f32.mrb[0].mxu0
      %v3502 = vadd.f32 0.0, %v3501
      %v3503 = vpop.f32.mrb[0].mxu0
      %3504 = vdwg.mxu0
      %v3505 = vsel %vm239, %v206, 0
      %3507 = vmatprep.subr.mxu0 0.0
      %3508 = vmatpush1.xpose.msra.mxu0 %v1225
      %3509 = vmatprep.subr.mxu0 0.0
      %3510 = vmatpush1.xpose.msra.mxu0 %v1227
      %3511 = vmatprep.subr.mxu0 0.0
      %3512 = vmatpush1.xpose.msra.mxu0 %v2368
      %3513 = vmatprep.subr.mxu0 0.0
      %3514 = vmatpush1.xpose.msra.mxu0 %v3505
      %3515 = vmatprep.subr.mxu0 0.0
      %3516 = vmatpush1.xpose.msra.mxu0 0.0
      %3517 = vmatprep.subr.mxu0 0.0
      %3518 = vmatpush1.xpose.msra.mxu0 0.0
      %3519 = vmatprep.subr.mxu0 0.0
      %3520 = vmatpush1.xpose.msra.mxu0 0.0
      %3521 = vmatprep.subr.mxu0 0.0
      %3522 = vmatpush1.xpose.msra.mxu0 0.0
      %3523 = vmatprep.subr.mxu0 0.0
      %3524 = vmatpush1.xpose.msra.mxu0 0.0
      %3525 = vmatprep.subr.mxu0 0.0
      %3526 = vmatpush1.xpose.msra.mxu0 0.0
      %3527 = vmatprep.subr.mxu0 0.0
      %3528 = vmatpush1.xpose.msra.mxu0 0.0
      %3529 = vmatprep.subr.mxu0 0.0
      %3530 = vmatpush1.xpose.msra.mxu0 0.0
      %3531 = vmatprep.subr.mxu0 0.0
      %3532 = vmatpush1.xpose.msra.mxu0 0.0
      %3533 = vmatprep.subr.mxu0 0.0
      %3534 = vmatpush1.xpose.msra.mxu0 0.0
      %3535 = vmatprep.subr.mxu0 0.0
      %3536 = vmatpush1.xpose.msra.mxu0 0.0
      %3537 = vmatprep.subr.mxu0 0.0
      %3538 = vmatpush1.xpose.msra.mxu0 0.0
      %3539 = vmatprep.subr.mxu0 0.0
      %3540 = vmatpush1.xpose.msra.mxu0 0.0
      %3541 = vmatprep.subr.mxu0 0.0
      %3542 = vmatpush1.xpose.msra.mxu0 0.0
      %3543 = vmatprep.subr.mxu0 0.0
      %3544 = vmatpush1.xpose.msra.mxu0 0.0
      %3545 = vmatprep.subr.mxu0 0.0
      %3546 = vmatpush1.xpose.msra.mxu0 0.0
      %3547 = vmatprep.subr.mxu0 0.0
      %3548 = vmatpush1.xpose.msra.mxu0 0.0
      %3549 = vmatprep.subr.mxu0 0.0
      %3550 = vmatpush1.xpose.msra.mxu0 0.0
      %3551 = vmatprep.subr.mxu0 0.0
      %3552 = vmatpush1.xpose.msra.mxu0 0.0
      %3553 = vmatprep.subr.mxu0 0.0
      %3554 = vmatpush1.xpose.msra.mxu0 0.0
      %3555 = vmatprep.subr.mxu0 0.0
      %3556 = vmatpush1.xpose.msra.mxu0 0.0
      %3557 = vmatprep.subr.mxu0 0.0
      %3558 = vmatpush1.xpose.msra.mxu0 0.0
      %3559 = vmatprep.subr.mxu0 0.0
      %3560 = vmatpush1.xpose.msra.mxu0 0.0
      %3561 = vmatprep.subr.mxu0 0.0
      %3562 = vmatpush1.xpose.msra.mxu0 0.0
      %3563 = vmatprep.subr.mxu0 0.0
      %3564 = vmatpush1.xpose.msra.mxu0 0.0
      %3565 = vmatprep.subr.mxu0 0.0
      %3566 = vmatpush1.xpose.msra.mxu0 0.0
      %3567 = vmatprep.subr.mxu0 0.0
      %3568 = vmatpush1.xpose.msra.mxu0 0.0
      %3569 = vmatprep.subr.mxu0 0.0
      %3570 = vmatpush1.xpose.msra.mxu0 0.0
      %3571 = vmatprep.mubr.f32.mxu0 0.0
      %3572 = vmatmul.mubr.f32.gmra.mrb[0].mxu0 %v1225
      %v3573 = vpop.f32.mrb[0].mxu0
      %v3574 = vadd.f32 0.0, %v3573
      %v3575 = vpop.f32.mrb[0].mxu0
      %3576 = vmatprep.mubr.f32.mxu0 0.0
      %3577 = vmatmul.mubr.f32.gmra.mrb[0].mxu0 %v1227
      %v3578 = vpop.f32.mrb[0].mxu0
      %v3579 = vadd.f32 0.0, %v3578
      %v3580 = vpop.f32.mrb[0].mxu0
      %3581 = vmatprep.mubr.f32.mxu0 0.0
      %3582 = vmatmul.mubr.f32.gmra.mrb[0].mxu0 %v2368
      %v3583 = vpop.f32.mrb[0].mxu0
      %v3584 = vadd.f32 0.0, %v3583
      %v3585 = vpop.f32.mrb[0].mxu0
      %3586 = vmatprep.mubr.f32.mxu0 0.0
      %3587 = vmatmul.mubr.f32.gmra.mrb[0].mxu0 %v3505
      %v3588 = vpop.f32.mrb[0].mxu0
      %v3589 = vadd.f32 0.0, %v3588
      %v3590 = vpop.f32.mrb[0].mxu0
      %3591 = vdwg.mxu0
      %3592 = vrot.lane.b32.xlu0 %v442, 96
      %v3593 = vpop.permute.xlu0 %3592
      %v3595 = vsel %vm698, %v695, %v3593
      %3600 = vrot.lane.b32.xlu0 %v3398, 32
      %v3601 = vpop.permute.xlu0 %3600
      %3602 = vrot.lane.b32.xlu0 %v3403, 32
      %v3603 = vpop.permute.xlu0 %3602
      %3604 = vrot.lane.b32.xlu0 %v3408, 32
      %v3605 = vpop.permute.xlu0 %3604
      %3606 = vrot.lane.b32.xlu0 %v3413, 32
      %v3607 = vpop.permute.xlu0 %3606
      %3616 = vrot.lane.b32.xlu0 %v3487, 64
      %v3617 = vpop.permute.xlu0 %3616
      %3618 = vrot.lane.b32.xlu0 %v3492, 64
      %v3619 = vpop.permute.xlu0 %3618
      %3620 = vrot.lane.b32.xlu0 %v3497, 64
      %v3621 = vpop.permute.xlu0 %3620
      %3622 = vrot.lane.b32.xlu0 %v3502, 64
      %v3623 = vpop.permute.xlu0 %3622
      %3632 = vrot.lane.b32.xlu0 %v3574, 96
      %v3633 = vpop.permute.xlu0 %3632
      %3634 = vrot.lane.b32.xlu0 %v3579, 96
      %v3635 = vpop.permute.xlu0 %3634
      %3636 = vrot.lane.b32.xlu0 %v3584, 96
      %v3637 = vpop.permute.xlu0 %3636
      %3638 = vrot.lane.b32.xlu0 %v3589, 96
      %v3639 = vpop.permute.xlu0 %3638
      %v3644 = vsel %vm239, %v3309, %v3601
      %v3645 = vsel %vm239, %v3314, %v3603
      %v3646 = vsel %vm239, %v3319, %v3605
      %v3647 = vsel %vm239, %v3324, %v3607
      %v3648 = vsel %vm692, %v3644, %v3617
      %v3649 = vsel %vm692, %v3645, %v3619
      %v3650 = vsel %vm692, %v3646, %v3621
      %v3651 = vsel %vm692, %v3647, %v3623
      %v3652 = vsel %vm698, %v3648, %v3633
      %v3653 = vsel %vm698, %v3649, %v3635
      %v3654 = vsel %vm698, %v3650, %v3637
      %v3655 = vsel %vm698, %v3651, %v3639
      %v3656 = vmul.f32 %v3652, %v3652
      %v3657 = vmul.f32 %v3653, %v3653
      %v3658 = vmul.f32 %v3654, %v3654
      %v3659 = vmul.f32 %v3655, %v3655
      %v3660 = vmul.f32 %v3656, %v3656
      %v3661 = vmul.f32 %v3657, %v3657
      %v3662 = vmul.f32 %v3658, %v3658
      %v3663 = vmul.f32 %v3659, %v3659
      %v3664 = vmul.f32 %v3660, %v3660
      %v3665 = vmul.f32 %v3661, %v3661
      %v3666 = vmul.f32 %v3662, %v3662
      %v3667 = vmul.f32 %v3663, %v3663
      %v3668 = vmul.f32 %v3664, %v3664
      %v3669 = vmul.f32 %v3665, %v3665
      %v3670 = vmul.f32 %v3666, %v3666
      %v3671 = vmul.f32 %v3667, %v3667
      %v3672 = vmul.f32 %v3668, %v3668
      %v3673 = vmul.f32 %v3669, %v3669
      %v3674 = vmul.f32 %v3670, %v3670
      %v3675 = vmul.f32 %v3671, %v3671
      %v3676 = vrcp.pop %v3672
      %v3677 = vrcp.pop %v3673
      %v3678 = vrcp.pop %v3674
      %v3679 = vrcp.pop %v3675
      %3680 = vmatprep.subr.mxu0 0.0
      %3681 = vmatpush1.msra.mxu0 %v208
      %3682 = vmatprep.subr.mxu0 0.0
      %3683 = vmatpush1.msra.mxu0 %v209
      %3684 = vmatprep.subr.mxu0 0.0
      %3685 = vmatpush1.msra.mxu0 %v210
      %3686 = vmatprep.subr.mxu0 0.0
      %3687 = vmatpush1.msra.mxu0 %v211
      %3688 = vmatprep.subr.mxu0 0.0
      %3689 = vmatpush1.msra.mxu0 %v212
      %3690 = vmatprep.subr.mxu0 0.0
      %3691 = vmatpush1.msra.mxu0 %v213
      %3692 = vmatprep.subr.mxu0 0.0
      %3693 = vmatpush1.msra.mxu0 %v214
      %3694 = vmatprep.subr.mxu0 0.0
      %3695 = vmatpush1.msra.mxu0 %v215
      %3696 = vmatprep.subr.mxu0 0.0
      %3697 = vmatpush1.msra.mxu0 %v216
      %3698 = vmatprep.subr.mxu0 0.0
      %3699 = vmatpush1.msra.mxu0 %v217
      %3700 = vmatprep.subr.mxu0 0.0
      %3701 = vmatpush1.msra.mxu0 %v218
      %3702 = vmatprep.subr.mxu0 0.0
      %3703 = vmatpush1.msra.mxu0 %v219
      %3704 = vmatprep.subr.mxu0 0.0
      %3705 = vmatpush1.msra.mxu0 %v220
      %3706 = vmatprep.subr.mxu0 0.0
      %3707 = vmatpush1.msra.mxu0 %v221
      %3708 = vmatprep.subr.mxu0 0.0
      %3709 = vmatpush1.msra.mxu0 %v222
      %3710 = vmatprep.subr.mxu0 0.0
      %3711 = vmatpush1.msra.mxu0 %v223
      %3712 = vmatprep.subr.mxu0 0.0
      %3713 = vmatpush1.msra.mxu0 0.0
      %3714 = vmatprep.subr.mxu0 0.0
      %3715 = vmatpush1.msra.mxu0 0.0
      %3716 = vmatprep.subr.mxu0 0.0
      %3717 = vmatpush1.msra.mxu0 0.0
      %3718 = vmatprep.subr.mxu0 0.0
      %3719 = vmatpush1.msra.mxu0 0.0
      %3720 = vmatprep.subr.mxu0 0.0
      %3721 = vmatpush1.msra.mxu0 0.0
      %3722 = vmatprep.subr.mxu0 0.0
      %3723 = vmatpush1.msra.mxu0 0.0
      %3724 = vmatprep.subr.mxu0 0.0
      %3725 = vmatpush1.msra.mxu0 0.0
      %3726 = vmatprep.subr.mxu0 0.0
      %3727 = vmatpush1.msra.mxu0 0.0
      %3728 = vmatprep.subr.mxu0 0.0
      %3729 = vmatpush1.msra.mxu0 0.0
      %3730 = vmatprep.subr.mxu0 0.0
      %3731 = vmatpush1.msra.mxu0 0.0
      %3732 = vmatprep.subr.mxu0 0.0
      %3733 = vmatpush1.msra.mxu0 0.0
      %3734 = vmatprep.subr.mxu0 0.0
      %3735 = vmatpush1.msra.mxu0 0.0
      %3736 = vmatprep.subr.mxu0 0.0
      %3737 = vmatpush1.msra.mxu0 0.0
      %3738 = vmatprep.subr.mxu0 0.0
      %3739 = vmatpush1.msra.mxu0 0.0
      %3740 = vmatprep.subr.mxu0 0.0
      %3741 = vmatpush1.msra.mxu0 0.0
      %3742 = vmatprep.subr.mxu0 0.0
      %3743 = vmatpush1.msra.mxu0 0.0
      %3744 = vmatprep.mubr.f32.mxu0 0.0
      %3745 = vmatmul.mubr.f32.gmra.mrb[0].mxu0 %v3676
      %v3746 = vpop.f32.mrb[0].mxu0
      %v3747 = vadd.f32 0.0, %v3746
      %v3748 = vpop.f32.mrb[0].mxu0
      %3749 = vmatprep.mubr.f32.mxu0 0.0
      %3750 = vmatmul.mubr.f32.gmra.mrb[0].mxu0 %v3677
      %v3751 = vpop.f32.mrb[0].mxu0
      %v3752 = vadd.f32 0.0, %v3751
      %v3753 = vpop.f32.mrb[0].mxu0
      %3754 = vmatprep.mubr.f32.mxu0 0.0
      %3755 = vmatmul.mubr.f32.gmra.mrb[0].mxu0 %v3678
      %v3756 = vpop.f32.mrb[0].mxu0
      %v3757 = vadd.f32 0.0, %v3756
      %v3758 = vpop.f32.mrb[0].mxu0
      %3759 = vmatprep.mubr.f32.mxu0 0.0
      %3760 = vmatmul.mubr.f32.gmra.mrb[0].mxu0 %v3679
      %v3761 = vpop.f32.mrb[0].mxu0
      %v3762 = vadd.f32 0.0, %v3761
      %v3763 = vpop.f32.mrb[0].mxu0
      %3764 = vdwg.mxu0
      %v3765 = vrcp.pop %v3747
      %v3766 = vrcp.pop %v3752
      %v3767 = vrcp.pop %v3757
      %v3768 = vrcp.pop %v3762
      %v3769 = vmul.f32 %v3676, %v3765
      %v3770 = vmul.f32 %v3677, %v3766
      %v3771 = vmul.f32 %v3678, %v3767
      %v3772 = vmul.f32 %v3679, %v3768
      %v3774 = vrot.slane %v3595, 5
      %v3775 = vsel %vm912, %v3774, %v1501
      %v3776 = vrot.slane %v3038, 5
      %v3777 = vsel %vm912, %v2639, %v3776
      %v3778 = vrot.slane %v3039, 5
      %v3779 = vsel %vm912, %v3776, %v3778
      %v3783 = vmul.f32 %v3769, %v3775
      %v3784 = vmul.f32 %v3770, %v2640
      %v3785 = vmul.f32 %v3771, %v3777
      %v3786 = vmul.f32 %v3772, %v3779
      %v3787 = vadd.f32 %v3783, %v3784
      %v3788 = vadd.f32 %v3787, %v3785
      %v3789 = vadd.f32 %v3788, %v3786
      %v3790 = vrot.slane %v3789, 4
      %v3791 = vadd.f32 %v3789, %v3790
      %v3792 = vrot.slane %v3791, 2
      %v3793 = vadd.f32 %v3791, %v3792
      %v3794 = vrot.slane %v3793, 1
      %v3795 = vadd.f32 %v3793, %v3794
      %v3797 = vrot.slane %v207, 1
      %v3798 = vsel %vm229, %v2660, %v3797
      %v3799 = vsel %vm239, %v3798, 0
      %3801 = vmatprep.subr.mxu0 0.0
      %3802 = vmatpush1.xpose.msra.mxu0 %v246
      %3803 = vmatprep.subr.mxu0 0.0
      %3804 = vmatpush1.xpose.msra.mxu0 %v1525
      %3805 = vmatprep.subr.mxu0 0.0
      %3806 = vmatpush1.xpose.msra.mxu0 %v2662
      %3807 = vmatprep.subr.mxu0 0.0
      %3808 = vmatpush1.xpose.msra.mxu0 %v3799
      %3809 = vmatprep.subr.mxu0 0.0
      %3810 = vmatpush1.xpose.msra.mxu0 0.0
      %3811 = vmatprep.subr.mxu0 0.0
      %3812 = vmatpush1.xpose.msra.mxu0 0.0
      %3813 = vmatprep.subr.mxu0 0.0
      %3814 = vmatpush1.xpose.msra.mxu0 0.0
      %3815 = vmatprep.subr.mxu0 0.0
      %3816 = vmatpush1.xpose.msra.mxu0 0.0
      %3817 = vmatprep.subr.mxu0 0.0
      %3818 = vmatpush1.xpose.msra.mxu0 0.0
      %3819 = vmatprep.subr.mxu0 0.0
      %3820 = vmatpush1.xpose.msra.mxu0 0.0
      %3821 = vmatprep.subr.mxu0 0.0
      %3822 = vmatpush1.xpose.msra.mxu0 0.0
      %3823 = vmatprep.subr.mxu0 0.0
      %3824 = vmatpush1.xpose.msra.mxu0 0.0
      %3825 = vmatprep.subr.mxu0 0.0
      %3826 = vmatpush1.xpose.msra.mxu0 0.0
      %3827 = vmatprep.subr.mxu0 0.0
      %3828 = vmatpush1.xpose.msra.mxu0 0.0
      %3829 = vmatprep.subr.mxu0 0.0
      %3830 = vmatpush1.xpose.msra.mxu0 0.0
      %3831 = vmatprep.subr.mxu0 0.0
      %3832 = vmatpush1.xpose.msra.mxu0 0.0
      %3833 = vmatprep.subr.mxu0 0.0
      %3834 = vmatpush1.xpose.msra.mxu0 0.0
      %3835 = vmatprep.subr.mxu0 0.0
      %3836 = vmatpush1.xpose.msra.mxu0 0.0
      %3837 = vmatprep.subr.mxu0 0.0
      %3838 = vmatpush1.xpose.msra.mxu0 0.0
      %3839 = vmatprep.subr.mxu0 0.0
      %3840 = vmatpush1.xpose.msra.mxu0 0.0
      %3841 = vmatprep.subr.mxu0 0.0
      %3842 = vmatpush1.xpose.msra.mxu0 0.0
      %3843 = vmatprep.subr.mxu0 0.0
      %3844 = vmatpush1.xpose.msra.mxu0 0.0
      %3845 = vmatprep.subr.mxu0 0.0
      %3846 = vmatpush1.xpose.msra.mxu0 0.0
      %3847 = vmatprep.subr.mxu0 0.0
      %3848 = vmatpush1.xpose.msra.mxu0 0.0
      %3849 = vmatprep.subr.mxu0 0.0
      %3850 = vmatpush1.xpose.msra.mxu0 0.0
      %3851 = vmatprep.subr.mxu0 0.0
      %3852 = vmatpush1.xpose.msra.mxu0 0.0
      %3853 = vmatprep.subr.mxu0 0.0
      %3854 = vmatpush1.xpose.msra.mxu0 0.0
      %3855 = vmatprep.subr.mxu0 0.0
      %3856 = vmatpush1.xpose.msra.mxu0 0.0
      %3857 = vmatprep.subr.mxu0 0.0
      %3858 = vmatpush1.xpose.msra.mxu0 0.0
      %3859 = vmatprep.subr.mxu0 0.0
      %3860 = vmatpush1.xpose.msra.mxu0 0.0
      %3861 = vmatprep.subr.mxu0 0.0
      %3862 = vmatpush1.xpose.msra.mxu0 0.0
      %3863 = vmatprep.subr.mxu0 0.0
      %3864 = vmatpush1.xpose.msra.mxu0 0.0
      %3865 = vmatprep.mubr.f32.mxu0 0.0
      %3866 = vmatmul.mubr.f32.gmra.mrb[0].mxu0 %v246
      %v3867 = vpop.f32.mrb[0].mxu0
      %v3868 = vadd.f32 0.0, %v3867
      %v3869 = vpop.f32.mrb[0].mxu0
      %3870 = vmatprep.mubr.f32.mxu0 0.0
      %3871 = vmatmul.mubr.f32.gmra.mrb[0].mxu0 %v1525
      %v3872 = vpop.f32.mrb[0].mxu0
      %v3873 = vadd.f32 0.0, %v3872
      %v3874 = vpop.f32.mrb[0].mxu0
      %3875 = vmatprep.mubr.f32.mxu0 0.0
      %3876 = vmatmul.mubr.f32.gmra.mrb[0].mxu0 %v2662
      %v3877 = vpop.f32.mrb[0].mxu0
      %v3878 = vadd.f32 0.0, %v3877
      %v3879 = vpop.f32.mrb[0].mxu0
      %3880 = vmatprep.mubr.f32.mxu0 0.0
      %3881 = vmatmul.mubr.f32.gmra.mrb[0].mxu0 %v3799
      %v3882 = vpop.f32.mrb[0].mxu0
      %v3883 = vadd.f32 0.0, %v3882
      %v3884 = vpop.f32.mrb[0].mxu0
      %3885 = vdwg.mxu0
      %v3886 = vrot.slane %v207, 2
      %v3887 = vsel %vm333, %v2749, %v3886
      %v3888 = vsel %vm239, %v3887, 0
      %3890 = vmatprep.subr.mxu0 0.0
      %3891 = vmatpush1.xpose.msra.mxu0 %v349
      %3892 = vmatprep.subr.mxu0 0.0
      %3893 = vmatpush1.xpose.msra.mxu0 %v1614
      %3894 = vmatprep.subr.mxu0 0.0
      %3895 = vmatpush1.xpose.msra.mxu0 %v2751
      %3896 = vmatprep.subr.mxu0 0.0
      %3897 = vmatpush1.xpose.msra.mxu0 %v3888
      %3898 = vmatprep.subr.mxu0 0.0
      %3899 = vmatpush1.xpose.msra.mxu0 0.0
      %3900 = vmatprep.subr.mxu0 0.0
      %3901 = vmatpush1.xpose.msra.mxu0 0.0
      %3902 = vmatprep.subr.mxu0 0.0
      %3903 = vmatpush1.xpose.msra.mxu0 0.0
      %3904 = vmatprep.subr.mxu0 0.0
      %3905 = vmatpush1.xpose.msra.mxu0 0.0
      %3906 = vmatprep.subr.mxu0 0.0
      %3907 = vmatpush1.xpose.msra.mxu0 0.0
      %3908 = vmatprep.subr.mxu0 0.0
      %3909 = vmatpush1.xpose.msra.mxu0 0.0
      %3910 = vmatprep.subr.mxu0 0.0
      %3911 = vmatpush1.xpose.msra.mxu0 0.0
      %3912 = vmatprep.subr.mxu0 0.0
      %3913 = vmatpush1.xpose.msra.mxu0 0.0
      %3914 = vmatprep.subr.mxu0 0.0
      %3915 = vmatpush1.xpose.msra.mxu0 0.0
      %3916 = vmatprep.subr.mxu0 0.0
      %3917 = vmatpush1.xpose.msra.mxu0 0.0
      %3918 = vmatprep.subr.mxu0 0.0
      %3919 = vmatpush1.xpose.msra.mxu0 0.0
      %3920 = vmatprep.subr.mxu0 0.0
      %3921 = vmatpush1.xpose.msra.mxu0 0.0
      %3922 = vmatprep.subr.mxu0 0.0
      %3923 = vmatpush1.xpose.msra.mxu0 0.0
      %3924 = vmatprep.subr.mxu0 0.0
      %3925 = vmatpush1.xpose.msra.mxu0 0.0
      %3926 = vmatprep.subr.mxu0 0.0
      %3927 = vmatpush1.xpose.msra.mxu0 0.0
      %3928 = vmatprep.subr.mxu0 0.0
      %3929 = vmatpush1.xpose.msra.mxu0 0.0
      %3930 = vmatprep.subr.mxu0 0.0
      %3931 = vmatpush1.xpose.msra.mxu0 0.0
      %3932 = vmatprep.subr.mxu0 0.0
      %3933 = vmatpush1.xpose.msra.mxu0 0.0
      %3934 = vmatprep.subr.mxu0 0.0
      %3935 = vmatpush1.xpose.msra.mxu0 0.0
      %3936 = vmatprep.subr.mxu0 0.0
      %3937 = vmatpush1.xpose.msra.mxu0 0.0
      %3938 = vmatprep.subr.mxu0 0.0
      %3939 = vmatpush1.xpose.msra.mxu0 0.0
      %3940 = vmatprep.subr.mxu0 0.0
      %3941 = vmatpush1.xpose.msra.mxu0 0.0
      %3942 = vmatprep.subr.mxu0 0.0
      %3943 = vmatpush1.xpose.msra.mxu0 0.0
      %3944 = vmatprep.subr.mxu0 0.0
      %3945 = vmatpush1.xpose.msra.mxu0 0.0
      %3946 = vmatprep.subr.mxu0 0.0
      %3947 = vmatpush1.xpose.msra.mxu0 0.0
      %3948 = vmatprep.subr.mxu0 0.0
      %3949 = vmatpush1.xpose.msra.mxu0 0.0
      %3950 = vmatprep.subr.mxu0 0.0
      %3951 = vmatpush1.xpose.msra.mxu0 0.0
      %3952 = vmatprep.subr.mxu0 0.0
      %3953 = vmatpush1.xpose.msra.mxu0 0.0
      %3954 = vmatprep.mubr.f32.mxu0 0.0
      %3955 = vmatmul.mubr.f32.gmra.mrb[0].mxu0 %v349
      %v3956 = vpop.f32.mrb[0].mxu0
      %v3957 = vadd.f32 0.0, %v3956
      %v3958 = vpop.f32.mrb[0].mxu0
      %3959 = vmatprep.mubr.f32.mxu0 0.0
      %3960 = vmatmul.mubr.f32.gmra.mrb[0].mxu0 %v1614
      %v3961 = vpop.f32.mrb[0].mxu0
      %v3962 = vadd.f32 0.0, %v3961
      %v3963 = vpop.f32.mrb[0].mxu0
      %3964 = vmatprep.mubr.f32.mxu0 0.0
      %3965 = vmatmul.mubr.f32.gmra.mrb[0].mxu0 %v2751
      %v3966 = vpop.f32.mrb[0].mxu0
      %v3967 = vadd.f32 0.0, %v3966
      %v3968 = vpop.f32.mrb[0].mxu0
      %3969 = vmatprep.mubr.f32.mxu0 0.0
      %3970 = vmatmul.mubr.f32.gmra.mrb[0].mxu0 %v3888
      %v3971 = vpop.f32.mrb[0].mxu0
      %v3972 = vadd.f32 0.0, %v3971
      %v3973 = vpop.f32.mrb[0].mxu0
      %3974 = vdwg.mxu0
      %v3975 = vrot.slane %v207, 3
      %v3976 = vsel %vm436, %v2838, %v3975
      %v3977 = vsel %vm239, %v3976, 0
      %3979 = vmatprep.subr.mxu0 0.0
      %3980 = vmatpush1.xpose.msra.mxu0 %v452
      %3981 = vmatprep.subr.mxu0 0.0
      %3982 = vmatpush1.xpose.msra.mxu0 %v1703
      %3983 = vmatprep.subr.mxu0 0.0
      %3984 = vmatpush1.xpose.msra.mxu0 %v2840
      %3985 = vmatprep.subr.mxu0 0.0
      %3986 = vmatpush1.xpose.msra.mxu0 %v3977
      %3987 = vmatprep.subr.mxu0 0.0
      %3988 = vmatpush1.xpose.msra.mxu0 0.0
      %3989 = vmatprep.subr.mxu0 0.0
      %3990 = vmatpush1.xpose.msra.mxu0 0.0
      %3991 = vmatprep.subr.mxu0 0.0
      %3992 = vmatpush1.xpose.msra.mxu0 0.0
      %3993 = vmatprep.subr.mxu0 0.0
      %3994 = vmatpush1.xpose.msra.mxu0 0.0
      %3995 = vmatprep.subr.mxu0 0.0
      %3996 = vmatpush1.xpose.msra.mxu0 0.0
      %3997 = vmatprep.subr.mxu0 0.0
      %3998 = vmatpush1.xpose.msra.mxu0 0.0
      %3999 = vmatprep.subr.mxu0 0.0
      %4000 = vmatpush1.xpose.msra.mxu0 0.0
      %4001 = vmatprep.subr.mxu0 0.0
      %4002 = vmatpush1.xpose.msra.mxu0 0.0
      %4003 = vmatprep.subr.mxu0 0.0
      %4004 = vmatpush1.xpose.msra.mxu0 0.0
      %4005 = vmatprep.subr.mxu0 0.0
      %4006 = vmatpush1.xpose.msra.mxu0 0.0
      %4007 = vmatprep.subr.mxu0 0.0
      %4008 = vmatpush1.xpose.msra.mxu0 0.0
      %4009 = vmatprep.subr.mxu0 0.0
      %4010 = vmatpush1.xpose.msra.mxu0 0.0
      %4011 = vmatprep.subr.mxu0 0.0
      %4012 = vmatpush1.xpose.msra.mxu0 0.0
      %4013 = vmatprep.subr.mxu0 0.0
      %4014 = vmatpush1.xpose.msra.mxu0 0.0
      %4015 = vmatprep.subr.mxu0 0.0
      %4016 = vmatpush1.xpose.msra.mxu0 0.0
      %4017 = vmatprep.subr.mxu0 0.0
      %4018 = vmatpush1.xpose.msra.mxu0 0.0
      %4019 = vmatprep.subr.mxu0 0.0
      %4020 = vmatpush1.xpose.msra.mxu0 0.0
      %4021 = vmatprep.subr.mxu0 0.0
      %4022 = vmatpush1.xpose.msra.mxu0 0.0
      %4023 = vmatprep.subr.mxu0 0.0
      %4024 = vmatpush1.xpose.msra.mxu0 0.0
      %4025 = vmatprep.subr.mxu0 0.0
      %4026 = vmatpush1.xpose.msra.mxu0 0.0
      %4027 = vmatprep.subr.mxu0 0.0
      %4028 = vmatpush1.xpose.msra.mxu0 0.0
      %4029 = vmatprep.subr.mxu0 0.0
      %4030 = vmatpush1.xpose.msra.mxu0 0.0
      %4031 = vmatprep.subr.mxu0 0.0
      %4032 = vmatpush1.xpose.msra.mxu0 0.0
      %4033 = vmatprep.subr.mxu0 0.0
      %4034 = vmatpush1.xpose.msra.mxu0 0.0
      %4035 = vmatprep.subr.mxu0 0.0
      %4036 = vmatpush1.xpose.msra.mxu0 0.0
      %4037 = vmatprep.subr.mxu0 0.0
      %4038 = vmatpush1.xpose.msra.mxu0 0.0
      %4039 = vmatprep.subr.mxu0 0.0
      %4040 = vmatpush1.xpose.msra.mxu0 0.0
      %4041 = vmatprep.subr.mxu0 0.0
      %4042 = vmatpush1.xpose.msra.mxu0 0.0
      %4043 = vmatprep.mubr.f32.mxu0 0.0
      %4044 = vmatmul.mubr.f32.gmra.mrb[0].mxu0 %v452
      %v4045 = vpop.f32.mrb[0].mxu0
      %v4046 = vadd.f32 0.0, %v4045
      %v4047 = vpop.f32.mrb[0].mxu0
      %4048 = vmatprep.mubr.f32.mxu0 0.0
      %4049 = vmatmul.mubr.f32.gmra.mrb[0].mxu0 %v1703
      %v4050 = vpop.f32.mrb[0].mxu0
      %v4051 = vadd.f32 0.0, %v4050
      %v4052 = vpop.f32.mrb[0].mxu0
      %4053 = vmatprep.mubr.f32.mxu0 0.0
      %4054 = vmatmul.mubr.f32.gmra.mrb[0].mxu0 %v2840
      %v4055 = vpop.f32.mrb[0].mxu0
      %v4056 = vadd.f32 0.0, %v4055
      %v4057 = vpop.f32.mrb[0].mxu0
      %4058 = vmatprep.mubr.f32.mxu0 0.0
      %4059 = vmatmul.mubr.f32.gmra.mrb[0].mxu0 %v3977
      %v4060 = vpop.f32.mrb[0].mxu0
      %v4061 = vadd.f32 0.0, %v4060
      %v4062 = vpop.f32.mrb[0].mxu0
      %4063 = vdwg.mxu0
      %v4064 = vrot.slane %v207, 4
      %v4065 = vsel %vm539, %v2927, %v4064
      %v4066 = vsel %vm239, %v4065, 0
      %4068 = vmatprep.subr.mxu0 0.0
      %4069 = vmatpush1.xpose.msra.mxu0 %v555
      %4070 = vmatprep.subr.mxu0 0.0
      %4071 = vmatpush1.xpose.msra.mxu0 %v1792
      %4072 = vmatprep.subr.mxu0 0.0
      %4073 = vmatpush1.xpose.msra.mxu0 %v2929
      %4074 = vmatprep.subr.mxu0 0.0
      %4075 = vmatpush1.xpose.msra.mxu0 %v4066
      %4076 = vmatprep.subr.mxu0 0.0
      %4077 = vmatpush1.xpose.msra.mxu0 0.0
      %4078 = vmatprep.subr.mxu0 0.0
      %4079 = vmatpush1.xpose.msra.mxu0 0.0
      %4080 = vmatprep.subr.mxu0 0.0
      %4081 = vmatpush1.xpose.msra.mxu0 0.0
      %4082 = vmatprep.subr.mxu0 0.0
      %4083 = vmatpush1.xpose.msra.mxu0 0.0
      %4084 = vmatprep.subr.mxu0 0.0
      %4085 = vmatpush1.xpose.msra.mxu0 0.0
      %4086 = vmatprep.subr.mxu0 0.0
      %4087 = vmatpush1.xpose.msra.mxu0 0.0
      %4088 = vmatprep.subr.mxu0 0.0
      %4089 = vmatpush1.xpose.msra.mxu0 0.0
      %4090 = vmatprep.subr.mxu0 0.0
      %4091 = vmatpush1.xpose.msra.mxu0 0.0
      %4092 = vmatprep.subr.mxu0 0.0
      %4093 = vmatpush1.xpose.msra.mxu0 0.0
      %4094 = vmatprep.subr.mxu0 0.0
      %4095 = vmatpush1.xpose.msra.mxu0 0.0
      %4096 = vmatprep.subr.mxu0 0.0
      %4097 = vmatpush1.xpose.msra.mxu0 0.0
      %4098 = vmatprep.subr.mxu0 0.0
      %4099 = vmatpush1.xpose.msra.mxu0 0.0
      %4100 = vmatprep.subr.mxu0 0.0
      %4101 = vmatpush1.xpose.msra.mxu0 0.0
      %4102 = vmatprep.subr.mxu0 0.0
      %4103 = vmatpush1.xpose.msra.mxu0 0.0
      %4104 = vmatprep.subr.mxu0 0.0
      %4105 = vmatpush1.xpose.msra.mxu0 0.0
      %4106 = vmatprep.subr.mxu0 0.0
      %4107 = vmatpush1.xpose.msra.mxu0 0.0
      %4108 = vmatprep.subr.mxu0 0.0
      %4109 = vmatpush1.xpose.msra.mxu0 0.0
      %4110 = vmatprep.subr.mxu0 0.0
      %4111 = vmatpush1.xpose.msra.mxu0 0.0
      %4112 = vmatprep.subr.mxu0 0.0
      %4113 = vmatpush1.xpose.msra.mxu0 0.0
      %4114 = vmatprep.subr.mxu0 0.0
      %4115 = vmatpush1.xpose.msra.mxu0 0.0
      %4116 = vmatprep.subr.mxu0 0.0
      %4117 = vmatpush1.xpose.msra.mxu0 0.0
      %4118 = vmatprep.subr.mxu0 0.0
      %4119 = vmatpush1.xpose.msra.mxu0 0.0
      %4120 = vmatprep.subr.mxu0 0.0
      %4121 = vmatpush1.xpose.msra.mxu0 0.0
      %4122 = vmatprep.subr.mxu0 0.0
      %4123 = vmatpush1.xpose.msra.mxu0 0.0
      %4124 = vmatprep.subr.mxu0 0.0
      %4125 = vmatpush1.xpose.msra.mxu0 0.0
      %4126 = vmatprep.subr.mxu0 0.0
      %4127 = vmatpush1.xpose.msra.mxu0 0.0
      %4128 = vmatprep.subr.mxu0 0.0
      %4129 = vmatpush1.xpose.msra.mxu0 0.0
      %4130 = vmatprep.subr.mxu0 0.0
      %4131 = vmatpush1.xpose.msra.mxu0 0.0
      %4132 = vmatprep.mubr.f32.mxu0 0.0
      %4133 = vmatmul.mubr.f32.gmra.mrb[0].mxu0 %v555
      %v4134 = vpop.f32.mrb[0].mxu0
      %v4135 = vadd.f32 0.0, %v4134
      %v4136 = vpop.f32.mrb[0].mxu0
      %4137 = vmatprep.mubr.f32.mxu0 0.0
      %4138 = vmatmul.mubr.f32.gmra.mrb[0].mxu0 %v1792
      %v4139 = vpop.f32.mrb[0].mxu0
      %v4140 = vadd.f32 0.0, %v4139
      %v4141 = vpop.f32.mrb[0].mxu0
      %4142 = vmatprep.mubr.f32.mxu0 0.0
      %4143 = vmatmul.mubr.f32.gmra.mrb[0].mxu0 %v2929
      %v4144 = vpop.f32.mrb[0].mxu0
      %v4145 = vadd.f32 0.0, %v4144
      %v4146 = vpop.f32.mrb[0].mxu0
      %4147 = vmatprep.mubr.f32.mxu0 0.0
      %4148 = vmatmul.mubr.f32.gmra.mrb[0].mxu0 %v4066
      %v4149 = vpop.f32.mrb[0].mxu0
      %v4150 = vadd.f32 0.0, %v4149
      %v4151 = vpop.f32.mrb[0].mxu0
      %4152 = vdwg.mxu0
      %4153 = vrot.lane.b32.xlu0 %v3798, 32
      %v4154 = vpop.permute.xlu0 %4153
      %4155 = vrot.lane.b32.xlu0 %v3797, 32
      %v4156 = vpop.permute.xlu0 %4155
      %4159 = vrot.lane.b32.xlu0 %v3887, 64
      %v4160 = vpop.permute.xlu0 %4159
      %4161 = vrot.lane.b32.xlu0 %v3886, 64
      %v4162 = vpop.permute.xlu0 %4161
      %4165 = vrot.lane.b32.xlu0 %v3976, 96
      %v4166 = vpop.permute.xlu0 %4165
      %4167 = vrot.lane.b32.xlu0 %v3975, 96
      %v4168 = vpop.permute.xlu0 %4167
      %v4171 = vsel %vm239, %v206, %v4154
      %v4172 = vsel %vm239, %v207, %v4156
      %v4173 = vsel %vm692, %v4171, %v4160
      %v4174 = vsel %vm692, %v4172, %v4162
      %v4175 = vsel %vm698, %v4173, %v4166
      %v4176 = vsel %vm698, %v4174, %v4168
      %4181 = vrot.lane.b32.xlu0 %v3957, 32
      %v4182 = vpop.permute.xlu0 %4181
      %4183 = vrot.lane.b32.xlu0 %v3962, 32
      %v4184 = vpop.permute.xlu0 %4183
      %4185 = vrot.lane.b32.xlu0 %v3967, 32
      %v4186 = vpop.permute.xlu0 %4185
      %4187 = vrot.lane.b32.xlu0 %v3972, 32
      %v4188 = vpop.permute.xlu0 %4187
      %4197 = vrot.lane.b32.xlu0 %v4046, 64
      %v4198 = vpop.permute.xlu0 %4197
      %4199 = vrot.lane.b32.xlu0 %v4051, 64
      %v4200 = vpop.permute.xlu0 %4199
      %4201 = vrot.lane.b32.xlu0 %v4056, 64
      %v4202 = vpop.permute.xlu0 %4201
      %4203 = vrot.lane.b32.xlu0 %v4061, 64
      %v4204 = vpop.permute.xlu0 %4203
      %4213 = vrot.lane.b32.xlu0 %v4135, 96
      %v4214 = vpop.permute.xlu0 %4213
      %4215 = vrot.lane.b32.xlu0 %v4140, 96
      %v4216 = vpop.permute.xlu0 %4215
      %4217 = vrot.lane.b32.xlu0 %v4145, 96
      %v4218 = vpop.permute.xlu0 %4217
      %4219 = vrot.lane.b32.xlu0 %v4150, 96
      %v4220 = vpop.permute.xlu0 %4219
      %v4225 = vsel %vm239, %v3868, %v4182
      %v4226 = vsel %vm239, %v3873, %v4184
      %v4227 = vsel %vm239, %v3878, %v4186
      %v4228 = vsel %vm239, %v3883, %v4188
      %v4229 = vsel %vm692, %v4225, %v4198
      %v4230 = vsel %vm692, %v4226, %v4200
      %v4231 = vsel %vm692, %v4227, %v4202
      %v4232 = vsel %vm692, %v4228, %v4204
      %v4233 = vsel %vm698, %v4229, %v4214
      %v4234 = vsel %vm698, %v4230, %v4216
      %v4235 = vsel %vm698, %v4231, %v4218
      %v4236 = vsel %vm698, %v4232, %v4220
      %v4237 = vmul.f32 %v4233, %v4233
      %v4238 = vmul.f32 %v4234, %v4234
      %v4239 = vmul.f32 %v4235, %v4235
      %v4240 = vmul.f32 %v4236, %v4236
      %v4241 = vmul.f32 %v4237, %v4237
      %v4242 = vmul.f32 %v4238, %v4238
      %v4243 = vmul.f32 %v4239, %v4239
      %v4244 = vmul.f32 %v4240, %v4240
      %v4245 = vmul.f32 %v4241, %v4241
      %v4246 = vmul.f32 %v4242, %v4242
      %v4247 = vmul.f32 %v4243, %v4243
      %v4248 = vmul.f32 %v4244, %v4244
      %v4249 = vmul.f32 %v4245, %v4245
      %v4250 = vmul.f32 %v4246, %v4246
      %v4251 = vmul.f32 %v4247, %v4247
      %v4252 = vmul.f32 %v4248, %v4248
      %v4253 = vmul.f32 %v4249, %v4249
      %v4254 = vmul.f32 %v4250, %v4250
      %v4255 = vmul.f32 %v4251, %v4251
      %v4256 = vmul.f32 %v4252, %v4252
      %v4257 = vrcp.pop %v4253
      %v4258 = vrcp.pop %v4254
      %v4259 = vrcp.pop %v4255
      %v4260 = vrcp.pop %v4256
      %4261 = vmatprep.subr.mxu0 0.0
      %4262 = vmatpush1.msra.mxu0 %v208
      %4263 = vmatprep.subr.mxu0 0.0
      %4264 = vmatpush1.msra.mxu0 %v209
      %4265 = vmatprep.subr.mxu0 0.0
      %4266 = vmatpush1.msra.mxu0 %v210
      %4267 = vmatprep.subr.mxu0 0.0
      %4268 = vmatpush1.msra.mxu0 %v211
      %4269 = vmatprep.subr.mxu0 0.0
      %4270 = vmatpush1.msra.mxu0 %v212
      %4271 = vmatprep.subr.mxu0 0.0
      %4272 = vmatpush1.msra.mxu0 %v213
      %4273 = vmatprep.subr.mxu0 0.0
      %4274 = vmatpush1.msra.mxu0 %v214
      %4275 = vmatprep.subr.mxu0 0.0
      %4276 = vmatpush1.msra.mxu0 %v215
      %4277 = vmatprep.subr.mxu0 0.0
      %4278 = vmatpush1.msra.mxu0 %v216
      %4279 = vmatprep.subr.mxu0 0.0
      %4280 = vmatpush1.msra.mxu0 %v217
      %4281 = vmatprep.subr.mxu0 0.0
      %4282 = vmatpush1.msra.mxu0 %v218
      %4283 = vmatprep.subr.mxu0 0.0
      %4284 = vmatpush1.msra.mxu0 %v219
      %4285 = vmatprep.subr.mxu0 0.0
      %4286 = vmatpush1.msra.mxu0 %v220
      %4287 = vmatprep.subr.mxu0 0.0
      %4288 = vmatpush1.msra.mxu0 %v221
      %4289 = vmatprep.subr.mxu0 0.0
      %4290 = vmatpush1.msra.mxu0 %v222
      %4291 = vmatprep.subr.mxu0 0.0
      %4292 = vmatpush1.msra.mxu0 %v223
      %4293 = vmatprep.subr.mxu0 0.0
      %4294 = vmatpush1.msra.mxu0 0.0
      %4295 = vmatprep.subr.mxu0 0.0
      %4296 = vmatpush1.msra.mxu0 0.0
      %4297 = vmatprep.subr.mxu0 0.0
      %4298 = vmatpush1.msra.mxu0 0.0
      %4299 = vmatprep.subr.mxu0 0.0
      %4300 = vmatpush1.msra.mxu0 0.0
      %4301 = vmatprep.subr.mxu0 0.0
      %4302 = vmatpush1.msra.mxu0 0.0
      %4303 = vmatprep.subr.mxu0 0.0
      %4304 = vmatpush1.msra.mxu0 0.0
      %4305 = vmatprep.subr.mxu0 0.0
      %4306 = vmatpush1.msra.mxu0 0.0
      %4307 = vmatprep.subr.mxu0 0.0
      %4308 = vmatpush1.msra.mxu0 0.0
      %4309 = vmatprep.subr.mxu0 0.0
      %4310 = vmatpush1.msra.mxu0 0.0
      %4311 = vmatprep.subr.mxu0 0.0
      %4312 = vmatpush1.msra.mxu0 0.0
      %4313 = vmatprep.subr.mxu0 0.0
      %4314 = vmatpush1.msra.mxu0 0.0
      %4315 = vmatprep.subr.mxu0 0.0
      %4316 = vmatpush1.msra.mxu0 0.0
      %4317 = vmatprep.subr.mxu0 0.0
      %4318 = vmatpush1.msra.mxu0 0.0
      %4319 = vmatprep.subr.mxu0 0.0
      %4320 = vmatpush1.msra.mxu0 0.0
      %4321 = vmatprep.subr.mxu0 0.0
      %4322 = vmatpush1.msra.mxu0 0.0
      %4323 = vmatprep.subr.mxu0 0.0
      %4324 = vmatpush1.msra.mxu0 0.0
      %4325 = vmatprep.mubr.f32.mxu0 0.0
      %4326 = vmatmul.mubr.f32.gmra.mrb[0].mxu0 %v4257
      %v4327 = vpop.f32.mrb[0].mxu0
      %v4328 = vadd.f32 0.0, %v4327
      %v4329 = vpop.f32.mrb[0].mxu0
      %4330 = vmatprep.mubr.f32.mxu0 0.0
      %4331 = vmatmul.mubr.f32.gmra.mrb[0].mxu0 %v4258
      %v4332 = vpop.f32.mrb[0].mxu0
      %v4333 = vadd.f32 0.0, %v4332
      %v4334 = vpop.f32.mrb[0].mxu0
      %4335 = vmatprep.mubr.f32.mxu0 0.0
      %4336 = vmatmul.mubr.f32.gmra.mrb[0].mxu0 %v4259
      %v4337 = vpop.f32.mrb[0].mxu0
      %v4338 = vadd.f32 0.0, %v4337
      %v4339 = vpop.f32.mrb[0].mxu0
      %4340 = vmatprep.mubr.f32.mxu0 0.0
      %4341 = vmatmul.mubr.f32.gmra.mrb[0].mxu0 %v4260
      %v4342 = vpop.f32.mrb[0].mxu0
      %v4343 = vadd.f32 0.0, %v4342
      %v4344 = vpop.f32.mrb[0].mxu0
      %4345 = vdwg.mxu0
      %v4346 = vrcp.pop %v4328
      %v4347 = vrcp.pop %v4333
      %v4348 = vrcp.pop %v4338
      %v4349 = vrcp.pop %v4343
      %v4350 = vmul.f32 %v4257, %v4346
      %v4351 = vmul.f32 %v4258, %v4347
      %v4352 = vmul.f32 %v4259, %v4348
      %v4353 = vmul.f32 %v4260, %v4349
      %v4356 = vrot.slane %v4175, 1
      %v4357 = vsel %vm229, %v3219, %v4356
      %v4358 = vrot.slane %v4176, 1
      %v4359 = vsel %vm229, %v4356, %v4358
      %v4362 = vmul.f32 %v4350, %v2083
      %v4363 = vmul.f32 %v4351, %v3220
      %v4364 = vmul.f32 %v4352, %v4357
      %v4365 = vmul.f32 %v4353, %v4359
      %v4366 = vadd.f32 %v4362, %v4363
      %v4367 = vadd.f32 %v4366, %v4364
      %v4368 = vadd.f32 %v4367, %v4365
      %v4369 = vrot.slane %v4368, 4
      %v4370 = vadd.f32 %v4368, %v4369
      %v4371 = vrot.slane %v4370, 2
      %v4372 = vadd.f32 %v4370, %v4371
      %v4373 = vrot.slane %v4372, 1
      %v4374 = vadd.f32 %v4372, %v4373
      %v4375 = vrot.slane %v207, 5
      %v4376 = vsel %vm912, %v3238, %v4375
      %v4377 = vsel %vm239, %v4376, 0
      %4379 = vmatprep.subr.mxu0 0.0
      %4380 = vmatpush1.xpose.msra.mxu0 %v928
      %4381 = vmatprep.subr.mxu0 0.0
      %4382 = vmatpush1.xpose.msra.mxu0 %v2103
      %4383 = vmatprep.subr.mxu0 0.0
      %4384 = vmatpush1.xpose.msra.mxu0 %v3240
      %4385 = vmatprep.subr.mxu0 0.0
      %4386 = vmatpush1.xpose.msra.mxu0 %v4377
      %4387 = vmatprep.subr.mxu0 0.0
      %4388 = vmatpush1.xpose.msra.mxu0 0.0
      %4389 = vmatprep.subr.mxu0 0.0
      %4390 = vmatpush1.xpose.msra.mxu0 0.0
      %4391 = vmatprep.subr.mxu0 0.0
      %4392 = vmatpush1.xpose.msra.mxu0 0.0
      %4393 = vmatprep.subr.mxu0 0.0
      %4394 = vmatpush1.xpose.msra.mxu0 0.0
      %4395 = vmatprep.subr.mxu0 0.0
      %4396 = vmatpush1.xpose.msra.mxu0 0.0
      %4397 = vmatprep.subr.mxu0 0.0
      %4398 = vmatpush1.xpose.msra.mxu0 0.0
      %4399 = vmatprep.subr.mxu0 0.0
      %4400 = vmatpush1.xpose.msra.mxu0 0.0
      %4401 = vmatprep.subr.mxu0 0.0
      %4402 = vmatpush1.xpose.msra.mxu0 0.0
      %4403 = vmatprep.subr.mxu0 0.0
      %4404 = vmatpush1.xpose.msra.mxu0 0.0
      %4405 = vmatprep.subr.mxu0 0.0
      %4406 = vmatpush1.xpose.msra.mxu0 0.0
      %4407 = vmatprep.subr.mxu0 0.0
      %4408 = vmatpush1.xpose.msra.mxu0 0.0
      %4409 = vmatprep.subr.mxu0 0.0
      %4410 = vmatpush1.xpose.msra.mxu0 0.0
      %4411 = vmatprep.subr.mxu0 0.0
      %4412 = vmatpush1.xpose.msra.mxu0 0.0
      %4413 = vmatprep.subr.mxu0 0.0
      %4414 = vmatpush1.xpose.msra.mxu0 0.0
      %4415 = vmatprep.subr.mxu0 0.0
      %4416 = vmatpush1.xpose.msra.mxu0 0.0
      %4417 = vmatprep.subr.mxu0 0.0
      %4418 = vmatpush1.xpose.msra.mxu0 0.0
      %4419 = vmatprep.subr.mxu0 0.0
      %4420 = vmatpush1.xpose.msra.mxu0 0.0
      %4421 = vmatprep.subr.mxu0 0.0
      %4422 = vmatpush1.xpose.msra.mxu0 0.0
      %4423 = vmatprep.subr.mxu0 0.0
      %4424 = vmatpush1.xpose.msra.mxu0 0.0
      %4425 = vmatprep.subr.mxu0 0.0
      %4426 = vmatpush1.xpose.msra.mxu0 0.0
      %4427 = vmatprep.subr.mxu0 0.0
      %4428 = vmatpush1.xpose.msra.mxu0 0.0
      %4429 = vmatprep.subr.mxu0 0.0
      %4430 = vmatpush1.xpose.msra.mxu0 0.0
      %4431 = vmatprep.subr.mxu0 0.0
      %4432 = vmatpush1.xpose.msra.mxu0 0.0
      %4433 = vmatprep.subr.mxu0 0.0
      %4434 = vmatpush1.xpose.msra.mxu0 0.0
      %4435 = vmatprep.subr.mxu0 0.0
      %4436 = vmatpush1.xpose.msra.mxu0 0.0
      %4437 = vmatprep.subr.mxu0 0.0
      %4438 = vmatpush1.xpose.msra.mxu0 0.0
      %4439 = vmatprep.subr.mxu0 0.0
      %4440 = vmatpush1.xpose.msra.mxu0 0.0
      %4441 = vmatprep.subr.mxu0 0.0
      %4442 = vmatpush1.xpose.msra.mxu0 0.0
      %4443 = vmatprep.mubr.f32.mxu0 0.0
      %4444 = vmatmul.mubr.f32.gmra.mrb[0].mxu0 %v928
      %v4445 = vpop.f32.mrb[0].mxu0
      %v4446 = vadd.f32 0.0, %v4445
      %v4447 = vpop.f32.mrb[0].mxu0
      %4448 = vmatprep.mubr.f32.mxu0 0.0
      %4449 = vmatmul.mubr.f32.gmra.mrb[0].mxu0 %v2103
      %v4450 = vpop.f32.mrb[0].mxu0
      %v4451 = vadd.f32 0.0, %v4450
      %v4452 = vpop.f32.mrb[0].mxu0
      %4453 = vmatprep.mubr.f32.mxu0 0.0
      %4454 = vmatmul.mubr.f32.gmra.mrb[0].mxu0 %v3240
      %v4455 = vpop.f32.mrb[0].mxu0
      %v4456 = vadd.f32 0.0, %v4455
      %v4457 = vpop.f32.mrb[0].mxu0
      %4458 = vmatprep.mubr.f32.mxu0 0.0
      %4459 = vmatmul.mubr.f32.gmra.mrb[0].mxu0 %v4377
      %v4460 = vpop.f32.mrb[0].mxu0
      %v4461 = vadd.f32 0.0, %v4460
      %v4462 = vpop.f32.mrb[0].mxu0
      %4463 = vdwg.mxu0
      %v4464 = vrot.slane %v207, 6
      %v4465 = vsel %vm1015, %v3327, %v4464
      %v4466 = vsel %vm239, %v4465, 0
      %4468 = vmatprep.subr.mxu0 0.0
      %4469 = vmatpush1.xpose.msra.mxu0 %v1031
      %4470 = vmatprep.subr.mxu0 0.0
      %4471 = vmatpush1.xpose.msra.mxu0 %v2192
      %4472 = vmatprep.subr.mxu0 0.0
      %4473 = vmatpush1.xpose.msra.mxu0 %v3329
      %4474 = vmatprep.subr.mxu0 0.0
      %4475 = vmatpush1.xpose.msra.mxu0 %v4466
      %4476 = vmatprep.subr.mxu0 0.0
      %4477 = vmatpush1.xpose.msra.mxu0 0.0
      %4478 = vmatprep.subr.mxu0 0.0
      %4479 = vmatpush1.xpose.msra.mxu0 0.0
      %4480 = vmatprep.subr.mxu0 0.0
      %4481 = vmatpush1.xpose.msra.mxu0 0.0
      %4482 = vmatprep.subr.mxu0 0.0
      %4483 = vmatpush1.xpose.msra.mxu0 0.0
      %4484 = vmatprep.subr.mxu0 0.0
      %4485 = vmatpush1.xpose.msra.mxu0 0.0
      %4486 = vmatprep.subr.mxu0 0.0
      %4487 = vmatpush1.xpose.msra.mxu0 0.0
      %4488 = vmatprep.subr.mxu0 0.0
      %4489 = vmatpush1.xpose.msra.mxu0 0.0
      %4490 = vmatprep.subr.mxu0 0.0
      %4491 = vmatpush1.xpose.msra.mxu0 0.0
      %4492 = vmatprep.subr.mxu0 0.0
      %4493 = vmatpush1.xpose.msra.mxu0 0.0
      %4494 = vmatprep.subr.mxu0 0.0
      %4495 = vmatpush1.xpose.msra.mxu0 0.0
      %4496 = vmatprep.subr.mxu0 0.0
      %4497 = vmatpush1.xpose.msra.mxu0 0.0
      %4498 = vmatprep.subr.mxu0 0.0
      %4499 = vmatpush1.xpose.msra.mxu0 0.0
      %4500 = vmatprep.subr.mxu0 0.0
      %4501 = vmatpush1.xpose.msra.mxu0 0.0
      %4502 = vmatprep.subr.mxu0 0.0
      %4503 = vmatpush1.xpose.msra.mxu0 0.0
      %4504 = vmatprep.subr.mxu0 0.0
      %4505 = vmatpush1.xpose.msra.mxu0 0.0
      %4506 = vmatprep.subr.mxu0 0.0
      %4507 = vmatpush1.xpose.msra.mxu0 0.0
      %4508 = vmatprep.subr.mxu0 0.0
      %4509 = vmatpush1.xpose.msra.mxu0 0.0
      %4510 = vmatprep.subr.mxu0 0.0
      %4511 = vmatpush1.xpose.msra.mxu0 0.0
      %4512 = vmatprep.subr.mxu0 0.0
      %4513 = vmatpush1.xpose.msra.mxu0 0.0
      %4514 = vmatprep.subr.mxu0 0.0
      %4515 = vmatpush1.xpose.msra.mxu0 0.0
      %4516 = vmatprep.subr.mxu0 0.0
      %4517 = vmatpush1.xpose.msra.mxu0 0.0
      %4518 = vmatprep.subr.mxu0 0.0
      %4519 = vmatpush1.xpose.msra.mxu0 0.0
      %4520 = vmatprep.subr.mxu0 0.0
      %4521 = vmatpush1.xpose.msra.mxu0 0.0
      %4522 = vmatprep.subr.mxu0 0.0
      %4523 = vmatpush1.xpose.msra.mxu0 0.0
      %4524 = vmatprep.subr.mxu0 0.0
      %4525 = vmatpush1.xpose.msra.mxu0 0.0
      %4526 = vmatprep.subr.mxu0 0.0
      %4527 = vmatpush1.xpose.msra.mxu0 0.0
      %4528 = vmatprep.subr.mxu0 0.0
      %4529 = vmatpush1.xpose.msra.mxu0 0.0
      %4530 = vmatprep.subr.mxu0 0.0
      %4531 = vmatpush1.xpose.msra.mxu0 0.0
      %4532 = vmatprep.mubr.f32.mxu0 0.0
      %4533 = vmatmul.mubr.f32.gmra.mrb[0].mxu0 %v1031
      %v4534 = vpop.f32.mrb[0].mxu0
      %v4535 = vadd.f32 0.0, %v4534
      %v4536 = vpop.f32.mrb[0].mxu0
      %4537 = vmatprep.mubr.f32.mxu0 0.0
      %4538 = vmatmul.mubr.f32.gmra.mrb[0].mxu0 %v2192
      %v4539 = vpop.f32.mrb[0].mxu0
      %v4540 = vadd.f32 0.0, %v4539
      %v4541 = vpop.f32.mrb[0].mxu0
      %4542 = vmatprep.mubr.f32.mxu0 0.0
      %4543 = vmatmul.mubr.f32.gmra.mrb[0].mxu0 %v3329
      %v4544 = vpop.f32.mrb[0].mxu0
      %v4545 = vadd.f32 0.0, %v4544
      %v4546 = vpop.f32.mrb[0].mxu0
      %4547 = vmatprep.mubr.f32.mxu0 0.0
      %4548 = vmatmul.mubr.f32.gmra.mrb[0].mxu0 %v4466
      %v4549 = vpop.f32.mrb[0].mxu0
      %v4550 = vadd.f32 0.0, %v4549
      %v4551 = vpop.f32.mrb[0].mxu0
      %4552 = vdwg.mxu0
      %v4553 = vrot.slane %v207, 7
      %v4554 = vsel %vm1118, %v3416, %v4553
      %v4555 = vsel %vm239, %v4554, 0
      %4557 = vmatprep.subr.mxu0 0.0
      %4558 = vmatpush1.xpose.msra.mxu0 %v1134
      %4559 = vmatprep.subr.mxu0 0.0
      %4560 = vmatpush1.xpose.msra.mxu0 %v2281
      %4561 = vmatprep.subr.mxu0 0.0
      %4562 = vmatpush1.xpose.msra.mxu0 %v3418
      %4563 = vmatprep.subr.mxu0 0.0
      %4564 = vmatpush1.xpose.msra.mxu0 %v4555
      %4565 = vmatprep.subr.mxu0 0.0
      %4566 = vmatpush1.xpose.msra.mxu0 0.0
      %4567 = vmatprep.subr.mxu0 0.0
      %4568 = vmatpush1.xpose.msra.mxu0 0.0
      %4569 = vmatprep.subr.mxu0 0.0
      %4570 = vmatpush1.xpose.msra.mxu0 0.0
      %4571 = vmatprep.subr.mxu0 0.0
      %4572 = vmatpush1.xpose.msra.mxu0 0.0
      %4573 = vmatprep.subr.mxu0 0.0
      %4574 = vmatpush1.xpose.msra.mxu0 0.0
      %4575 = vmatprep.subr.mxu0 0.0
      %4576 = vmatpush1.xpose.msra.mxu0 0.0
      %4577 = vmatprep.subr.mxu0 0.0
      %4578 = vmatpush1.xpose.msra.mxu0 0.0
      %4579 = vmatprep.subr.mxu0 0.0
      %4580 = vmatpush1.xpose.msra.mxu0 0.0
      %4581 = vmatprep.subr.mxu0 0.0
      %4582 = vmatpush1.xpose.msra.mxu0 0.0
      %4583 = vmatprep.subr.mxu0 0.0
      %4584 = vmatpush1.xpose.msra.mxu0 0.0
      %4585 = vmatprep.subr.mxu0 0.0
      %4586 = vmatpush1.xpose.msra.mxu0 0.0
      %4587 = vmatprep.subr.mxu0 0.0
      %4588 = vmatpush1.xpose.msra.mxu0 0.0
      %4589 = vmatprep.subr.mxu0 0.0
      %4590 = vmatpush1.xpose.msra.mxu0 0.0
      %4591 = vmatprep.subr.mxu0 0.0
      %4592 = vmatpush1.xpose.msra.mxu0 0.0
      %4593 = vmatprep.subr.mxu0 0.0
      %4594 = vmatpush1.xpose.msra.mxu0 0.0
      %4595 = vmatprep.subr.mxu0 0.0
      %4596 = vmatpush1.xpose.msra.mxu0 0.0
      %4597 = vmatprep.subr.mxu0 0.0
      %4598 = vmatpush1.xpose.msra.mxu0 0.0
      %4599 = vmatprep.subr.mxu0 0.0
      %4600 = vmatpush1.xpose.msra.mxu0 0.0
      %4601 = vmatprep.subr.mxu0 0.0
      %4602 = vmatpush1.xpose.msra.mxu0 0.0
      %4603 = vmatprep.subr.mxu0 0.0
      %4604 = vmatpush1.xpose.msra.mxu0 0.0
      %4605 = vmatprep.subr.mxu0 0.0
      %4606 = vmatpush1.xpose.msra.mxu0 0.0
      %4607 = vmatprep.subr.mxu0 0.0
      %4608 = vmatpush1.xpose.msra.mxu0 0.0
      %4609 = vmatprep.subr.mxu0 0.0
      %4610 = vmatpush1.xpose.msra.mxu0 0.0
      %4611 = vmatprep.subr.mxu0 0.0
      %4612 = vmatpush1.xpose.msra.mxu0 0.0
      %4613 = vmatprep.subr.mxu0 0.0
      %4614 = vmatpush1.xpose.msra.mxu0 0.0
      %4615 = vmatprep.subr.mxu0 0.0
      %4616 = vmatpush1.xpose.msra.mxu0 0.0
      %4617 = vmatprep.subr.mxu0 0.0
      %4618 = vmatpush1.xpose.msra.mxu0 0.0
      %4619 = vmatprep.subr.mxu0 0.0
      %4620 = vmatpush1.xpose.msra.mxu0 0.0
      %4621 = vmatprep.mubr.f32.mxu0 0.0
      %4622 = vmatmul.mubr.f32.gmra.mrb[0].mxu0 %v1134
      %v4623 = vpop.f32.mrb[0].mxu0
      %v4624 = vadd.f32 0.0, %v4623
      %v4625 = vpop.f32.mrb[0].mxu0
      %4626 = vmatprep.mubr.f32.mxu0 0.0
      %4627 = vmatmul.mubr.f32.gmra.mrb[0].mxu0 %v2281
      %v4628 = vpop.f32.mrb[0].mxu0
      %v4629 = vadd.f32 0.0, %v4628
      %v4630 = vpop.f32.mrb[0].mxu0
      %4631 = vmatprep.mubr.f32.mxu0 0.0
      %4632 = vmatmul.mubr.f32.gmra.mrb[0].mxu0 %v3418
      %v4633 = vpop.f32.mrb[0].mxu0
      %v4634 = vadd.f32 0.0, %v4633
      %v4635 = vpop.f32.mrb[0].mxu0
      %4636 = vmatprep.mubr.f32.mxu0 0.0
      %4637 = vmatmul.mubr.f32.gmra.mrb[0].mxu0 %v4555
      %v4638 = vpop.f32.mrb[0].mxu0
      %v4639 = vadd.f32 0.0, %v4638
      %v4640 = vpop.f32.mrb[0].mxu0
      %4641 = vdwg.mxu0
      %v4642 = vsel %vm239, %v207, 0
      %4644 = vmatprep.subr.mxu0 0.0
      %4645 = vmatpush1.xpose.msra.mxu0 %v1227
      %4646 = vmatprep.subr.mxu0 0.0
      %4647 = vmatpush1.xpose.msra.mxu0 %v2368
      %4648 = vmatprep.subr.mxu0 0.0
      %4649 = vmatpush1.xpose.msra.mxu0 %v3505
      %4650 = vmatprep.subr.mxu0 0.0
      %4651 = vmatpush1.xpose.msra.mxu0 %v4642
      %4652 = vmatprep.subr.mxu0 0.0
      %4653 = vmatpush1.xpose.msra.mxu0 0.0
      %4654 = vmatprep.subr.mxu0 0.0
      %4655 = vmatpush1.xpose.msra.mxu0 0.0
      %4656 = vmatprep.subr.mxu0 0.0
      %4657 = vmatpush1.xpose.msra.mxu0 0.0
      %4658 = vmatprep.subr.mxu0 0.0
      %4659 = vmatpush1.xpose.msra.mxu0 0.0
      %4660 = vmatprep.subr.mxu0 0.0
      %4661 = vmatpush1.xpose.msra.mxu0 0.0
      %4662 = vmatprep.subr.mxu0 0.0
      %4663 = vmatpush1.xpose.msra.mxu0 0.0
      %4664 = vmatprep.subr.mxu0 0.0
      %4665 = vmatpush1.xpose.msra.mxu0 0.0
      %4666 = vmatprep.subr.mxu0 0.0
      %4667 = vmatpush1.xpose.msra.mxu0 0.0
      %4668 = vmatprep.subr.mxu0 0.0
      %4669 = vmatpush1.xpose.msra.mxu0 0.0
      %4670 = vmatprep.subr.mxu0 0.0
      %4671 = vmatpush1.xpose.msra.mxu0 0.0
      %4672 = vmatprep.subr.mxu0 0.0
      %4673 = vmatpush1.xpose.msra.mxu0 0.0
      %4674 = vmatprep.subr.mxu0 0.0
      %4675 = vmatpush1.xpose.msra.mxu0 0.0
      %4676 = vmatprep.subr.mxu0 0.0
      %4677 = vmatpush1.xpose.msra.mxu0 0.0
      %4678 = vmatprep.subr.mxu0 0.0
      %4679 = vmatpush1.xpose.msra.mxu0 0.0
      %4680 = vmatprep.subr.mxu0 0.0
      %4681 = vmatpush1.xpose.msra.mxu0 0.0
      %4682 = vmatprep.subr.mxu0 0.0
      %4683 = vmatpush1.xpose.msra.mxu0 0.0
      %4684 = vmatprep.subr.mxu0 0.0
      %4685 = vmatpush1.xpose.msra.mxu0 0.0
      %4686 = vmatprep.subr.mxu0 0.0
      %4687 = vmatpush1.xpose.msra.mxu0 0.0
      %4688 = vmatprep.subr.mxu0 0.0
      %4689 = vmatpush1.xpose.msra.mxu0 0.0
      %4690 = vmatprep.subr.mxu0 0.0
      %4691 = vmatpush1.xpose.msra.mxu0 0.0
      %4692 = vmatprep.subr.mxu0 0.0
      %4693 = vmatpush1.xpose.msra.mxu0 0.0
      %4694 = vmatprep.subr.mxu0 0.0
      %4695 = vmatpush1.xpose.msra.mxu0 0.0
      %4696 = vmatprep.subr.mxu0 0.0
      %4697 = vmatpush1.xpose.msra.mxu0 0.0
      %4698 = vmatprep.subr.mxu0 0.0
      %4699 = vmatpush1.xpose.msra.mxu0 0.0
      %4700 = vmatprep.subr.mxu0 0.0
      %4701 = vmatpush1.xpose.msra.mxu0 0.0
      %4702 = vmatprep.subr.mxu0 0.0
      %4703 = vmatpush1.xpose.msra.mxu0 0.0
      %4704 = vmatprep.subr.mxu0 0.0
      %4705 = vmatpush1.xpose.msra.mxu0 0.0
      %4706 = vmatprep.subr.mxu0 0.0
      %4707 = vmatpush1.xpose.msra.mxu0 0.0
      %4708 = vmatprep.mubr.f32.mxu0 0.0
      %4709 = vmatmul.mubr.f32.gmra.mrb[0].mxu0 %v1227
      %v4710 = vpop.f32.mrb[0].mxu0
      %v4711 = vadd.f32 0.0, %v4710
      %v4712 = vpop.f32.mrb[0].mxu0
      %4713 = vmatprep.mubr.f32.mxu0 0.0
      %4714 = vmatmul.mubr.f32.gmra.mrb[0].mxu0 %v2368
      %v4715 = vpop.f32.mrb[0].mxu0
      %v4716 = vadd.f32 0.0, %v4715
      %v4717 = vpop.f32.mrb[0].mxu0
      %4718 = vmatprep.mubr.f32.mxu0 0.0
      %4719 = vmatmul.mubr.f32.gmra.mrb[0].mxu0 %v3505
      %v4720 = vpop.f32.mrb[0].mxu0
      %v4721 = vadd.f32 0.0, %v4720
      %v4722 = vpop.f32.mrb[0].mxu0
      %4723 = vmatprep.mubr.f32.mxu0 0.0
      %4724 = vmatmul.mubr.f32.gmra.mrb[0].mxu0 %v4642
      %v4725 = vpop.f32.mrb[0].mxu0
      %v4726 = vadd.f32 0.0, %v4725
      %v4727 = vpop.f32.mrb[0].mxu0
      %4728 = vdwg.mxu0
      %v4729 = vsel %vm698, %v696, %v681
      %4734 = vrot.lane.b32.xlu0 %v4535, 32
      %v4735 = vpop.permute.xlu0 %4734
      %4736 = vrot.lane.b32.xlu0 %v4540, 32
      %v4737 = vpop.permute.xlu0 %4736
      %4738 = vrot.lane.b32.xlu0 %v4545, 32
      %v4739 = vpop.permute.xlu0 %4738
      %4740 = vrot.lane.b32.xlu0 %v4550, 32
      %v4741 = vpop.permute.xlu0 %4740
      %4750 = vrot.lane.b32.xlu0 %v4624, 64
      %v4751 = vpop.permute.xlu0 %4750
      %4752 = vrot.lane.b32.xlu0 %v4629, 64
      %v4753 = vpop.permute.xlu0 %4752
      %4754 = vrot.lane.b32.xlu0 %v4634, 64
      %v4755 = vpop.permute.xlu0 %4754
      %4756 = vrot.lane.b32.xlu0 %v4639, 64
      %v4757 = vpop.permute.xlu0 %4756
      %4766 = vrot.lane.b32.xlu0 %v4711, 96
      %v4767 = vpop.permute.xlu0 %4766
      %4768 = vrot.lane.b32.xlu0 %v4716, 96
      %v4769 = vpop.permute.xlu0 %4768
      %4770 = vrot.lane.b32.xlu0 %v4721, 96
      %v4771 = vpop.permute.xlu0 %4770
      %4772 = vrot.lane.b32.xlu0 %v4726, 96
      %v4773 = vpop.permute.xlu0 %4772
      %v4778 = vsel %vm239, %v4446, %v4735
      %v4779 = vsel %vm239, %v4451, %v4737
      %v4780 = vsel %vm239, %v4456, %v4739
      %v4781 = vsel %vm239, %v4461, %v4741
      %v4782 = vsel %vm692, %v4778, %v4751
      %v4783 = vsel %vm692, %v4779, %v4753
      %v4784 = vsel %vm692, %v4780, %v4755
      %v4785 = vsel %vm692, %v4781, %v4757
      %v4786 = vsel %vm698, %v4782, %v4767
      %v4787 = vsel %vm698, %v4783, %v4769
      %v4788 = vsel %vm698, %v4784, %v4771
      %v4789 = vsel %vm698, %v4785, %v4773
      %v4790 = vmul.f32 %v4786, %v4786
      %v4791 = vmul.f32 %v4787, %v4787
      %v4792 = vmul.f32 %v4788, %v4788
      %v4793 = vmul.f32 %v4789, %v4789
      %v4794 = vmul.f32 %v4790, %v4790
      %v4795 = vmul.f32 %v4791, %v4791
      %v4796 = vmul.f32 %v4792, %v4792
      %v4797 = vmul.f32 %v4793, %v4793
      %v4798 = vmul.f32 %v4794, %v4794
      %v4799 = vmul.f32 %v4795, %v4795
      %v4800 = vmul.f32 %v4796, %v4796
      %v4801 = vmul.f32 %v4797, %v4797
      %v4802 = vmul.f32 %v4798, %v4798
      %v4803 = vmul.f32 %v4799, %v4799
      %v4804 = vmul.f32 %v4800, %v4800
      %v4805 = vmul.f32 %v4801, %v4801
      %v4806 = vmul.f32 %v4802, %v4802
      %v4807 = vmul.f32 %v4803, %v4803
      %v4808 = vmul.f32 %v4804, %v4804
      %v4809 = vmul.f32 %v4805, %v4805
      %v4810 = vrcp.pop %v4806
      %v4811 = vrcp.pop %v4807
      %v4812 = vrcp.pop %v4808
      %v4813 = vrcp.pop %v4809
      %4814 = vmatprep.subr.mxu0 0.0
      %4815 = vmatpush1.msra.mxu0 %v208
      %4816 = vmatprep.subr.mxu0 0.0
      %4817 = vmatpush1.msra.mxu0 %v209
      %4818 = vmatprep.subr.mxu0 0.0
      %4819 = vmatpush1.msra.mxu0 %v210
      %4820 = vmatprep.subr.mxu0 0.0
      %4821 = vmatpush1.msra.mxu0 %v211
      %4822 = vmatprep.subr.mxu0 0.0
      %4823 = vmatpush1.msra.mxu0 %v212
      %4824 = vmatprep.subr.mxu0 0.0
      %4825 = vmatpush1.msra.mxu0 %v213
      %4826 = vmatprep.subr.mxu0 0.0
      %4827 = vmatpush1.msra.mxu0 %v214
      %4828 = vmatprep.subr.mxu0 0.0
      %4829 = vmatpush1.msra.mxu0 %v215
      %4830 = vmatprep.subr.mxu0 0.0
      %4831 = vmatpush1.msra.mxu0 %v216
      %4832 = vmatprep.subr.mxu0 0.0
      %4833 = vmatpush1.msra.mxu0 %v217
      %4834 = vmatprep.subr.mxu0 0.0
      %4835 = vmatpush1.msra.mxu0 %v218
      %4836 = vmatprep.subr.mxu0 0.0
      %4837 = vmatpush1.msra.mxu0 %v219
      %4838 = vmatprep.subr.mxu0 0.0
      %4839 = vmatpush1.msra.mxu0 %v220
      %4840 = vmatprep.subr.mxu0 0.0
      %4841 = vmatpush1.msra.mxu0 %v221
      %4842 = vmatprep.subr.mxu0 0.0
      %4843 = vmatpush1.msra.mxu0 %v222
      %4844 = vmatprep.subr.mxu0 0.0
      %4845 = vmatpush1.msra.mxu0 %v223
      %4846 = vmatprep.subr.mxu0 0.0
      %4847 = vmatpush1.msra.mxu0 0.0
      %4848 = vmatprep.subr.mxu0 0.0
      %4849 = vmatpush1.msra.mxu0 0.0
      %4850 = vmatprep.subr.mxu0 0.0
      %4851 = vmatpush1.msra.mxu0 0.0
      %4852 = vmatprep.subr.mxu0 0.0
      %4853 = vmatpush1.msra.mxu0 0.0
      %4854 = vmatprep.subr.mxu0 0.0
      %4855 = vmatpush1.msra.mxu0 0.0
      %4856 = vmatprep.subr.mxu0 0.0
      %4857 = vmatpush1.msra.mxu0 0.0
      %4858 = vmatprep.subr.mxu0 0.0
      %4859 = vmatpush1.msra.mxu0 0.0
      %4860 = vmatprep.subr.mxu0 0.0
      %4861 = vmatpush1.msra.mxu0 0.0
      %4862 = vmatprep.subr.mxu0 0.0
      %4863 = vmatpush1.msra.mxu0 0.0
      %4864 = vmatprep.subr.mxu0 0.0
      %4865 = vmatpush1.msra.mxu0 0.0
      %4866 = vmatprep.subr.mxu0 0.0
      %4867 = vmatpush1.msra.mxu0 0.0
      %4868 = vmatprep.subr.mxu0 0.0
      %4869 = vmatpush1.msra.mxu0 0.0
      %4870 = vmatprep.subr.mxu0 0.0
      %4871 = vmatpush1.msra.mxu0 0.0
      %4872 = vmatprep.subr.mxu0 0.0
      %4873 = vmatpush1.msra.mxu0 0.0
      %4874 = vmatprep.subr.mxu0 0.0
      %4875 = vmatpush1.msra.mxu0 0.0
      %4876 = vmatprep.subr.mxu0 0.0
      %4877 = vmatpush1.msra.mxu0 0.0
      %4878 = vmatprep.mubr.f32.mxu0 0.0
      %4879 = vmatmul.mubr.f32.gmra.mrb[0].mxu0 %v4810
      %v4880 = vpop.f32.mrb[0].mxu0
      %v4881 = vadd.f32 0.0, %v4880
      %v4882 = vpop.f32.mrb[0].mxu0
      %4883 = vmatprep.mubr.f32.mxu0 0.0
      %4884 = vmatmul.mubr.f32.gmra.mrb[0].mxu0 %v4811
      %v4885 = vpop.f32.mrb[0].mxu0
      %v4886 = vadd.f32 0.0, %v4885
      %v4887 = vpop.f32.mrb[0].mxu0
      %4888 = vmatprep.mubr.f32.mxu0 0.0
      %4889 = vmatmul.mubr.f32.gmra.mrb[0].mxu0 %v4812
      %v4890 = vpop.f32.mrb[0].mxu0
      %v4891 = vadd.f32 0.0, %v4890
      %v4892 = vpop.f32.mrb[0].mxu0
      %4893 = vmatprep.mubr.f32.mxu0 0.0
      %4894 = vmatmul.mubr.f32.gmra.mrb[0].mxu0 %v4813
      %v4895 = vpop.f32.mrb[0].mxu0
      %v4896 = vadd.f32 0.0, %v4895
      %v4897 = vpop.f32.mrb[0].mxu0
      %4898 = vdwg.mxu0
      %v4899 = vrcp.pop %v4881
      %v4900 = vrcp.pop %v4886
      %v4901 = vrcp.pop %v4891
      %v4902 = vrcp.pop %v4896
      %v4903 = vmul.f32 %v4810, %v4899
      %v4904 = vmul.f32 %v4811, %v4900
      %v4905 = vmul.f32 %v4812, %v4901
      %v4906 = vmul.f32 %v4813, %v4902
      %v4908 = vrot.slane %v4729, 5
      %v4909 = vsel %vm912, %v4908, %v2639
      %v4910 = vrot.slane %v4175, 5
      %v4911 = vsel %vm912, %v3776, %v4910
      %v4912 = vrot.slane %v4176, 5
      %v4913 = vsel %vm912, %v4910, %v4912
      %v4917 = vmul.f32 %v4903, %v4909
      %v4918 = vmul.f32 %v4904, %v3777
      %v4919 = vmul.f32 %v4905, %v4911
      %v4920 = vmul.f32 %v4906, %v4913
      %v4921 = vadd.f32 %v4917, %v4918
      %v4922 = vadd.f32 %v4921, %v4919
      %v4923 = vadd.f32 %v4922, %v4920
      %v4924 = vrot.slane %v4923, 4
      %v4925 = vadd.f32 %v4923, %v4924
      %v4926 = vrot.slane %v4925, 2
      %v4927 = vadd.f32 %v4925, %v4926
      %v4928 = vrot.slane %v4927, 1
      %v4929 = vadd.f32 %v4927, %v4928
      %v4930 = vsel %vm1118, %v911, %v1521
      %v4931 = vsel %vm1015, %v4930, %v2100
      %v4932 = vsel %vm912, %v4931, %v2658
      %v4933 = vsel %vm539, %v4932, %v3237
      %v4934 = vsel %vm436, %v4933, %v3795
      %v4935 = vsel %vm333, %v4934, %v4374
      %v4936 = vsel %vm229, %v4935, %v4929
      %4937 = vst [vmem:[%s199] sm:$0xff] %v4936
      %p4938 = scmp.lt.s32.totalorder %s14, 1
      %s4939 = scalar_select %p4938, %s14, 1
      %s4940 = smul.addr %s4939, 8
      %s4941 = scalar_lea.vmem %s3, %s4940
      // Predicated region
      $region33: #{_forward_impl.1} parent=31 // pred_check
        %p4942 = pneg %p107
      $region34: #{_forward_impl.1} parent=31 // pred_check_branch
        %4944 = sbr.rel (%p4942) target = $region36
      $region35: #{_forward_impl.1} parent=31 // pred_region
        _
      $region36: #{_forward_impl.1} parent=31 // pred_fallthru
        _
    $region32: #{_forward_impl.1} parent=5 // pred_fallthru
      _
    %p4945 = scmp.le.s32.totalorder 2, %s9
    // Predicated region
    $region37: #{_forward_impl.1} parent=5 // pred_check
      %p4946 = pneg %p4945
    $region38: #{_forward_impl.1} parent=5 // pred_check_branch
      %4948 = sbr.rel (%p4946) target = $region40
    $region39: #{_forward_impl.1} parent=5 // pred_region
      %s4949 = ssub.s32 %s9, 2
      // Predicated region
      $region41: #{_forward_impl.1} parent=39 // pred_check
        %p4950 = pneg %p113
      $region42: #{_forward_impl.1} parent=39 // pred_check_branch
        %4952 = sbr.rel (%p4950) target = $region44
      $region43: #{_forward_impl.1} parent=39 // pred_region
        %p4953 = scmp.lt.s32.totalorder %s15, 1
        %s4954 = scalar_select %p4953, %s15, 1
        %s4955 = smul.addr %s4954, 8
        %s4956 = scalar_lea.vmem %s3, %s4955
      $region44: #{_forward_impl.1} parent=39 // pred_fallthru
        _
    $region40: #{_forward_impl.1} parent=5 // pred_fallthru
      _
  $region6: #{_forward_impl.1} parent=0 // loop_footer
    %s13 = sadd.s32 1, %s9
  $region7: #{_forward_impl.1} parent=0 // loop_footer_branch
    %8 = sbr.rel target = $region3
  $region8: #{_forward_impl.1} parent=0 // loop_exit
    _

</llo_original>
